<compile_context>
chip_gen: v7x
topology: tpu7x:2x2x1
jax: 0.10.0
libtpu: 0.0.40
codegen_flags: <defaults>
</compile_context>

<pallas_src>
import functools

import jax
import jax.numpy as jnp
from jax import lax
from jax.experimental import pallas as pl
from jax.experimental.pallas import tpu as pltpu

EXPANSION = 4
BN_EPS = 1e-5


def _itemsize(dt):
    return jnp.dtype(dt).itemsize


def _round_up(x, m):
    return ((x + m - 1) // m) * m


# --------------------- generation-aware VMEM budgeting ---------------------- #

def _vmem_capacity_bytes():
    """Physical VMEM per TensorCore (128 MiB on v5e/v6e, 64 MiB on v7x)."""
    try:
        info = pltpu.get_tpu_info()
        cap = int(getattr(info, "vmem_capacity_bytes", 0) or 0)
        if cap > 0:
            return cap
    except Exception:
        pass
    return 64 * 1024 * 1024                      # conservative default (v7x-sized)


VMEM_CAP_BYTES = _vmem_capacity_bytes()
# Scoped-VMEM request: generous on 128 MiB parts (v5e/v6e -> 96 MiB), clamped on
# 64 MiB v7x (-> 48 MiB), with headroom left for Mosaic-internal scratch.
VMEM_LIMIT_BYTES = int(min(96 * 1024 * 1024, VMEM_CAP_BYTES * 3 // 4))
# Budget used when sizing tiles (double-buffered blocks are accounted below).
TILE_BUDGET_BYTES = VMEM_LIMIT_BYTES // 2
_MAX_TM = 1024
# The fused conv3+shortcut kernel carries two input tiles + two weight slabs,
# so clamp its row tile harder on small-VMEM (v7x) parts.
_MAX_TM_DUAL = 512 if VMEM_CAP_BYTES <= 64 * 1024 * 1024 else 1024


# ------------------------------ tile choosers -------------------------------- #

def _choose_tm(M, in_row_bytes, out_row_bytes, fixed_bytes, budget, max_tm=_MAX_TM):
    """Row tile for the 1x1-conv matmuls.

    Accounts for double-buffered input/output tiles plus the resident weight /
    vector blocks (`fixed_bytes`), prefers a multiple-of-8 divisor of M (no pad
    copy) and prefers >= 2 grid steps so v7x's second TensorCore gets work.
    Returns (tm, pad_rows).
    """
    per_row = 2 * (in_row_bytes + out_row_bytes)          # double-buffered tiles
    avail = max(budget - fixed_bytes, 1 << 20)
    cap = int(min(max_tm, max(8, avail // max(per_row, 1))))
    cap = max(8, (cap // 8) * 8)
    if M >= 32:                                           # keep >= 2 grid steps
        cap = min(cap, max(8, (M // 2 // 8) * 8))
    t = cap
    while t >= 8:                                         # largest 8-mult divisor
        if M % t == 0:
            return t, 0
        t -= 8
    tm = min(cap, _round_up(M, 8))                        # fallback: pad M up
    return tm, _round_up(M, tm) - M


def _choose_conv_row_tile(H, Wp, cin, cout, budget):
    """Image rows per conv2 grid step: th must divide H; target 128..1024
    flattened rows per matmul and >= 2 row tiles when the image allows it."""
    fixed = 2 * (H + 3) * Wp * cin * 2 + 2 * 9 * cin * cout * 2
    avail = max(budget - fixed, 1 << 18)
    divisors = [d for d in range(1, H + 1) if H % d == 0]
    feasible = [d for d in divisors
                if d * Wp <= 1024 and 8 * d * Wp * cout <= avail]
    if not feasible:
        feasible = [1]
    split = [d for d in feasible if d < H and d * Wp >= 128]
    return max(split) if split else max(feasible)


# ----------------------------- Pallas kernels -------------------------------- #

def _mm_bias_kernel(x_ref, w_ref, b_ref, o_ref, *, relu):
    # BN scale is pre-folded into w; epilogue is bias-add (+ReLU) only.
    y = jnp.dot(x_ref[...].astype(w_ref.dtype), w_ref[...],
                preferred_element_type=jnp.float32) + b_ref[...]
    if relu:
        y = jnp.maximum(y, 0.0)
    o_ref[...] = y.astype(o_ref.dtype)


def _mm_bias_res_kernel(x_ref, w_ref, b_ref, r_ref, o_ref, *, relu):
    # Identity-shortcut variant: residual arrives as bf16, up-cast on the VPU.
    y = (jnp.dot(x_ref[...].astype(w_ref.dtype), w_ref[...],
                 preferred_element_type=jnp.float32)
         + b_ref[...] + r_ref[...].astype(jnp.float32))
    if relu:
        y = jnp.maximum(y, 0.0)
    o_ref[...] = y.astype(o_ref.dtype)


def _dual_mm_bias_kernel(x1_ref, w1_ref, x2_ref, w2_ref, b_ref, o_ref, *, relu):
    # conv3 matmul + 1x1-shortcut matmul fused into one output tile; the two
    # BN biases are pre-merged into b_ref.
    y = (jnp.dot(x1_ref[...].astype(w1_ref.dtype), w1_ref[...],
                 preferred_element_type=jnp.float32)
         + jnp.dot(x2_ref[...].astype(w2_ref.dtype), w2_ref[...],
                   preferred_element_type=jnp.float32)
         + b_ref[...])
    if relu:
        y = jnp.maximum(y, 0.0)
    o_ref[...] = y.astype(o_ref.dtype)


def _conv3x3_bn_kernel(hp_ref, w_ref, b_ref, o_ref, *, wp, th, w_out, relu):
    """3x3 conv as 9 tap matmuls over a flattened, padded image.

    hp_ref : (1, Lp, Cin) bf16 — whole padded image of one batch item (fetched
             once per n; the block index is constant along the row-tile axis).
    w_ref  : (9, Cin, Cout) bf16, BN scale pre-folded.   b_ref: (1, Cout) f32.
    o_ref  : (1, th, w_out, Cout) — ONLY the valid output columns are stored.
    """
    rows = th * wp
    base = pl.program_id(1) * rows                       # multiple of 8 (wp%8==0)
    acc = None
    for kh in range(3):
        row0 = pl.multiple_of(base + kh * wp, 8)         # aligned slab load
        slab = hp_ref[0, pl.ds(row0, rows + 8), :]       # (+8 slack covers kw shift)
        for kw in range(3):
            tap = slab[kw:kw + rows, :]                  # static, cheap value slice
            d = jnp.dot(tap, w_ref[kh * 3 + kw],
                        preferred_element_type=jnp.float32)
            # Single accumulation chain — keeps the adds on the MXU result path
            # (in-place MRB accumulation on v7x).
            acc = d if acc is None else acc + d
    y = acc + b_ref[...]
    if relu:
        y = jnp.maximum(y, 0.0)
    # Store only the w_out valid columns of each padded row (no garbage
    # writeback, no post-kernel XLA slice).  Slice starts are multiples of 8.
    for r in range(th):
        o_ref[0, r] = y[r * wp:r * wp + w_out, :].astype(o_ref.dtype)


# -------------------------------- wrappers ------------------------------------ #

def fused_matmul_bias(x2d, w_bf16, bias, *, relu, residual=None,
                      out_dtype=jnp.bfloat16):
    """out = relu?( x2d @ w + bias (+ residual) ), row-tiled MXU matmul."""
    M, K = x2d.shape
    Kw, C = w_bf16.shape
    assert K == Kw
    out_isz = _itemsize(out_dtype)
    in_row = K * _itemsize(x2d.dtype)
    res_row = 0 if residual is None else C * _itemsize(residual.dtype)
    fixed = 2 * K * C * 2 + 8 * C * 4                    # weights (2 bufs) + vectors
    tm, pad = _choose_tm(M, in_row + res_row, C * out_isz, fixed,
                         TILE_BUDGET_BYTES)
    Mp = M + pad
    if pad:                                              # rare fallback only
        x2d = jnp.pad(x2d, ((0, pad), (0, 0)))
        if residual is not None:
            residual = jnp.pad(residual, ((0, pad), (0, 0)))

    b2 = bias.reshape(1, C).astype(jnp.float32)
    x_spec = pl.BlockSpec((tm, K), lambda i: (i, 0))
    w_spec = pl.BlockSpec((K, C), lambda i: (0, 0))
    v_spec = pl.BlockSpec((1, C), lambda i: (0, 0))
    o_spec = pl.BlockSpec((tm, C), lambda i: (i, 0))

    if residual is None:
        kernel = functools.partial(_mm_bias_kernel, relu=relu)
        in_specs = [x_spec, w_spec, v_spec]
        args = (x2d, w_bf16, b2)
        res_bytes = 0
    else:
        kernel = functools.partial(_mm_bias_res_kernel, relu=relu)
        in_specs = [x_spec, w_spec, v_spec, o_spec]
        args = (x2d, w_bf16, b2, residual)
        res_bytes = residual.size * _itemsize(residual.dtype)

    cost = pl.CostEstimate(
        flops=2 * Mp * K * C, transcendentals=0,
        bytes_accessed=x2d.size * _itemsize(x2d.dtype) + w_bf16.size * 2
                       + Mp * C * out_isz + res_bytes)

    out = pl.pallas_call(
        kernel,
        out_shape=jax.ShapeDtypeStruct((Mp, C), out_dtype),
        grid_spec=pltpu.PrefetchScalarGridSpec(
            num_scalar_prefetch=0, grid=(Mp // tm,),
            in_specs=in_specs, out_specs=o_spec),
        compiler_params=pltpu.CompilerParams(
            dimension_semantics=("parallel",),
            vmem_limit_bytes=VMEM_LIMIT_BYTES),
        cost_estimate=cost,
    )(*args)
    return out[:M] if pad else out


def fused_dual_matmul_bias(x1, w1_bf16, x2, w2_bf16, bias, *, relu,
                           out_dtype=jnp.bfloat16):
    """out = relu?( x1@w1 + x2@w2 + bias ) — conv3 + 1x1 shortcut fused."""
    M, K1 = x1.shape
    M2, K2 = x2.shape
    _, C = w1_bf16.shape
    assert M == M2 and w2_bf16.shape[1] == C
    out_isz = _itemsize(out_dtype)
    in_row = K1 * _itemsize(x1.dtype) + K2 * _itemsize(x2.dtype)
    fixed = 2 * (K1 + K2) * C * 2 + 8 * C * 4
    tm, pad = _choose_tm(M, in_row, C * out_isz, fixed, TILE_BUDGET_BYTES,
                         max_tm=_MAX_TM_DUAL)
    Mp = M + pad
    if pad:
        x1 = jnp.pad(x1, ((0, pad), (0, 0)))
        x2 = jnp.pad(x2, ((0, pad), (0, 0)))
    b2 = bias.reshape(1, C).astype(jnp.float32)

    in_specs = [pl.BlockSpec((tm, K1), lambda i: (i, 0)),
                pl.BlockSpec((K1, C), lambda i: (0, 0)),
                pl.BlockSpec((tm, K2), lambda i: (i, 0)),
                pl.BlockSpec((K2, C), lambda i: (0, 0)),
                pl.BlockSpec((1, C), lambda i: (0, 0))]
    o_spec = pl.BlockSpec((tm, C), lambda i: (i, 0))

    cost = pl.CostEstimate(
        flops=2 * Mp * (K1 + K2) * C, transcendentals=0,
        bytes_accessed=Mp * in_row + (K1 + K2) * C * 2 + Mp * C * out_isz)

    out = pl.pallas_call(
        functools.partial(_dual_mm_bias_kernel, relu=relu),
        out_shape=jax.ShapeDtypeStruct((Mp, C), out_dtype),
        grid_spec=pltpu.PrefetchScalarGridSpec(
            num_scalar_prefetch=0, grid=(Mp // tm,),
            in_specs=in_specs, out_specs=o_spec),
        compiler_params=pltpu.CompilerParams(
            dimension_semantics=("parallel",),
            vmem_limit_bytes=VMEM_LIMIT_BYTES),
        cost_estimate=cost,
    )(x1, w1_bf16, x2, w2_bf16, b2)
    return out[:M] if pad else out


def conv3x3_bn_relu(h1_nhwc, w_taps_bf16, bias, *, stride=1):
    """3x3 conv (pad=1) + BN + ReLU; NHWC bf16 in, NHWC bf16 out.

    One jnp.pad builds a flattened padded image with an 8-aligned row pitch Wp;
    each tap is a contiguous slab of that axis accumulated as a matmul inside
    the kernel.  Grid = (N, row_tiles); the kernel stores only the W valid
    columns per row, so no extended output is ever written back to HBM.
    """
    N, H, W, Cin = h1_nhwc.shape
    Cout = w_taps_bf16.shape[2]
    Wp = _round_up(W + 2, 8)                     # sublane-aligned padded pitch
    Lp = (H + 3) * Wp                            # 1 top + 2 bottom pad rows (slack)

    # Single XLA pad pass (bf16).  The pad/reshape is the only conv2 boundary
    # copy left; the old second pad and post-kernel slice are gone.
    hp = jnp.pad(h1_nhwc, ((0, 0), (1, 2), (1, Wp - W - 1), (0, 0)))
    hp = hp.reshape(N, Lp, Cin)                  # contiguous -> free reshape

    th = _choose_conv_row_tile(H, Wp, Cin, Cout, TILE_BUDGET_BYTES)
    b2 = bias.reshape(1, Cout).astype(jnp.float32)

    cost = pl.CostEstimate(
        flops=2 * N * H * Wp * 9 * Cin * Cout, transcendentals=0,
        bytes_accessed=hp.size * 2 + w_taps_bf16.size * 2 + N * H * W * Cout * 2)

    out = pl.pallas_call(
        functools.partial(_conv3x3_bn_kernel, wp=Wp, th=th, w_out=W, relu=True),
        out_shape=jax.ShapeDtypeStruct((N, H, W, Cout), jnp.bfloat16),
        grid_spec=pltpu.PrefetchScalarGridSpec(
            num_scalar_prefetch=0, grid=(N, H // th),
            in_specs=[pl.BlockSpec((1, Lp, Cin), lambda n, t: (n, 0, 0)),
                      pl.BlockSpec((9, Cin, Cout), lambda n, t: (0, 0, 0)),
                      pl.BlockSpec((1, Cout), lambda n, t: (0, 0))],
            out_specs=pl.BlockSpec((1, th, W, Cout), lambda n, t: (n, t, 0, 0))),
        compiler_params=pltpu.CompilerParams(
            dimension_semantics=("parallel", "parallel"),
            vmem_limit_bytes=VMEM_LIMIT_BYTES),
        cost_estimate=cost,
    )(hp, w_taps_bf16, b2)

    if stride != 1:
        # TODO(synk): stride>1 computes the stride-1 conv and subsamples (only
        # the single downsample block per ResNet stage pays the extra compute).
        out = out[:, ::stride, ::stride, :]
    return out


# -------------------------------- Bottleneck ----------------------------------- #

def init_bottleneck_params(key, in_planes, planes):
    """Deterministic synthetic parameters mirroring the PyTorch module shapes."""
    out_planes = EXPANSION * planes
    ks = jax.random.split(key, 16)

    def w(k, shape):
        return (0.1 * jax.random.normal(k, shape)).astype(jnp.float32)

    def bn(k0, k1, k2, k3, c):
        gamma = 1.0 + 0.1 * jax.random.normal(k0, (c,))
        beta = 0.1 * jax.random.normal(k1, (c,))
        mean = 0.1 * jax.random.normal(k2, (c,))
        var = 0.5 + jnp.abs(jax.random.normal(k3, (c,)))
        scale = gamma / jnp.sqrt(var + BN_EPS)
        bias = beta - mean * scale
        return scale.astype(jnp.float32), bias.astype(jnp.float32)

    p = {}
    # PyTorch conv weights are OIHW.
    p["w1_oihw"] = w(ks[0], (planes, in_planes, 1, 1))
    p["w2_oihw"] = w(ks[1], (planes, planes, 3, 3))
    p["w3_oihw"] = w(ks[2], (out_planes, planes, 1, 1))
    p["wsc_oihw"] = w(ks[3], (out_planes, in_planes, 1, 1))
    p["s1"], p["b1"] = bn(ks[4], ks[5], ks[6], ks[7], planes)
    p["s2"], p["b2"] = bn(ks[8], ks[9], ks[10], ks[11], planes)
    p["s3"], p["b3"] = bn(ks[12], ks[13], ks[14], ks[15], out_planes)
    ksc = jax.random.split(ks[15], 4)
    p["ssc"], p["bsc"] = bn(ksc[0], ksc[1], ksc[2], ksc[3], out_planes)
    return p


def bottleneck_forward(x_nchw, params, stride=1):
    """Pallas-backed forward of the Bottleneck block. Input/output: NCHW f32."""
    N, Cin, H, W = x_nchw.shape
    planes = params["w1_oihw"].shape[0]
    out_planes = params["w3_oihw"].shape[0]

    # Fold BN scales into matmul-form weights (f32 fold, single bf16 cast).
    w1f = (params["w1_oihw"][:, :, 0, 0].T
           * params["s1"][None, :]).astype(jnp.bfloat16)
    w2f = (jnp.transpose(params["w2_oihw"], (2, 3, 1, 0)).reshape(9, planes, planes)
           * params["s2"][None, None, :]).astype(jnp.bfloat16)
    w3f = (params["w3_oihw"][:, :, 0, 0].T
           * params["s3"][None, :]).astype(jnp.bfloat16)

    # NCHW -> NHWC fused with the bf16 cast: one HBM pass, bf16 everywhere after.
    x_nhwc = jnp.transpose(x_nchw, (0, 2, 3, 1)).astype(jnp.bfloat16)

    # --- conv1 (1x1) + bn1 + relu ---
    h1 = fused_matmul_bias(x_nhwc.reshape(N * H * W, Cin), w1f, params["b1"],
                           relu=True)
    h1 = h1.reshape(N, H, W, planes)

    # --- conv2 (3x3, stride, pad=1) + bn2 + relu ---
    h2 = conv3x3_bn_relu(h1, w2f, params["b2"], stride=stride)
    Hout, Wout = h2.shape[1], h2.shape[2]
    M2 = N * Hout * Wout
    h2 = h2.reshape(M2, planes)

    # --- conv3 (1x1) + bn3 + shortcut + relu, fully fused ---
    if stride != 1 or Cin != out_planes:
        wscf = (params["wsc_oihw"][:, :, 0, 0].T
                * params["ssc"][None, :]).astype(jnp.bfloat16)
        xs = x_nhwc[:, ::stride, ::stride, :].reshape(M2, Cin)
        out2d = fused_dual_matmul_bias(h2, w3f, xs, wscf,
                                       params["b3"] + params["bsc"], relu=True)
    else:
        res = x_nhwc.reshape(M2, out_planes)            # bf16 identity residual
        out2d = fused_matmul_bias(h2, w3f, params["b3"], relu=True, residual=res)

    out = out2d.reshape(N, Hout, Wout, out_planes)
    # NHWC bf16 -> NCHW f32 in a single fused XLA transpose+convert pass.
    return jnp.transpose(out, (0, 3, 1, 2)).astype(jnp.float32)


# ------------------------------- JAX reference ---------------------------------- #

def _ref_conv(x, w, stride, pad):
    return lax.conv_general_dilated(
        x, w, (stride, stride), ((pad, pad), (pad, pad)),
        dimension_numbers=("NCHW", "OIHW", "NCHW"))


def _ref_bn(x, s, b):
    return x * s[None, :, None, None] + b[None, :, None, None]


def bottleneck_reference(x, p, stride=1):
    Cin = x.shape[1]
    out_planes = p["w3_oihw"].shape[0]
    h = jax.nn.relu(_ref_bn(_ref_conv(x, p["w1_oihw"], 1, 0), p["s1"], p["b1"]))
    h = jax.nn.relu(_ref_bn(_ref_conv(h, p["w2_oihw"], stride, 1), p["s2"], p["b2"]))
    h = _ref_bn(_ref_conv(h, p["w3_oihw"], 1, 0), p["s3"], p["b3"])
    if stride != 1 or Cin != out_planes:
        sc = _ref_bn(_ref_conv(x, p["wsc_oihw"], stride, 0), p["ssc"], p["bsc"])
    else:
        sc = x
    return jax.nn.relu(h + sc)


# ------------------------------------ main -------------------------------------- #

if __name__ == "__main__":
    key = jax.random.PRNGKey(0)
    configs = [
        # (in_planes, planes, stride): conv-shortcut / identity-shortcut / downsample
        (4, 4, 1),
        (16, 4, 1),
        (4, 4, 2),
    ]
    for in_planes, planes, stride in configs:
        key, k_x, k_p = jax.random.split(key, 3)
        x = jax.random.normal(k_x, (2, in_planes, 16, 16), dtype=jnp.float32)
        params = init_bottleneck_params(k_p, in_planes, planes)

        fwd = jax.jit(functools.partial(bottleneck_forward, stride=stride))
        out = jax.block_until_ready(fwd(x, params))
        ref = jax.block_until_ready(bottleneck_reference(x, params, stride=stride))

        assert out.shape == ref.shape, (out.shape, ref.shape)
        err = float(jnp.max(jnp.abs(out - ref)))
        # bf16 operands / activations with f32 accumulation -> relaxed tolerance.
        assert jnp.allclose(out, ref, rtol=5e-2, atol=5e-2), (in_planes, planes,
                                                              stride, err)

    print("KERNEL_OK")
</pallas_src>

<mosaic_0001>
module attributes {stable_mosaic.version = 11 : i64} {
  func.func @_mm_bias_kernel(%arg0: i32, %arg1: memref<256x4xbf16, #tpu.memory_space<vmem>>, %arg2: memref<4x4xbf16, #tpu.memory_space<vmem>>, %arg3: memref<1x4xf32, #tpu.memory_space<vmem>>, %arg4: memref<256x4xbf16, #tpu.memory_space<vmem>>) attributes {dimension_semantics = [#tpu.dimension_semantics<parallel>], iteration_bounds = array<i64: 2>, scalar_prefetch = 0 : i64, scratch_operands = 0 : i64, tpu.core_type = #tpu.core_type<tc>, window_params = [{transform_indices = @transform_0, window_bounds = array<i64: 256, 4>}, {pipeline_mode = #tpu.pipeline_mode<synchronous>, transform_indices = @transform_1, window_bounds = array<i64: 4, 4>}, {pipeline_mode = #tpu.pipeline_mode<synchronous>, transform_indices = @transform_2, window_bounds = array<i64: 1, 4>}, {transform_indices = @transform_3, window_bounds = array<i64: 256, 4>}]} {
    %c0 = arith.constant 0 : index
    %c0_0 = arith.constant 0 : index
    %0 = vector.load %arg1[%c0, %c0_0] : memref<256x4xbf16, #tpu.memory_space<vmem>>, vector<256x4xbf16>
    %c0_1 = arith.constant 0 : index
    %c0_2 = arith.constant 0 : index
    %1 = vector.load %arg2[%c0_1, %c0_2] : memref<4x4xbf16, #tpu.memory_space<vmem>>, vector<4x4xbf16>
    %cst = arith.constant dense<0.000000e+00> : vector<256x4xf32>
    %2 = tpu.matmul %0, %1, %cst {dimension_numbers = #tpu.dot_dimension_numbers<[1], [0], [0], [1], [0, 0, 1, 1], [], []>} : vector<256x4xbf16>, vector<4x4xbf16>, vector<256x4xf32> -> vector<256x4xf32>
    %c0_3 = arith.constant 0 : index
    %c0_4 = arith.constant 0 : index
    %3 = vector.load %arg3[%c0_3, %c0_4] : memref<1x4xf32, #tpu.memory_space<vmem>>, vector<1x4xf32>
    %4 = vector.broadcast %3 : vector<1x4xf32> to vector<256x4xf32>
    %5 = arith.addf %2, %4 : vector<256x4xf32>
    %cst_5 = arith.constant 0.000000e+00 : f32
    %6 = vector.broadcast %cst_5 : f32 to vector<256x4xf32>
    %7 = arith.maximumf %5, %6 : vector<256x4xf32>
    %8 = arith.truncf %7 : vector<256x4xf32> to vector<256x4xbf16>
    %c0_6 = arith.constant 0 : index
    %c0_7 = arith.constant 0 : index
    %9 = vector.load %arg4[%c0_6, %c0_7] : memref<256x4xbf16, #tpu.memory_space<vmem>>, vector<256x4xbf16>
    tpu.vector_store %arg4[%c0_6, %c0_7], %8 {strides = array<i32>} : memref<256x4xbf16, #tpu.memory_space<vmem>>, vector<256x4xbf16>,
    return
  }
  func.func @transform_0(%arg0: i32) -> (i32, i32) {
    %c0_i32 = arith.constant 0 : i32
    %c0_i32_0 = arith.constant 0 : i32
    return %arg0, %c0_i32 : i32, i32
  }
  func.func @transform_1(%arg0: i32) -> (i32, i32) {
    %c0_i32 = arith.constant 0 : i32
    %c0_i32_0 = arith.constant 0 : i32
    %c0_i32_1 = arith.constant 0 : i32
    return %c0_i32, %c0_i32_0 : i32, i32
  }
  func.func @transform_2(%arg0: i32) -> (i32, i32) {
    %c0_i32 = arith.constant 0 : i32
    %c0_i32_0 = arith.constant 0 : i32
    %c0_i32_1 = arith.constant 0 : i32
    return %c0_i32, %c0_i32_0 : i32, i32
  }
  func.func @transform_3(%arg0: i32) -> (i32, i32) {
    %c0_i32 = arith.constant 0 : i32
    %c0_i32_0 = arith.constant 0 : i32
    return %arg0, %c0_i32 : i32, i32
  }
}

module attributes {stable_mosaic.version = 11 : i64} {
  func.func @_conv3x3_bn_kernel(%arg0: i32, %arg1: i32, %arg2: memref<1x456x4xbf16, #tpu.memory_space<vmem>>, %arg3: memref<9x4x4xbf16, #tpu.memory_space<vmem>>, %arg4: memref<1x4xf32, #tpu.memory_space<vmem>>, %arg5: memref<1x8x16x4xbf16, #tpu.memory_space<vmem>>) attributes {dimension_semantics = [#tpu.dimension_semantics<parallel>, #tpu.dimension_semantics<parallel>], iteration_bounds = array<i64: 2, 2>, scalar_prefetch = 0 : i64, scratch_operands = 0 : i64, tpu.core_type = #tpu.core_type<tc>, window_params = [{transform_indices = @transform_0, window_bounds = array<i64: 1, 456, 4>}, {pipeline_mode = #tpu.pipeline_mode<synchronous>, transform_indices = @transform_1, window_bounds = array<i64: 9, 4, 4>}, {pipeline_mode = #tpu.pipeline_mode<synchronous>, transform_indices = @transform_2, window_bounds = array<i64: 1, 4>}, {transform_indices = @transform_3, window_bounds = array<i64: 1, 8, 16, 4>}]} {
    %c192_i32 = arith.constant 192 : i32
    %0 = arith.muli %arg1, %c192_i32 : i32
    %c0_i32 = arith.constant 0 : i32
    %1 = arith.addi %0, %c0_i32 : i32
    %2 = tpu.assume_multiple %1, 8 : i32
    %c0 = arith.constant 0 : index
    %3 = arith.index_cast %2 : i32 to index
    %c0_0 = arith.constant 0 : index
    %4 = vector.load %arg2[%c0, %3, %c0_0] : memref<1x456x4xbf16, #tpu.memory_space<vmem>>, vector<1x200x4xbf16>
    %5 = vector.shape_cast %4 : vector<1x200x4xbf16> to vector<200x4xbf16>
    %6 = vector.extract_strided_slice %5 {offsets = [0, 0], sizes = [192, 4], strides = [1, 1]} : vector<200x4xbf16> to vector<192x4xbf16>
    %c0_1 = arith.constant 0 : index
    %c0_2 = arith.constant 0 : index
    %c0_3 = arith.constant 0 : index
    %7 = vector.load %arg3[%c0_1, %c0_2, %c0_3] : memref<9x4x4xbf16, #tpu.memory_space<vmem>>, vector<1x4x4xbf16>
    %8 = vector.shape_cast %7 : vector<1x4x4xbf16> to vector<4x4xbf16>
    %cst = arith.constant dense<0.000000e+00> : vector<192x4xf32>
    %9 = tpu.matmul %6, %8, %cst {dimension_numbers = #tpu.dot_dimension_numbers<[1], [0], [0], [1], [0, 0, 1, 1], [], []>} : vector<192x4xbf16>, vector<4x4xbf16>, vector<192x4xf32> -> vector<192x4xf32>
    %10 = vector.extract_strided_slice %5 {offsets = [1, 0], sizes = [192, 4], strides = [1, 1]} : vector<200x4xbf16> to vector<192x4xbf16>
    %c1 = arith.constant 1 : index
    %c0_4 = arith.constant 0 : index
    %c0_5 = arith.constant 0 : index
    %11 = vector.load %arg3[%c1, %c0_4, %c0_5] : memref<9x4x4xbf16, #tpu.memory_space<vmem>>, vector<1x4x4xbf16>
    %12 = vector.shape_cast %11 : vector<1x4x4xbf16> to vector<4x4xbf16>
    %cst_6 = arith.constant dense<0.000000e+00> : vector<192x4xf32>
    %13 = tpu.matmul %10, %12, %cst_6 {dimension_numbers = #tpu.dot_dimension_numbers<[1], [0], [0], [1], [0, 0, 1, 1], [], []>} : vector<192x4xbf16>, vector<4x4xbf16>, vector<192x4xf32> -> vector<192x4xf32>
    %14 = arith.addf %9, %13 : vector<192x4xf32>
    %15 = vector.extract_strided_slice %5 {offsets = [2, 0], sizes = [192, 4], strides = [1, 1]} : vector<200x4xbf16> to vector<192x4xbf16>
    %c2 = arith.constant 2 : index
    %c0_7 = arith.constant 0 : index
    %c0_8 = arith.constant 0 : index
    %16 = vector.load %arg3[%c2, %c0_7, %c0_8] : memref<9x4x4xbf16, #tpu.memory_space<vmem>>, vector<1x4x4xbf16>
    %17 = vector.shape_cast %16 : vector<1x4x4xbf16> to vector<4x4xbf16>
    %cst_9 = arith.constant dense<0.000000e+00> : vector<192x4xf32>
    %18 = tpu.matmul %15, %17, %cst_9 {dimension_numbers = #tpu.dot_dimension_numbers<[1], [0], [0], [1], [0, 0, 1, 1], [], []>} : vector<192x4xbf16>, vector<4x4xbf16>, vector<192x4xf32> -> vector<192x4xf32>
    %19 = arith.addf %14, %18 : vector<192x4xf32>
    %c24_i32 = arith.constant 24 : i32
    %20 = arith.addi %0, %c24_i32 : i32
    %21 = tpu.assume_multiple %20, 8 : i32
    %c0_10 = arith.constant 0 : index
    %22 = arith.index_cast %21 : i32 to index
    %c0_11 = arith.constant 0 : index
    %23 = vector.load %arg2[%c0_10, %22, %c0_11] : memref<1x456x4xbf16, #tpu.memory_space<vmem>>, vector<1x200x4xbf16>
    %24 = vector.shape_cast %23 : vector<1x200x4xbf16> to vector<200x4xbf16>
    %25 = vector.extract_strided_slice %24 {offsets = [0, 0], sizes = [192, 4], strides = [1, 1]} : vector<200x4xbf16> to vector<192x4xbf16>
    %c3 = arith.constant 3 : index
    %c0_12 = arith.constant 0 : index
    %c0_13 = arith.constant 0 : index
    %26 = vector.load %arg3[%c3, %c0_12, %c0_13] : memref<9x4x4xbf16, #tpu.memory_space<vmem>>, vector<1x4x4xbf16>
    %27 = vector.shape_cast %26 : vector<1x4x4xbf16> to vector<4x4xbf16>
    %cst_14 = arith.constant dense<0.000000e+00> : vector<192x4xf32>
    %28 = tpu.matmul %25, %27, %cst_14 {dimension_numbers = #tpu.dot_dimension_numbers<[1], [0], [0], [1], [0, 0, 1, 1], [], []>} : vector<192x4xbf16>, vector<4x4xbf16>, vector<192x4xf32> -> vector<192x4xf32>
    %29 = arith.addf %19, %28 : vector<192x4xf32>
    %30 = vector.extract_strided_slice %24 {offsets = [1, 0], sizes = [192, 4], strides = [1, 1]} : vector<200x4xbf16> to vector<192x4xbf16>
    %c4 = arith.constant 4 : index
    %c0_15 = arith.constant 0 : index
    %c0_16 = arith.constant 0 : index
    %31 = vector.load %arg3[%c4, %c0_15, %c0_16] : memref<9x4x4xbf16, #tpu.memory_space<vmem>>, vector<1x4x4xbf16>
    %32 = vector.shape_cast %31 : vector<1x4x4xbf16> to vector<4x4xbf16>
    %cst_17 = arith.constant dense<0.000000e+00> : vector<192x4xf32>
    %33 = tpu.matmul %30, %32, %cst_17 {dimension_numbers = #tpu.dot_dimension_numbers<[1], [0], [0], [1], [0, 0, 1, 1], [], []>} : vector<192x4xbf16>, vector<4x4xbf16>, vector<192x4xf32> -> vector<192x4xf32>
    %34 = arith.addf %29, %33 : vector<192x4xf32>
    %35 = vector.extract_strided_slice %24 {offsets = [2, 0], sizes = [192, 4], strides = [1, 1]} : vector<200x4xbf16> to vector<192x4xbf16>
    %c5 = arith.constant 5 : index
    %c0_18 = arith.constant 0 : index
    %c0_19 = arith.constant 0 : index
    %36 = vector.load %arg3[%c5, %c0_18, %c0_19] : memref<9x4x4xbf16, #tpu.memory_space<vmem>>, vector<1x4x4xbf16>
    %37 = vector.shape_cast %36 : vector<1x4x4xbf16> to vector<4x4xbf16>
    %cst_20 = arith.constant dense<0.000000e+00> : vector<192x4xf32>
    %38 = tpu.matmul %35, %37, %cst_20 {dimension_numbers = #tpu.dot_dimension_numbers<[1], [0], [0], [1], [0, 0, 1, 1], [], []>} : vector<192x4xbf16>, vector<4x4xbf16>, vector<192x4xf32> -> vector<192x4xf32>
    %39 = arith.addf %34, %38 : vector<192x4xf32>
    %c48_i32 = arith.constant 48 : i32
    %40 = arith.addi %0, %c48_i32 : i32
    %41 = tpu.assume_multiple %40, 8 : i32
    %c0_21 = arith.constant 0 : index
    %42 = arith.index_cast %41 : i32 to index
    %c0_22 = arith.constant 0 : index
    %43 = vector.load %arg2[%c0_21, %42, %c0_22] : memref<1x456x4xbf16, #tpu.memory_space<vmem>>, vector<1x200x4xbf16>
    %44 = vector.shape_cast %43 : vector<1x200x4xbf16> to vector<200x4xbf16>
    %45 = vector.extract_strided_slice %44 {offsets = [0, 0], sizes = [192, 4], strides = [1, 1]} : vector<200x4xbf16> to vector<192x4xbf16>
    %c6 = arith.constant 6 : index
    %c0_23 = arith.constant 0 : index
    %c0_24 = arith.constant 0 : index
    %46 = vector.load %arg3[%c6, %c0_23, %c0_24] : memref<9x4x4xbf16, #tpu.memory_space<vmem>>, vector<1x4x4xbf16>
    %47 = vector.shape_cast %46 : vector<1x4x4xbf16> to vector<4x4xbf16>
    %cst_25 = arith.constant dense<0.000000e+00> : vector<192x4xf32>
    %48 = tpu.matmul %45, %47, %cst_25 {dimension_numbers = #tpu.dot_dimension_numbers<[1], [0], [0], [1], [0, 0, 1, 1], [], []>} : vector<192x4xbf16>, vector<4x4xbf16>, vector<192x4xf32> -> vector<192x4xf32>
    %49 = arith.addf %39, %48 : vector<192x4xf32>
    %50 = vector.extract_strided_slice %44 {offsets = [1, 0], sizes = [192, 4], strides = [1, 1]} : vector<200x4xbf16> to vector<192x4xbf16>
    %c7 = arith.constant 7 : index
    %c0_26 = arith.constant 0 : index
    %c0_27 = arith.constant 0 : index
    %51 = vector.load %arg3[%c7, %c0_26, %c0_27] : memref<9x4x4xbf16, #tpu.memory_space<vmem>>, vector<1x4x4xbf16>
    %52 = vector.shape_cast %51 : vector<1x4x4xbf16> to vector<4x4xbf16>
    %cst_28 = arith.constant dense<0.000000e+00> : vector<192x4xf32>
    %53 = tpu.matmul %50, %52, %cst_28 {dimension_numbers = #tpu.dot_dimension_numbers<[1], [0], [0], [1], [0, 0, 1, 1], [], []>} : vector<192x4xbf16>, vector<4x4xbf16>, vector<192x4xf32> -> vector<192x4xf32>
    %54 = arith.addf %49, %53 : vector<192x4xf32>
    %55 = vector.extract_strided_slice %44 {offsets = [2, 0], sizes = [192, 4], strides = [1, 1]} : vector<200x4xbf16> to vector<192x4xbf16>
    %c8 = arith.constant 8 : index
    %c0_29 = arith.constant 0 : index
    %c0_30 = arith.constant 0 : index
    %56 = vector.load %arg3[%c8, %c0_29, %c0_30] : memref<9x4x4xbf16, #tpu.memory_space<vmem>>, vector<1x4x4xbf16>
    %57 = vector.shape_cast %56 : vector<1x4x4xbf16> to vector<4x4xbf16>
    %cst_31 = arith.constant dense<0.000000e+00> : vector<192x4xf32>
    %58 = tpu.matmul %55, %57, %cst_31 {dimension_numbers = #tpu.dot_dimension_numbers<[1], [0], [0], [1], [0, 0, 1, 1], [], []>} : vector<192x4xbf16>, vector<4x4xbf16>, vector<192x4xf32> -> vector<192x4xf32>
    %59 = arith.addf %54, %58 : vector<192x4xf32>
    %c0_32 = arith.constant 0 : index
    %c0_33 = arith.constant 0 : index
    %60 = vector.load %arg4[%c0_32, %c0_33] : memref<1x4xf32, #tpu.memory_space<vmem>>, vector<1x4xf32>
    %61 = vector.broadcast %60 : vector<1x4xf32> to vector<192x4xf32>
    %62 = arith.addf %59, %61 : vector<192x4xf32>
    %cst_34 = arith.constant 0.000000e+00 : f32
    %63 = vector.broadcast %cst_34 : f32 to vector<192x4xf32>
    %64 = arith.maximumf %62, %63 : vector<192x4xf32>
    %65 = vector.extract_strided_slice %64 {offsets = [0, 0], sizes = [16, 4], strides = [1, 1]} : vector<192x4xf32> to vector<16x4xf32>
    %66 = arith.truncf %65 : vector<16x4xf32> to vector<16x4xbf16>
    %c0_35 = arith.constant 0 : index
    %c0_36 = arith.constant 0 : index
    %c0_37 = arith.constant 0 : index
    %c0_38 = arith.constant 0 : index
    %67 = vector.load %arg5[%c0_35, %c0_36, %c0_37, %c0_38] : memref<1x8x16x4xbf16, #tpu.memory_space<vmem>>, vector<1x1x16x4xbf16>
    %68 = vector.shape_cast %67 : vector<1x1x16x4xbf16> to vector<16x4xbf16>
    %69 = vector.shape_cast %66 : vector<16x4xbf16> to vector<1x1x16x4xbf16>
    tpu.vector_store %arg5[%c0_35, %c0_36, %c0_37, %c0_38], %69 {strides = array<i32>} : memref<1x8x16x4xbf16, #tpu.memory_space<vmem>>, vector<1x1x16x4xbf16>,
    %70 = vector.extract_strided_slice %64 {offsets = [24, 0], sizes = [16, 4], strides = [1, 1]} : vector<192x4xf32> to vector<16x4xf32>
    %71 = arith.truncf %70 : vector<16x4xf32> to vector<16x4xbf16>
    %c0_39 = arith.constant 0 : index
    %c1_40 = arith.constant 1 : index
    %c0_41 = arith.constant 0 : index
    %c0_42 = arith.constant 0 : index
    %72 = vector.load %arg5[%c0_39, %c1_40, %c0_41, %c0_42] : memref<1x8x16x4xbf16, #tpu.memory_space<vmem>>, vector<1x1x16x4xbf16>
    %73 = vector.shape_cast %72 : vector<1x1x16x4xbf16> to vector<16x4xbf16>
    %74 = vector.shape_cast %71 : vector<16x4xbf16> to vector<1x1x16x4xbf16>
    tpu.vector_store %arg5[%c0_39, %c1_40, %c0_41, %c0_42], %74 {strides = array<i32>} : memref<1x8x16x4xbf16, #tpu.memory_space<vmem>>, vector<1x1x16x4xbf16>,
    %75 = vector.extract_strided_slice %64 {offsets = [48, 0], sizes = [16, 4], strides = [1, 1]} : vector<192x4xf32> to vector<16x4xf32>
    %76 = arith.truncf %75 : vector<16x4xf32> to vector<16x4xbf16>
    %c0_43 = arith.constant 0 : index
    %c2_44 = arith.constant 2 : index
    %c0_45 = arith.constant 0 : index
    %c0_46 = arith.constant 0 : index
    %77 = vector.load %arg5[%c0_43, %c2_44, %c0_45, %c0_46] : memref<1x8x16x4xbf16, #tpu.memory_space<vmem>>, vector<1x1x16x4xbf16>
    %78 = vector.shape_cast %77 : vector<1x1x16x4xbf16> to vector<16x4xbf16>
    %79 = vector.shape_cast %76 : vector<16x4xbf16> to vector<1x1x16x4xbf16>
    tpu.vector_store %arg5[%c0_43, %c2_44, %c0_45, %c0_46], %79 {strides = array<i32>} : memref<1x8x16x4xbf16, #tpu.memory_space<vmem>>, vector<1x1x16x4xbf16>,
    %80 = vector.extract_strided_slice %64 {offsets = [72, 0], sizes = [16, 4], strides = [1, 1]} : vector<192x4xf32> to vector<16x4xf32>
    %81 = arith.truncf %80 : vector<16x4xf32> to vector<16x4xbf16>
    %c0_47 = arith.constant 0 : index
    %c3_48 = arith.constant 3 : index
    %c0_49 = arith.constant 0 : index
    %c0_50 = arith.constant 0 : index
    %82 = vector.load %arg5[%c0_47, %c3_48, %c0_49, %c0_50] : memref<1x8x16x4xbf16, #tpu.memory_space<vmem>>, vector<1x1x16x4xbf16>
    %83 = vector.shape_cast %82 : vector<1x1x16x4xbf16> to vector<16x4xbf16>
    %84 = vector.shape_cast %81 : vector<16x4xbf16> to vector<1x1x16x4xbf16>
    tpu.vector_store %arg5[%c0_47, %c3_48, %c0_49, %c0_50], %84 {strides = array<i32>} : memref<1x8x16x4xbf16, #tpu.memory_space<vmem>>, vector<1x1x16x4xbf16>,
    %85 = vector.extract_strided_slice %64 {offsets = [96, 0], sizes = [16, 4], strides = [1, 1]} : vector<192x4xf32> to vector<16x4xf32>
    %86 = arith.truncf %85 : vector<16x4xf32> to vector<16x4xbf16>
    %c0_51 = arith.constant 0 : index
    %c4_52 = arith.constant 4 : index
    %c0_53 = arith.constant 0 : index
    %c0_54 = arith.constant 0 : index
    %87 = vector.load %arg5[%c0_51, %c4_52, %c0_53, %c0_54] : memref<1x8x16x4xbf16, #tpu.memory_space<vmem>>, vector<1x1x16x4xbf16>
    %88 = vector.shape_cast %87 : vector<1x1x16x4xbf16> to vector<16x4xbf16>
    %89 = vector.shape_cast %86 : vector<16x4xbf16> to vector<1x1x16x4xbf16>
    tpu.vector_store %arg5[%c0_51, %c4_52, %c0_53, %c0_54], %89 {strides = array<i32>} : memref<1x8x16x4xbf16, #tpu.memory_space<vmem>>, vector<1x1x16x4xbf16>,
    %90 = vector.extract_strided_slice %64 {offsets = [120, 0], sizes = [16, 4], strides = [1, 1]} : vector<192x4xf32> to vector<16x4xf32>
    %91 = arith.truncf %90 : vector<16x4xf32> to vector<16x4xbf16>
    %c0_55 = arith.constant 0 : index
    %c5_56 = arith.constant 5 : index
    %c0_57 = arith.constant 0 : index
    %c0_58 = arith.constant 0 : index
    %92 = vector.load %arg5[%c0_55, %c5_56, %c0_57, %c0_58] : memref<1x8x16x4xbf16, #tpu.memory_space<vmem>>, vector<1x1x16x4xbf16>
    %93 = vector.shape_cast %92 : vector<1x1x16x4xbf16> to vector<16x4xbf16>
    %94 = vector.shape_cast %91 : vector<16x4xbf16> to vector<1x1x16x4xbf16>
    tpu.vector_store %arg5[%c0_55, %c5_56, %c0_57, %c0_58], %94 {strides = array<i32>} : memref<1x8x16x4xbf16, #tpu.memory_space<vmem>>, vector<1x1x16x4xbf16>,
    %95 = vector.extract_strided_slice %64 {offsets = [144, 0], sizes = [16, 4], strides = [1, 1]} : vector<192x4xf32> to vector<16x4xf32>
    %96 = arith.truncf %95 : vector<16x4xf32> to vector<16x4xbf16>
    %c0_59 = arith.constant 0 : index
    %c6_60 = arith.constant 6 : index
    %c0_61 = arith.constant 0 : index
    %c0_62 = arith.constant 0 : index
    %97 = vector.load %arg5[%c0_59, %c6_60, %c0_61, %c0_62] : memref<1x8x16x4xbf16, #tpu.memory_space<vmem>>, vector<1x1x16x4xbf16>
    %98 = vector.shape_cast %97 : vector<1x1x16x4xbf16> to vector<16x4xbf16>
    %99 = vector.shape_cast %96 : vector<16x4xbf16> to vector<1x1x16x4xbf16>
    tpu.vector_store %arg5[%c0_59, %c6_60, %c0_61, %c0_62], %99 {strides = array<i32>} : memref<1x8x16x4xbf16, #tpu.memory_space<vmem>>, vector<1x1x16x4xbf16>,
    %100 = vector.extract_strided_slice %64 {offsets = [168, 0], sizes = [16, 4], strides = [1, 1]} : vector<192x4xf32> to vector<16x4xf32>
    %101 = arith.truncf %100 : vector<16x4xf32> to vector<16x4xbf16>
    %c0_63 = arith.constant 0 : index
    %c7_64 = arith.constant 7 : index
    %c0_65 = arith.constant 0 : index
    %c0_66 = arith.constant 0 : index
    %102 = vector.load %arg5[%c0_63, %c7_64, %c0_65, %c0_66] : memref<1x8x16x4xbf16, #tpu.memory_space<vmem>>, vector<1x1x16x4xbf16>
    %103 = vector.shape_cast %102 : vector<1x1x16x4xbf16> to vector<16x4xbf16>
    %104 = vector.shape_cast %101 : vector<16x4xbf16> to vector<1x1x16x4xbf16>
    tpu.vector_store %arg5[%c0_63, %c7_64, %c0_65, %c0_66], %104 {strides = array<i32>} : memref<1x8x16x4xbf16, #tpu.memory_space<vmem>>, vector<1x1x16x4xbf16>,
    return
  }
  func.func @transform_0(%arg0: i32, %arg1: i32) -> (i32, i32, i32) {
    %c0_i32 = arith.constant 0 : i32
    %c0_i32_0 = arith.constant 0 : i32
    %c0_i32_1 = arith.constant 0 : i32
    return %arg0, %c0_i32, %c0_i32_0 : i32, i32, i32
  }
  func.func @transform_1(%arg0: i32, %arg1: i32) -> (i32, i32, i32) {
    %c0_i32 = arith.constant 0 : i32
    %c0_i32_0 = arith.constant 0 : i32
    %c0_i32_1 = arith.constant 0 : i32
    %c0_i32_2 = arith.constant 0 : i32
    return %c0_i32, %c0_i32_0, %c0_i32_1 : i32, i32, i32
  }
  func.func @transform_2(%arg0: i32, %arg1: i32) -> (i32, i32) {
    %c0_i32 = arith.constant 0 : i32
    %c0_i32_0 = arith.constant 0 : i32
    %c0_i32_1 = arith.constant 0 : i32
    return %c0_i32, %c0_i32_0 : i32, i32
  }
  func.func @transform_3(%arg0: i32, %arg1: i32) -> (i32, i32, i32, i32) {
    %c0_i32 = arith.constant 0 : i32
    %c0_i32_0 = arith.constant 0 : i32
    %c0_i32_1 = arith.constant 0 : i32
    return %arg0, %arg1, %c0_i32, %c0_i32_0 : i32, i32, i32, i32
  }
}

module attributes {stable_mosaic.version = 11 : i64} {
  func.func @_dual_mm_bias_kernel(%arg0: i32, %arg1: memref<256x4xbf16, #tpu.memory_space<vmem>>, %arg2: memref<4x16xbf16, #tpu.memory_space<vmem>>, %arg3: memref<256x4xbf16, #tpu.memory_space<vmem>>, %arg4: memref<4x16xbf16, #tpu.memory_space<vmem>>, %arg5: memref<1x16xf32, #tpu.memory_space<vmem>>, %arg6: memref<256x16xbf16, #tpu.memory_space<vmem>>) attributes {dimension_semantics = [#tpu.dimension_semantics<parallel>], iteration_bounds = array<i64: 2>, scalar_prefetch = 0 : i64, scratch_operands = 0 : i64, tpu.core_type = #tpu.core_type<tc>, window_params = [{transform_indices = @transform_0, window_bounds = array<i64: 256, 4>}, {pipeline_mode = #tpu.pipeline_mode<synchronous>, transform_indices = @transform_1, window_bounds = array<i64: 4, 16>}, {transform_indices = @transform_2, window_bounds = array<i64: 256, 4>}, {pipeline_mode = #tpu.pipeline_mode<synchronous>, transform_indices = @transform_3, window_bounds = array<i64: 4, 16>}, {pipeline_mode = #tpu.pipeline_mode<synchronous>, transform_indices = @transform_4, window_bounds = array<i64: 1, 16>}, {transform_indices = @transform_5, window_bounds = array<i64: 256, 16>}]} {
    %c0 = arith.constant 0 : index
    %c0_0 = arith.constant 0 : index
    %0 = vector.load %arg1[%c0, %c0_0] : memref<256x4xbf16, #tpu.memory_space<vmem>>, vector<256x4xbf16>
    %c0_1 = arith.constant 0 : index
    %c0_2 = arith.constant 0 : index
    %1 = vector.load %arg2[%c0_1, %c0_2] : memref<4x16xbf16, #tpu.memory_space<vmem>>, vector<4x16xbf16>
    %cst = arith.constant dense<0.000000e+00> : vector<256x16xf32>
    %2 = tpu.matmul %0, %1, %cst {dimension_numbers = #tpu.dot_dimension_numbers<[1], [0], [0], [1], [0, 0, 1, 1], [], []>} : vector<256x4xbf16>, vector<4x16xbf16>, vector<256x16xf32> -> vector<256x16xf32>
    %c0_3 = arith.constant 0 : index
    %c0_4 = arith.constant 0 : index
    %3 = vector.load %arg3[%c0_3, %c0_4] : memref<256x4xbf16, #tpu.memory_space<vmem>>, vector<256x4xbf16>
    %c0_5 = arith.constant 0 : index
    %c0_6 = arith.constant 0 : index
    %4 = vector.load %arg4[%c0_5, %c0_6] : memref<4x16xbf16, #tpu.memory_space<vmem>>, vector<4x16xbf16>
    %cst_7 = arith.constant dense<0.000000e+00> : vector<256x16xf32>
    %5 = tpu.matmul %3, %4, %cst_7 {dimension_numbers = #tpu.dot_dimension_numbers<[1], [0], [0], [1], [0, 0, 1, 1], [], []>} : vector<256x4xbf16>, vector<4x16xbf16>, vector<256x16xf32> -> vector<256x16xf32>
    %6 = arith.addf %2, %5 : vector<256x16xf32>
    %c0_8 = arith.constant 0 : index
    %c0_9 = arith.constant 0 : index
    %7 = vector.load %arg5[%c0_8, %c0_9] : memref<1x16xf32, #tpu.memory_space<vmem>>, vector<1x16xf32>
    %8 = vector.broadcast %7 : vector<1x16xf32> to vector<256x16xf32>
    %9 = arith.addf %6, %8 : vector<256x16xf32>
    %cst_10 = arith.constant 0.000000e+00 : f32
    %10 = vector.broadcast %cst_10 : f32 to vector<256x16xf32>
    %11 = arith.maximumf %9, %10 : vector<256x16xf32>
    %12 = arith.truncf %11 : vector<256x16xf32> to vector<256x16xbf16>
    %c0_11 = arith.constant 0 : index
    %c0_12 = arith.constant 0 : index
    %13 = vector.load %arg6[%c0_11, %c0_12] : memref<256x16xbf16, #tpu.memory_space<vmem>>, vector<256x16xbf16>
    tpu.vector_store %arg6[%c0_11, %c0_12], %12 {strides = array<i32>} : memref<256x16xbf16, #tpu.memory_space<vmem>>, vector<256x16xbf16>,
    return
  }
  func.func @transform_0(%arg0: i32) -> (i32, i32) {
    %c0_i32 = arith.constant 0 : i32
    %c0_i32_0 = arith.constant 0 : i32
    return %arg0, %c0_i32 : i32, i32
  }
  func.func @transform_1(%arg0: i32) -> (i32, i32) {
    %c0_i32 = arith.constant 0 : i32
    %c0_i32_0 = arith.constant 0 : i32
    %c0_i32_1 = arith.constant 0 : i32
    return %c0_i32, %c0_i32_0 : i32, i32
  }
  func.func @transform_2(%arg0: i32) -> (i32, i32) {
    %c0_i32 = arith.constant 0 : i32
    %c0_i32_0 = arith.constant 0 : i32
    return %arg0, %c0_i32 : i32, i32
  }
  func.func @transform_3(%arg0: i32) -> (i32, i32) {
    %c0_i32 = arith.constant 0 : i32
    %c0_i32_0 = arith.constant 0 : i32
    %c0_i32_1 = arith.constant 0 : i32
    return %c0_i32, %c0_i32_0 : i32, i32
  }
  func.func @transform_4(%arg0: i32) -> (i32, i32) {
    %c0_i32 = arith.constant 0 : i32
    %c0_i32_0 = arith.constant 0 : i32
    %c0_i32_1 = arith.constant 0 : i32
    return %c0_i32, %c0_i32_0 : i32, i32
  }
  func.func @transform_5(%arg0: i32) -> (i32, i32) {
    %c0_i32 = arith.constant 0 : i32
    %c0_i32_0 = arith.constant 0 : i32
    return %arg0, %c0_i32 : i32, i32
  }
}

</mosaic_0001>

<llo_original>
// kernel: bottleneck_forward.3
$region0: #{bottleneck_forward.3}
  #allocation0 [shape = 'u32[]', space=smem, size = 0x4, offset = 0x4, fixed_abs, tag = 'smem constant byte address 0x4 - core index']
  #allocation1 [shape = 'u32[144,128]{1,0:T(1,128)}', space=vmem, size = 0x12000, scoped, tag = 'internal scratch']
  %s0 = inlined_call_operand.vmem [shape: bf16[512,4], index: 0, kind: input, shape index: {}]
  %s1 = inlined_call_operand.vmem [shape: bf16[4,4], index: 1, kind: input, shape index: {}]
  %s2 = inlined_call_operand.vmem [shape: f32[1,4], index: 2, kind: input, shape index: {}]
  %s3 = inlined_call_operand.vmem [shape: bf16[512,4], index: 3, kind: output, shape index: {}]
  %s4 = sld [smem:[#allocation0]]
  $region45: #{bottleneck_forward.3} parent=0
    _
  %s6 = ssub.s32 1, %s4
  %s7 = scalar_select 0, %s6, %s4
  loop: start=0, step=1, limit=4
  $region2: #{bottleneck_forward.3} parent=0 // loop_pre_header
    _
  $region3: #{bottleneck_forward.3} parent=0 // loop_header
    %s9 = sphi 0, %s13
    %p10 = scmp.ge.s32.totalorder %s9, 4
    %s19 = sphi 0, %s21
    %s22 = sphi 0, %s19
    %s23 = sphi 0, %s22
    %s39 = sphi 0, %s23
    %s43 = sphi 0, %s43
    %s45 = sphi 0, %s43
    %s46 = sphi 0, %s45
    %s60 = sphi 0, %s46
    %s64 = sphi 0, %s64
    %s66 = sphi 0, %s64
    %s67 = sphi 0, %s66
    %s81 = sphi 0, %s67
    %s87 = sphi 0, %s89
    %s90 = sphi 0, %s87
    %s91 = sphi 0, %s90
    %s107 = sphi 0, %s91
  $region4: #{bottleneck_forward.3} parent=0 // loop_header_branch
    %12 = sbr.rel (%p10) target = $region8
  $region5: #{bottleneck_forward.3} parent=0 // loop_body
    %s14 = ssub.s32 %s9, 1
    %s15 = ssub.s32 %s9, 2
    %s16 = sadd.s32 %s9, 1
    %s17 = ssub.s32 %s9, %s16
    %p18 = scmp.eq.s32.totalorder %s17, 0
    %s20 = sadd.s32 %s19, 1
    %s21 = scalar_select %p18, %s19, %s20
    %p24 = pneg %p18
    %p25 = scmp.eq.s32.totalorder %s9, 1
    %p26 = por %p24, %p25
    %p27 = scmp.ne.s32.totalorder %s19, %s22
    %p28 = scmp.eq.s32.totalorder %s9, 0
    %p29 = por %p27, %p28
    %p30 = scmp.ne.s32.totalorder %s19, %s22
    %p31 = scmp.eq.s32.totalorder %s14, 1
    %p32 = por %p30, %p31
    %p33 = scmp.ne.s32.totalorder %s22, %s23
    %p34 = scmp.eq.s32.totalorder %s14, 0
    %p35 = por %p33, %p34
    %p36 = scmp.ne.s32.totalorder %s22, %s23
    %p37 = scmp.eq.s32.totalorder %s15, 1
    %p38 = por %p36, %p37
    %p40 = scmp.ne.s32.totalorder %s23, %s39
    %p41 = scmp.eq.s32.totalorder %s15, 0
    %p42 = por %p40, %p41
    %s44 = sadd.s32 %s43, 1
    %p47 = scmp.eq.s32.totalorder %s9, 1
    %p48 = scmp.ne.s32.totalorder %s43, %s45
    %p49 = scmp.eq.s32.totalorder %s9, 0
    %p50 = por %p48, %p49
    %p51 = scmp.ne.s32.totalorder %s43, %s45
    %p52 = scmp.eq.s32.totalorder %s14, 1
    %p53 = por %p51, %p52
    %p54 = scmp.ne.s32.totalorder %s45, %s46
    %p55 = scmp.eq.s32.totalorder %s14, 0
    %p56 = por %p54, %p55
    %p57 = scmp.ne.s32.totalorder %s45, %s46
    %p58 = scmp.eq.s32.totalorder %s15, 1
    %p59 = por %p57, %p58
    %p61 = scmp.ne.s32.totalorder %s46, %s60
    %p62 = scmp.eq.s32.totalorder %s15, 0
    %p63 = por %p61, %p62
    %s65 = sadd.s32 %s64, 1
    %p68 = scmp.eq.s32.totalorder %s9, 1
    %p69 = scmp.ne.s32.totalorder %s64, %s66
    %p70 = scmp.eq.s32.totalorder %s9, 0
    %p71 = por %p69, %p70
    %p72 = scmp.ne.s32.totalorder %s64, %s66
    %p73 = scmp.eq.s32.totalorder %s14, 1
    %p74 = por %p72, %p73
    %p75 = scmp.ne.s32.totalorder %s66, %s67
    %p76 = scmp.eq.s32.totalorder %s14, 0
    %p77 = por %p75, %p76
    %p78 = scmp.ne.s32.totalorder %s66, %s67
    %p79 = scmp.eq.s32.totalorder %s15, 1
    %p80 = por %p78, %p79
    %p82 = scmp.ne.s32.totalorder %s67, %s81
    %p83 = scmp.eq.s32.totalorder %s15, 0
    %p84 = por %p82, %p83
    %s85 = ssub.s32 %s9, %s16
    %p86 = scmp.eq.s32.totalorder %s85, 0
    %s88 = sadd.s32 %s87, 1
    %s89 = scalar_select %p86, %s87, %s88
    %p92 = pneg %p86
    %p93 = scmp.eq.s32.totalorder %s9, 1
    %p94 = por %p92, %p93
    %p95 = scmp.ne.s32.totalorder %s87, %s90
    %p96 = scmp.eq.s32.totalorder %s9, 0
    %p97 = por %p95, %p96
    %p98 = scmp.ne.s32.totalorder %s87, %s90
    %p99 = scmp.eq.s32.totalorder %s14, 1
    %p100 = por %p98, %p99
    %p101 = scmp.ne.s32.totalorder %s90, %s91
    %p102 = scmp.eq.s32.totalorder %s14, 0
    %p103 = por %p101, %p102
    %p104 = scmp.ne.s32.totalorder %s90, %s91
    %p105 = scmp.eq.s32.totalorder %s15, 1
    %p106 = por %p104, %p105
    %p108 = scmp.ne.s32.totalorder %s91, %s107
    %p109 = scmp.eq.s32.totalorder %s15, 0
    %p110 = por %p108, %p109
    %p111 = scmp.le.s32.totalorder 1, %s9
    %p112 = scmp.lt.s32.totalorder %s9, 3
    %p113 = pnand %p111, %p112
    %p114 = pneg %p113
    // Predicated region
    $region9: #{bottleneck_forward.3} parent=5 // pred_check
      _
    $region10: #{bottleneck_forward.3} parent=5 // pred_check_branch
      %116 = sbr.rel (%p113) target = $region12
    $region11: #{bottleneck_forward.3} parent=5 // pred_region
      %s117 = ssub.s32 %s9, 1
      // Predicated region
      $region13: #{bottleneck_forward.3} parent=11 // pred_check
        %p118 = pneg %p56
      $region14: #{bottleneck_forward.3} parent=11 // pred_check_branch
        %120 = sbr.rel (%p118) target = $region16
      $region15: #{bottleneck_forward.3} parent=11 // pred_region
        _
      $region16: #{bottleneck_forward.3} parent=11 // pred_fallthru
        _
      // Predicated region
      $region17: #{bottleneck_forward.3} parent=11 // pred_check
        %p121 = pneg %p77
      $region18: #{bottleneck_forward.3} parent=11 // pred_check_branch
        %123 = sbr.rel (%p121) target = $region20
      $region19: #{bottleneck_forward.3} parent=11 // pred_region
        _
      $region20: #{bottleneck_forward.3} parent=11 // pred_fallthru
        _
    $region12: #{bottleneck_forward.3} parent=5 // pred_fallthru
      _
    %p124 = scmp.lt.s32.totalorder %s9, 2
    // Predicated region
    $region21: #{bottleneck_forward.3} parent=5 // pred_check
      %p125 = pneg %p124
    $region22: #{bottleneck_forward.3} parent=5 // pred_check_branch
      %127 = sbr.rel (%p125) target = $region24
    $region23: #{bottleneck_forward.3} parent=5 // pred_region
      // Predicated region
      $region25: #{bottleneck_forward.3} parent=23 // pred_check
        %p128 = pneg %p29
      $region26: #{bottleneck_forward.3} parent=23 // pred_check_branch
        %130 = sbr.rel (%p128) target = $region28
      $region27: #{bottleneck_forward.3} parent=23 // pred_region
        %s131 = smul.u32 32, %s9
        %p132 = scmp.lt.s32.totalorder %s131, 63
        %s133 = scalar_select %p132, %s131, 63
        %s134 = smul.addr %s133, 4
        %s135 = scalar_lea.vmem %s0, %s134
        %s136 = smul.u32 32, %s9
      $region28: #{bottleneck_forward.3} parent=23 // pred_fallthru
        _
    $region24: #{bottleneck_forward.3} parent=5 // pred_fallthru
      _
    %p137 = scmp.le.s32.totalorder 1, %s9
    %p138 = scmp.lt.s32.totalorder %s9, 3
    %p139 = pnand %p137, %p138
    %p140 = pneg %p139
    // Predicated region
    $region29: #{bottleneck_forward.3} parent=5 // pred_check
      _
    $region30: #{bottleneck_forward.3} parent=5 // pred_check_branch
      %142 = sbr.rel (%p139) target = $region32
    $region31: #{bottleneck_forward.3} parent=5 // pred_region
      %s143 = ssub.s32 %s9, 1
      %s144 = smul.u32 32, %s14
      %p145 = scmp.lt.s32.totalorder %s144, 63
      %s146 = scalar_select %p145, %s144, 63
      %s147 = smul.addr %s146, 4
      %s148 = scalar_lea.vmem %s0, %s147
      %p149 = pneg %p35
      %p150 = pneg %p32
      %p151 = pneg %p56
      %p152 = pneg %p53
      %p153 = pneg %p77
      %p154 = pneg %p74
      %p155 = pneg %p103
      %p156 = pneg %p100
      %s157 = smul.u32 32, %s14
      %p158 = scmp.lt.s32.totalorder %s157, 63
      %s159 = scalar_select %p158, %s157, 63
      %s160 = smul.addr %s159, 4
      %s161 = scalar_lea.vmem %s3, %s160
      %s162 = smul.u32 32, %s14
      %p163 = scmp.lt.s32.totalorder %s162, 63
      %s164 = scalar_select %p163, %s162, 63
      %s165 = smul.addr %s164, 4
      %s166 = scalar_lea.vmem %s0, %s165
      %s167 = smul.u32 32, %s14
      %s168 = smul.u32 32, %s14
      %p169 = scmp.lt.s32.totalorder %s168, 63
      %s170 = scalar_select %p169, %s168, 63
      %s171 = smul.addr %s170, 4
      %s172 = scalar_lea.vmem %s3, %s171
      %s173 = smul.u32 32, %s14
      %v175 = vld [vmem:[%s166] sm:$0xf]
      %v176 = vld [vmem:[%s166 + $0x4] sm:$0xf]
      %v177 = vld [vmem:[%s166 + $0x8] sm:$0xf]
      %v178 = vld [vmem:[%s166 + $0xc] sm:$0xf]
      %v179 = vld [vmem:[%s166 + $0x10] sm:$0xf]
      %v180 = vld [vmem:[%s166 + $0x14] sm:$0xf]
      %v181 = vld [vmem:[%s166 + $0x18] sm:$0xf]
      %v182 = vld [vmem:[%s166 + $0x1c] sm:$0xf]
      %v183 = vld [vmem:[%s166 + $0x20] sm:$0xf]
      %v184 = vld [vmem:[%s166 + $0x24] sm:$0xf]
      %v185 = vld [vmem:[%s166 + $0x28] sm:$0xf]
      %v186 = vld [vmem:[%s166 + $0x2c] sm:$0xf]
      %v187 = vld [vmem:[%s166 + $0x30] sm:$0xf]
      %v188 = vld [vmem:[%s166 + $0x34] sm:$0xf]
      %v189 = vld [vmem:[%s166 + $0x38] sm:$0xf]
      %v190 = vld [vmem:[%s166 + $0x3c] sm:$0xf]
      %v191 = vld [vmem:[%s166 + $0x40] sm:$0xf]
      %v192 = vld [vmem:[%s166 + $0x44] sm:$0xf]
      %v193 = vld [vmem:[%s166 + $0x48] sm:$0xf]
      %v194 = vld [vmem:[%s166 + $0x4c] sm:$0xf]
      %v195 = vld [vmem:[%s166 + $0x50] sm:$0xf]
      %v196 = vld [vmem:[%s166 + $0x54] sm:$0xf]
      %v197 = vld [vmem:[%s166 + $0x58] sm:$0xf]
      %v198 = vld [vmem:[%s166 + $0x5c] sm:$0xf]
      %v199 = vld [vmem:[%s166 + $0x60] sm:$0xf]
      %v200 = vld [vmem:[%s166 + $0x64] sm:$0xf]
      %v201 = vld [vmem:[%s166 + $0x68] sm:$0xf]
      %v202 = vld [vmem:[%s166 + $0x6c] sm:$0xf]
      %v203 = vld [vmem:[%s166 + $0x70] sm:$0xf]
      %v204 = vld [vmem:[%s166 + $0x74] sm:$0xf]
      %v205 = vld [vmem:[%s166 + $0x78] sm:$0xf]
      %v206 = vld [vmem:[%s166 + $0x7c] sm:$0xf]
      %v207 = vld [vmem:[%s1] sm:$0x3]
      %v208 = vld [vmem:[%s2] sm:$0x1]
      %v210 = vlaneseq
      %v211 = vshrl.u32 %v210, 7
      %v212 = vsub.s32 0, %v211
      %v213 = vrot.slane %v208, %v212
      %v247 = vunpack.c.l.b16 %v175
      %v248 = vunpack.c.l.b16 %v176
      %v249 = vunpack.c.l.b16 %v177
      %v250 = vunpack.c.l.b16 %v178
      %v251 = vunpack.c.l.b16 %v179
      %v252 = vunpack.c.l.b16 %v180
      %v253 = vunpack.c.l.b16 %v181
      %v254 = vunpack.c.l.b16 %v182
      %v255 = vunpack.c.l.b16 %v183
      %v256 = vunpack.c.l.b16 %v184
      %v257 = vunpack.c.l.b16 %v185
      %v258 = vunpack.c.l.b16 %v186
      %v259 = vunpack.c.l.b16 %v187
      %v260 = vunpack.c.l.b16 %v188
      %v261 = vunpack.c.l.b16 %v189
      %v262 = vunpack.c.l.b16 %v190
      %v263 = vunpack.c.l.b16 %v191
      %v264 = vunpack.c.l.b16 %v192
      %v265 = vunpack.c.l.b16 %v193
      %v266 = vunpack.c.l.b16 %v194
      %v267 = vunpack.c.l.b16 %v195
      %v268 = vunpack.c.l.b16 %v196
      %v269 = vunpack.c.l.b16 %v197
      %v270 = vunpack.c.l.b16 %v198
      %v271 = vunpack.c.l.b16 %v199
      %v272 = vunpack.c.l.b16 %v200
      %v273 = vunpack.c.l.b16 %v201
      %v274 = vunpack.c.l.b16 %v202
      %v275 = vunpack.c.l.b16 %v203
      %v276 = vunpack.c.l.b16 %v204
      %v277 = vunpack.c.l.b16 %v205
      %v278 = vunpack.c.l.b16 %v206
      %v279 = vpack.c.b16 %v248, %v247
      %v280 = vpack.c.b16 %v250, %v249
      %v281 = vpack.c.b16 %v252, %v251
      %v282 = vpack.c.b16 %v254, %v253
      %v283 = vpack.c.b16 %v256, %v255
      %v284 = vpack.c.b16 %v258, %v257
      %v285 = vpack.c.b16 %v260, %v259
      %v286 = vpack.c.b16 %v262, %v261
      %v287 = vpack.c.b16 %v264, %v263
      %v288 = vpack.c.b16 %v266, %v265
      %v289 = vpack.c.b16 %v268, %v267
      %v290 = vpack.c.b16 %v270, %v269
      %v291 = vpack.c.b16 %v272, %v271
      %v292 = vpack.c.b16 %v274, %v273
      %v293 = vpack.c.b16 %v276, %v275
      %v294 = vpack.c.b16 %v278, %v277
      %vm295 = vcmask 31744
      %v297 = vsel %vm295, %v279, 0
      %v300 = vsel %vm295, %v280, 0
      %v303 = vsel %vm295, %v281, 0
      %v306 = vsel %vm295, %v282, 0
      %v309 = vsel %vm295, %v283, 0
      %v312 = vsel %vm295, %v284, 0
      %v315 = vsel %vm295, %v285, 0
      %v318 = vsel %vm295, %v286, 0
      %v321 = vsel %vm295, %v287, 0
      %v324 = vsel %vm295, %v288, 0
      %v327 = vsel %vm295, %v289, 0
      %v330 = vsel %vm295, %v290, 0
      %v333 = vsel %vm295, %v291, 0
      %v336 = vsel %vm295, %v292, 0
      %v339 = vsel %vm295, %v293, 0
      %v342 = vsel %vm295, %v294, 0
      %vm344 = vcmask 1041408
      %v346 = vsel %vm344, %v207, 0
      %348 = vmatprep.subr.bf16.mxu0 0
      %349 = vmatpush1.bf16.msra.mxu0 %v346
      %350 = vmatprep.subr.bf16.mxu0 0
      %351 = vmatpush1.bf16.msra.mxu0 0
      %352 = vmatprep.subr.bf16.mxu0 0
      %353 = vmatpush1.bf16.msra.mxu0 0
      %354 = vmatprep.subr.bf16.mxu0 0
      %355 = vmatpush1.bf16.msra.mxu0 0
      %356 = vmatprep.subr.bf16.mxu0 0
      %357 = vmatpush1.bf16.msra.mxu0 0
      %358 = vmatprep.subr.bf16.mxu0 0
      %359 = vmatpush1.bf16.msra.mxu0 0
      %360 = vmatprep.subr.bf16.mxu0 0
      %361 = vmatpush1.bf16.msra.mxu0 0
      %362 = vmatprep.subr.bf16.mxu0 0
      %363 = vmatpush1.bf16.msra.mxu0 0
      %364 = vmatprep.subr.bf16.mxu0 0
      %365 = vmatpush1.bf16.msra.mxu0 0
      %366 = vmatprep.subr.bf16.mxu0 0
      %367 = vmatpush1.bf16.msra.mxu0 0
      %368 = vmatprep.subr.bf16.mxu0 0
      %369 = vmatpush1.bf16.msra.mxu0 0
      %370 = vmatprep.subr.bf16.mxu0 0
      %371 = vmatpush1.bf16.msra.mxu0 0
      %372 = vmatprep.subr.bf16.mxu0 0
      %373 = vmatpush1.bf16.msra.mxu0 0
      %374 = vmatprep.subr.bf16.mxu0 0
      %375 = vmatpush1.bf16.msra.mxu0 0
      %376 = vmatprep.subr.bf16.mxu0 0
      %377 = vmatpush1.bf16.msra.mxu0 0
      %378 = vmatprep.subr.bf16.mxu0 0
      %379 = vmatpush1.bf16.msra.mxu0 0
      %380 = vmatprep.mubr.bf16.mxu0 0
      %381 = vmatmul.mubr.bf16.gmra.mrb[0].mxu0 %v297
      %v382 = vpop.f32.mrb[0].mxu0
      %v383 = vadd.f32 %v213, %v382
      %v384 = vpop.f32.mrb[0].mxu0
      %v385 = vpop.f32.mrb[0].mxu0
      %v386 = vadd.f32 %v213, %v385
      %v387 = vpop.f32.mrb[0].mxu0
      %388 = vmatprep.mubr.bf16.mxu0 0
      %389 = vmatmul.mubr.bf16.gmra.mrb[0].mxu0 %v300
      %v390 = vpop.f32.mrb[0].mxu0
      %v391 = vadd.f32 %v213, %v390
      %v392 = vpop.f32.mrb[0].mxu0
      %v393 = vpop.f32.mrb[0].mxu0
      %v394 = vadd.f32 %v213, %v393
      %v395 = vpop.f32.mrb[0].mxu0
      %396 = vmatprep.mubr.bf16.mxu0 0
      %397 = vmatmul.mubr.bf16.gmra.mrb[0].mxu0 %v303
      %v398 = vpop.f32.mrb[0].mxu0
      %v399 = vadd.f32 %v213, %v398
      %v400 = vpop.f32.mrb[0].mxu0
      %v401 = vpop.f32.mrb[0].mxu0
      %v402 = vadd.f32 %v213, %v401
      %v403 = vpop.f32.mrb[0].mxu0
      %404 = vmatprep.mubr.bf16.mxu0 0
      %405 = vmatmul.mubr.bf16.gmra.mrb[0].mxu0 %v306
      %v406 = vpop.f32.mrb[0].mxu0
      %v407 = vadd.f32 %v213, %v406
      %v408 = vpop.f32.mrb[0].mxu0
      %v409 = vpop.f32.mrb[0].mxu0
      %v410 = vadd.f32 %v213, %v409
      %v411 = vpop.f32.mrb[0].mxu0
      %412 = vmatprep.mubr.bf16.mxu0 0
      %413 = vmatmul.mubr.bf16.gmra.mrb[0].mxu0 %v309
      %v414 = vpop.f32.mrb[0].mxu0
      %v415 = vadd.f32 %v213, %v414
      %v416 = vpop.f32.mrb[0].mxu0
      %v417 = vpop.f32.mrb[0].mxu0
      %v418 = vadd.f32 %v213, %v417
      %v419 = vpop.f32.mrb[0].mxu0
      %420 = vmatprep.mubr.bf16.mxu0 0
      %421 = vmatmul.mubr.bf16.gmra.mrb[0].mxu0 %v312
      %v422 = vpop.f32.mrb[0].mxu0
      %v423 = vadd.f32 %v213, %v422
      %v424 = vpop.f32.mrb[0].mxu0
      %v425 = vpop.f32.mrb[0].mxu0
      %v426 = vadd.f32 %v213, %v425
      %v427 = vpop.f32.mrb[0].mxu0
      %428 = vmatprep.mubr.bf16.mxu0 0
      %429 = vmatmul.mubr.bf16.gmra.mrb[0].mxu0 %v315
      %v430 = vpop.f32.mrb[0].mxu0
      %v431 = vadd.f32 %v213, %v430
      %v432 = vpop.f32.mrb[0].mxu0
      %v433 = vpop.f32.mrb[0].mxu0
      %v434 = vadd.f32 %v213, %v433
      %v435 = vpop.f32.mrb[0].mxu0
      %436 = vmatprep.mubr.bf16.mxu0 0
      %437 = vmatmul.mubr.bf16.gmra.mrb[0].mxu0 %v318
      %v438 = vpop.f32.mrb[0].mxu0
      %v439 = vadd.f32 %v213, %v438
      %v440 = vpop.f32.mrb[0].mxu0
      %v441 = vpop.f32.mrb[0].mxu0
      %v442 = vadd.f32 %v213, %v441
      %v443 = vpop.f32.mrb[0].mxu0
      %444 = vmatprep.mubr.bf16.mxu0 0
      %445 = vmatmul.mubr.bf16.gmra.mrb[0].mxu0 %v321
      %v446 = vpop.f32.mrb[0].mxu0
      %v447 = vadd.f32 %v213, %v446
      %v448 = vpop.f32.mrb[0].mxu0
      %v449 = vpop.f32.mrb[0].mxu0
      %v450 = vadd.f32 %v213, %v449
      %v451 = vpop.f32.mrb[0].mxu0
      %452 = vmatprep.mubr.bf16.mxu0 0
      %453 = vmatmul.mubr.bf16.gmra.mrb[0].mxu0 %v324
      %v454 = vpop.f32.mrb[0].mxu0
      %v455 = vadd.f32 %v213, %v454
      %v456 = vpop.f32.mrb[0].mxu0
      %v457 = vpop.f32.mrb[0].mxu0
      %v458 = vadd.f32 %v213, %v457
      %v459 = vpop.f32.mrb[0].mxu0
      %460 = vmatprep.mubr.bf16.mxu0 0
      %461 = vmatmul.mubr.bf16.gmra.mrb[0].mxu0 %v327
      %v462 = vpop.f32.mrb[0].mxu0
      %v463 = vadd.f32 %v213, %v462
      %v464 = vpop.f32.mrb[0].mxu0
      %v465 = vpop.f32.mrb[0].mxu0
      %v466 = vadd.f32 %v213, %v465
      %v467 = vpop.f32.mrb[0].mxu0
      %468 = vmatprep.mubr.bf16.mxu0 0
      %469 = vmatmul.mubr.bf16.gmra.mrb[0].mxu0 %v330
      %v470 = vpop.f32.mrb[0].mxu0
      %v471 = vadd.f32 %v213, %v470
      %v472 = vpop.f32.mrb[0].mxu0
      %v473 = vpop.f32.mrb[0].mxu0
      %v474 = vadd.f32 %v213, %v473
      %v475 = vpop.f32.mrb[0].mxu0
      %476 = vmatprep.mubr.bf16.mxu0 0
      %477 = vmatmul.mubr.bf16.gmra.mrb[0].mxu0 %v333
      %v478 = vpop.f32.mrb[0].mxu0
      %v479 = vadd.f32 %v213, %v478
      %v480 = vpop.f32.mrb[0].mxu0
      %v481 = vpop.f32.mrb[0].mxu0
      %v482 = vadd.f32 %v213, %v481
      %v483 = vpop.f32.mrb[0].mxu0
      %484 = vmatprep.mubr.bf16.mxu0 0
      %485 = vmatmul.mubr.bf16.gmra.mrb[0].mxu0 %v336
      %v486 = vpop.f32.mrb[0].mxu0
      %v487 = vadd.f32 %v213, %v486
      %v488 = vpop.f32.mrb[0].mxu0
      %v489 = vpop.f32.mrb[0].mxu0
      %v490 = vadd.f32 %v213, %v489
      %v491 = vpop.f32.mrb[0].mxu0
      %492 = vmatprep.mubr.bf16.mxu0 0
      %493 = vmatmul.mubr.bf16.gmra.mrb[0].mxu0 %v339
      %v494 = vpop.f32.mrb[0].mxu0
      %v495 = vadd.f32 %v213, %v494
      %v496 = vpop.f32.mrb[0].mxu0
      %v497 = vpop.f32.mrb[0].mxu0
      %v498 = vadd.f32 %v213, %v497
      %v499 = vpop.f32.mrb[0].mxu0
      %500 = vmatprep.mubr.bf16.mxu0 0
      %501 = vmatmul.mubr.bf16.gmra.mrb[0].mxu0 %v342
      %v502 = vpop.f32.mrb[0].mxu0
      %v503 = vadd.f32 %v213, %v502
      %v504 = vpop.f32.mrb[0].mxu0
      %v505 = vpop.f32.mrb[0].mxu0
      %v506 = vadd.f32 %v213, %v505
      %v507 = vpop.f32.mrb[0].mxu0
      %508 = vdwg.mxu0
      %v509 = vmax.f32 %v383, 0.0
      %v510 = vmax.f32 %v386, 0.0
      %v511 = vmax.f32 %v391, 0.0
      %v512 = vmax.f32 %v394, 0.0
      %v513 = vmax.f32 %v399, 0.0
      %v514 = vmax.f32 %v402, 0.0
      %v515 = vmax.f32 %v407, 0.0
      %v516 = vmax.f32 %v410, 0.0
      %v517 = vmax.f32 %v415, 0.0
      %v518 = vmax.f32 %v418, 0.0
      %v519 = vmax.f32 %v423, 0.0
      %v520 = vmax.f32 %v426, 0.0
      %v521 = vmax.f32 %v431, 0.0
      %v522 = vmax.f32 %v434, 0.0
      %v523 = vmax.f32 %v439, 0.0
      %v524 = vmax.f32 %v442, 0.0
      %v525 = vmax.f32 %v447, 0.0
      %v526 = vmax.f32 %v450, 0.0
      %v527 = vmax.f32 %v455, 0.0
      %v528 = vmax.f32 %v458, 0.0
      %v529 = vmax.f32 %v463, 0.0
      %v530 = vmax.f32 %v466, 0.0
      %v531 = vmax.f32 %v471, 0.0
      %v532 = vmax.f32 %v474, 0.0
      %v533 = vmax.f32 %v479, 0.0
      %v534 = vmax.f32 %v482, 0.0
      %v535 = vmax.f32 %v487, 0.0
      %v536 = vmax.f32 %v490, 0.0
      %v537 = vmax.f32 %v495, 0.0
      %v538 = vmax.f32 %v498, 0.0
      %v539 = vmax.f32 %v503, 0.0
      %v540 = vmax.f32 %v506, 0.0
      %v541 = vpack.c.bf16 %v510, %v509
      %v542 = vpack.c.bf16 %v512, %v511
      %v543 = vpack.c.bf16 %v514, %v513
      %v544 = vpack.c.bf16 %v516, %v515
      %v545 = vpack.c.bf16 %v518, %v517
      %v546 = vpack.c.bf16 %v520, %v519
      %v547 = vpack.c.bf16 %v522, %v521
      %v548 = vpack.c.bf16 %v524, %v523
      %v549 = vpack.c.bf16 %v526, %v525
      %v550 = vpack.c.bf16 %v528, %v527
      %v551 = vpack.c.bf16 %v530, %v529
      %v552 = vpack.c.bf16 %v532, %v531
      %v553 = vpack.c.bf16 %v534, %v533
      %v554 = vpack.c.bf16 %v536, %v535
      %v555 = vpack.c.bf16 %v538, %v537
      %v556 = vpack.c.bf16 %v540, %v539
      %v573 = vunpack.c.l.b16 %v541
      %v574 = vunpack.c.h.b16 %v541
      %v575 = vunpack.c.l.b16 %v542
      %v576 = vunpack.c.h.b16 %v542
      %v577 = vunpack.c.l.b16 %v543
      %v578 = vunpack.c.h.b16 %v543
      %v579 = vunpack.c.l.b16 %v544
      %v580 = vunpack.c.h.b16 %v544
      %v581 = vunpack.c.l.b16 %v545
      %v582 = vunpack.c.h.b16 %v545
      %v583 = vunpack.c.l.b16 %v546
      %v584 = vunpack.c.h.b16 %v546
      %v585 = vunpack.c.l.b16 %v547
      %v586 = vunpack.c.h.b16 %v547
      %v587 = vunpack.c.l.b16 %v548
      %v588 = vunpack.c.h.b16 %v548
      %v589 = vunpack.c.l.b16 %v549
      %v590 = vunpack.c.h.b16 %v549
      %v591 = vunpack.c.l.b16 %v550
      %v592 = vunpack.c.h.b16 %v550
      %v593 = vunpack.c.l.b16 %v551
      %v594 = vunpack.c.h.b16 %v551
      %v595 = vunpack.c.l.b16 %v552
      %v596 = vunpack.c.h.b16 %v552
      %v597 = vunpack.c.l.b16 %v553
      %v598 = vunpack.c.h.b16 %v553
      %v599 = vunpack.c.l.b16 %v554
      %v600 = vunpack.c.h.b16 %v554
      %v601 = vunpack.c.l.b16 %v555
      %v602 = vunpack.c.h.b16 %v555
      %v603 = vunpack.c.l.b16 %v556
      %v604 = vunpack.c.h.b16 %v556
      %v605 = vpack.c.b16 %v573, %v573
      %v606 = vpack.c.b16 %v574, %v574
      %v607 = vpack.c.b16 %v575, %v575
      %v608 = vpack.c.b16 %v576, %v576
      %v609 = vpack.c.b16 %v577, %v577
      %v610 = vpack.c.b16 %v578, %v578
      %v611 = vpack.c.b16 %v579, %v579
      %v612 = vpack.c.b16 %v580, %v580
      %v613 = vpack.c.b16 %v581, %v581
      %v614 = vpack.c.b16 %v582, %v582
      %v615 = vpack.c.b16 %v583, %v583
      %v616 = vpack.c.b16 %v584, %v584
      %v617 = vpack.c.b16 %v585, %v585
      %v618 = vpack.c.b16 %v586, %v586
      %v619 = vpack.c.b16 %v587, %v587
      %v620 = vpack.c.b16 %v588, %v588
      %v621 = vpack.c.b16 %v589, %v589
      %v622 = vpack.c.b16 %v590, %v590
      %v623 = vpack.c.b16 %v591, %v591
      %v624 = vpack.c.b16 %v592, %v592
      %v625 = vpack.c.b16 %v593, %v593
      %v626 = vpack.c.b16 %v594, %v594
      %v627 = vpack.c.b16 %v595, %v595
      %v628 = vpack.c.b16 %v596, %v596
      %v629 = vpack.c.b16 %v597, %v597
      %v630 = vpack.c.b16 %v598, %v598
      %v631 = vpack.c.b16 %v599, %v599
      %v632 = vpack.c.b16 %v600, %v600
      %v633 = vpack.c.b16 %v601, %v601
      %v634 = vpack.c.b16 %v602, %v602
      %v635 = vpack.c.b16 %v603, %v603
      %v636 = vpack.c.b16 %v604, %v604
      %vm669 = vcmask 27648
      %670 = vst.msk [vmem:[%s172] sm:$0xf] %vm669, %v605
      %671 = vst.msk [vmem:[%s172 + $0x4] sm:$0xf] %vm669, %v606
      %672 = vst.msk [vmem:[%s172 + $0x8] sm:$0xf] %vm669, %v607
      %673 = vst.msk [vmem:[%s172 + $0xc] sm:$0xf] %vm669, %v608
      %674 = vst.msk [vmem:[%s172 + $0x10] sm:$0xf] %vm669, %v609
      %675 = vst.msk [vmem:[%s172 + $0x14] sm:$0xf] %vm669, %v610
      %676 = vst.msk [vmem:[%s172 + $0x18] sm:$0xf] %vm669, %v611
      %677 = vst.msk [vmem:[%s172 + $0x1c] sm:$0xf] %vm669, %v612
      %678 = vst.msk [vmem:[%s172 + $0x20] sm:$0xf] %vm669, %v613
      %679 = vst.msk [vmem:[%s172 + $0x24] sm:$0xf] %vm669, %v614
      %680 = vst.msk [vmem:[%s172 + $0x28] sm:$0xf] %vm669, %v615
      %681 = vst.msk [vmem:[%s172 + $0x2c] sm:$0xf] %vm669, %v616
      %682 = vst.msk [vmem:[%s172 + $0x30] sm:$0xf] %vm669, %v617
      %683 = vst.msk [vmem:[%s172 + $0x34] sm:$0xf] %vm669, %v618
      %684 = vst.msk [vmem:[%s172 + $0x38] sm:$0xf] %vm669, %v619
      %685 = vst.msk [vmem:[%s172 + $0x3c] sm:$0xf] %vm669, %v620
      %686 = vst.msk [vmem:[%s172 + $0x40] sm:$0xf] %vm669, %v621
      %687 = vst.msk [vmem:[%s172 + $0x44] sm:$0xf] %vm669, %v622
      %688 = vst.msk [vmem:[%s172 + $0x48] sm:$0xf] %vm669, %v623
      %689 = vst.msk [vmem:[%s172 + $0x4c] sm:$0xf] %vm669, %v624
      %690 = vst.msk [vmem:[%s172 + $0x50] sm:$0xf] %vm669, %v625
      %691 = vst.msk [vmem:[%s172 + $0x54] sm:$0xf] %vm669, %v626
      %692 = vst.msk [vmem:[%s172 + $0x58] sm:$0xf] %vm669, %v627
      %693 = vst.msk [vmem:[%s172 + $0x5c] sm:$0xf] %vm669, %v628
      %694 = vst.msk [vmem:[%s172 + $0x60] sm:$0xf] %vm669, %v629
      %695 = vst.msk [vmem:[%s172 + $0x64] sm:$0xf] %vm669, %v630
      %696 = vst.msk [vmem:[%s172 + $0x68] sm:$0xf] %vm669, %v631
      %697 = vst.msk [vmem:[%s172 + $0x6c] sm:$0xf] %vm669, %v632
      %698 = vst.msk [vmem:[%s172 + $0x70] sm:$0xf] %vm669, %v633
      %699 = vst.msk [vmem:[%s172 + $0x74] sm:$0xf] %vm669, %v634
      %700 = vst.msk [vmem:[%s172 + $0x78] sm:$0xf] %vm669, %v635
      %701 = vst.msk [vmem:[%s172 + $0x7c] sm:$0xf] %vm669, %v636
      %s702 = smul.u32 32, %s14
      %p703 = scmp.lt.s32.totalorder %s702, 63
      %s704 = scalar_select %p703, %s702, 63
      %s705 = smul.addr %s704, 4
      %s706 = scalar_lea.vmem %s3, %s705
      // Predicated region
      $region33: #{bottleneck_forward.3} parent=31 // pred_check
        %p707 = pneg %p100
      $region34: #{bottleneck_forward.3} parent=31 // pred_check_branch
        %709 = sbr.rel (%p707) target = $region36
      $region35: #{bottleneck_forward.3} parent=31 // pred_region
        %s710 = smul.u32 32, %s14
      $region36: #{bottleneck_forward.3} parent=31 // pred_fallthru
        _
    $region32: #{bottleneck_forward.3} parent=5 // pred_fallthru
      _
    %p711 = scmp.le.s32.totalorder 2, %s9
    // Predicated region
    $region37: #{bottleneck_forward.3} parent=5 // pred_check
      %p712 = pneg %p711
    $region38: #{bottleneck_forward.3} parent=5 // pred_check_branch
      %714 = sbr.rel (%p712) target = $region40
    $region39: #{bottleneck_forward.3} parent=5 // pred_region
      %s715 = ssub.s32 %s9, 2
      // Predicated region
      $region41: #{bottleneck_forward.3} parent=39 // pred_check
        %p716 = pneg %p106
      $region42: #{bottleneck_forward.3} parent=39 // pred_check_branch
        %718 = sbr.rel (%p716) target = $region44
      $region43: #{bottleneck_forward.3} parent=39 // pred_region
        %s719 = smul.u32 32, %s15
        %p720 = scmp.lt.s32.totalorder %s719, 63
        %s721 = scalar_select %p720, %s719, 63
        %s722 = smul.addr %s721, 4
        %s723 = scalar_lea.vmem %s3, %s722
      $region44: #{bottleneck_forward.3} parent=39 // pred_fallthru
        _
    $region40: #{bottleneck_forward.3} parent=5 // pred_fallthru
      _
  $region6: #{bottleneck_forward.3} parent=0 // loop_footer
    %s13 = sadd.s32 1, %s9
  $region7: #{bottleneck_forward.3} parent=0 // loop_footer_branch
    %8 = sbr.rel target = $region3
  $region8: #{bottleneck_forward.3} parent=0 // loop_exit
    _

// kernel: bottleneck_forward.5
$region0: #{bottleneck_forward.5}
  #allocation0 [shape = 'u32[]', space=smem, size = 0x4, offset = 0x4, fixed_abs, tag = 'smem constant byte address 0x4 - core index']
  #allocation1 [shape = 'u32[144,128]{1,0:T(1,128)}', space=vmem, size = 0x12000, scoped, tag = 'internal scratch']
  %s0 = inlined_call_operand.vmem [shape: bf16[512,4], index: 0, kind: input, shape index: {}]
  %s1 = inlined_call_operand.vmem [shape: bf16[4,16], index: 1, kind: input, shape index: {}]
  %s2 = inlined_call_operand.vmem [shape: bf16[512,4], index: 2, kind: input, shape index: {}]
  %s3 = inlined_call_operand.vmem [shape: bf16[4,16], index: 3, kind: input, shape index: {}]
  %s4 = inlined_call_operand.vmem [shape: f32[1,16], index: 4, kind: input, shape index: {}]
  %s5 = inlined_call_operand.vmem [shape: bf16[512,16], index: 5, kind: output, shape index: {}]
  %s6 = sld [smem:[#allocation0]]
  $region53: #{bottleneck_forward.5} parent=0
    _
  %s8 = ssub.s32 1, %s6
  %s9 = scalar_select 0, %s8, %s6
  loop: start=0, step=1, limit=4
  $region2: #{bottleneck_forward.5} parent=0 // loop_pre_header
    _
  $region3: #{bottleneck_forward.5} parent=0 // loop_header
    %s11 = sphi 0, %s15
    %p12 = scmp.ge.s32.totalorder %s11, 4
    %s21 = sphi 0, %s23
    %s24 = sphi 0, %s21
    %s25 = sphi 0, %s24
    %s41 = sphi 0, %s25
    %s45 = sphi 0, %s45
    %s47 = sphi 0, %s45
    %s48 = sphi 0, %s47
    %s62 = sphi 0, %s48
    %s68 = sphi 0, %s70
    %s71 = sphi 0, %s68
    %s72 = sphi 0, %s71
    %s88 = sphi 0, %s72
    %s92 = sphi 0, %s92
    %s94 = sphi 0, %s92
    %s95 = sphi 0, %s94
    %s109 = sphi 0, %s95
    %s113 = sphi 0, %s113
    %s115 = sphi 0, %s113
    %s116 = sphi 0, %s115
    %s130 = sphi 0, %s116
    %s136 = sphi 0, %s138
    %s139 = sphi 0, %s136
    %s140 = sphi 0, %s139
    %s156 = sphi 0, %s140
  $region4: #{bottleneck_forward.5} parent=0 // loop_header_branch
    %14 = sbr.rel (%p12) target = $region8
  $region5: #{bottleneck_forward.5} parent=0 // loop_body
    %s16 = ssub.s32 %s11, 1
    %s17 = ssub.s32 %s11, 2
    %s18 = sadd.s32 %s11, 1
    %s19 = ssub.s32 %s11, %s18
    %p20 = scmp.eq.s32.totalorder %s19, 0
    %s22 = sadd.s32 %s21, 1
    %s23 = scalar_select %p20, %s21, %s22
    %p26 = pneg %p20
    %p27 = scmp.eq.s32.totalorder %s11, 1
    %p28 = por %p26, %p27
    %p29 = scmp.ne.s32.totalorder %s21, %s24
    %p30 = scmp.eq.s32.totalorder %s11, 0
    %p31 = por %p29, %p30
    %p32 = scmp.ne.s32.totalorder %s21, %s24
    %p33 = scmp.eq.s32.totalorder %s16, 1
    %p34 = por %p32, %p33
    %p35 = scmp.ne.s32.totalorder %s24, %s25
    %p36 = scmp.eq.s32.totalorder %s16, 0
    %p37 = por %p35, %p36
    %p38 = scmp.ne.s32.totalorder %s24, %s25
    %p39 = scmp.eq.s32.totalorder %s17, 1
    %p40 = por %p38, %p39
    %p42 = scmp.ne.s32.totalorder %s25, %s41
    %p43 = scmp.eq.s32.totalorder %s17, 0
    %p44 = por %p42, %p43
    %s46 = sadd.s32 %s45, 1
    %p49 = scmp.eq.s32.totalorder %s11, 1
    %p50 = scmp.ne.s32.totalorder %s45, %s47
    %p51 = scmp.eq.s32.totalorder %s11, 0
    %p52 = por %p50, %p51
    %p53 = scmp.ne.s32.totalorder %s45, %s47
    %p54 = scmp.eq.s32.totalorder %s16, 1
    %p55 = por %p53, %p54
    %p56 = scmp.ne.s32.totalorder %s47, %s48
    %p57 = scmp.eq.s32.totalorder %s16, 0
    %p58 = por %p56, %p57
    %p59 = scmp.ne.s32.totalorder %s47, %s48
    %p60 = scmp.eq.s32.totalorder %s17, 1
    %p61 = por %p59, %p60
    %p63 = scmp.ne.s32.totalorder %s48, %s62
    %p64 = scmp.eq.s32.totalorder %s17, 0
    %p65 = por %p63, %p64
    %s66 = ssub.s32 %s11, %s18
    %p67 = scmp.eq.s32.totalorder %s66, 0
    %s69 = sadd.s32 %s68, 1
    %s70 = scalar_select %p67, %s68, %s69
    %p73 = pneg %p67
    %p74 = scmp.eq.s32.totalorder %s11, 1
    %p75 = por %p73, %p74
    %p76 = scmp.ne.s32.totalorder %s68, %s71
    %p77 = scmp.eq.s32.totalorder %s11, 0
    %p78 = por %p76, %p77
    %p79 = scmp.ne.s32.totalorder %s68, %s71
    %p80 = scmp.eq.s32.totalorder %s16, 1
    %p81 = por %p79, %p80
    %p82 = scmp.ne.s32.totalorder %s71, %s72
    %p83 = scmp.eq.s32.totalorder %s16, 0
    %p84 = por %p82, %p83
    %p85 = scmp.ne.s32.totalorder %s71, %s72
    %p86 = scmp.eq.s32.totalorder %s17, 1
    %p87 = por %p85, %p86
    %p89 = scmp.ne.s32.totalorder %s72, %s88
    %p90 = scmp.eq.s32.totalorder %s17, 0
    %p91 = por %p89, %p90
    %s93 = sadd.s32 %s92, 1
    %p96 = scmp.eq.s32.totalorder %s11, 1
    %p97 = scmp.ne.s32.totalorder %s92, %s94
    %p98 = scmp.eq.s32.totalorder %s11, 0
    %p99 = por %p97, %p98
    %p100 = scmp.ne.s32.totalorder %s92, %s94
    %p101 = scmp.eq.s32.totalorder %s16, 1
    %p102 = por %p100, %p101
    %p103 = scmp.ne.s32.totalorder %s94, %s95
    %p104 = scmp.eq.s32.totalorder %s16, 0
    %p105 = por %p103, %p104
    %p106 = scmp.ne.s32.totalorder %s94, %s95
    %p107 = scmp.eq.s32.totalorder %s17, 1
    %p108 = por %p106, %p107
    %p110 = scmp.ne.s32.totalorder %s95, %s109
    %p111 = scmp.eq.s32.totalorder %s17, 0
    %p112 = por %p110, %p111
    %s114 = sadd.s32 %s113, 1
    %p117 = scmp.eq.s32.totalorder %s11, 1
    %p118 = scmp.ne.s32.totalorder %s113, %s115
    %p119 = scmp.eq.s32.totalorder %s11, 0
    %p120 = por %p118, %p119
    %p121 = scmp.ne.s32.totalorder %s113, %s115
    %p122 = scmp.eq.s32.totalorder %s16, 1
    %p123 = por %p121, %p122
    %p124 = scmp.ne.s32.totalorder %s115, %s116
    %p125 = scmp.eq.s32.totalorder %s16, 0
    %p126 = por %p124, %p125
    %p127 = scmp.ne.s32.totalorder %s115, %s116
    %p128 = scmp.eq.s32.totalorder %s17, 1
    %p129 = por %p127, %p128
    %p131 = scmp.ne.s32.totalorder %s116, %s130
    %p132 = scmp.eq.s32.totalorder %s17, 0
    %p133 = por %p131, %p132
    %s134 = ssub.s32 %s11, %s18
    %p135 = scmp.eq.s32.totalorder %s134, 0
    %s137 = sadd.s32 %s136, 1
    %s138 = scalar_select %p135, %s136, %s137
    %p141 = pneg %p135
    %p142 = scmp.eq.s32.totalorder %s11, 1
    %p143 = por %p141, %p142
    %p144 = scmp.ne.s32.totalorder %s136, %s139
    %p145 = scmp.eq.s32.totalorder %s11, 0
    %p146 = por %p144, %p145
    %p147 = scmp.ne.s32.totalorder %s136, %s139
    %p148 = scmp.eq.s32.totalorder %s16, 1
    %p149 = por %p147, %p148
    %p150 = scmp.ne.s32.totalorder %s139, %s140
    %p151 = scmp.eq.s32.totalorder %s16, 0
    %p152 = por %p150, %p151
    %p153 = scmp.ne.s32.totalorder %s139, %s140
    %p154 = scmp.eq.s32.totalorder %s17, 1
    %p155 = por %p153, %p154
    %p157 = scmp.ne.s32.totalorder %s140, %s156
    %p158 = scmp.eq.s32.totalorder %s17, 0
    %p159 = por %p157, %p158
    %p160 = scmp.le.s32.totalorder 1, %s11
    %p161 = scmp.lt.s32.totalorder %s11, 3
    %p162 = pnand %p160, %p161
    %p163 = pneg %p162
    // Predicated region
    $region9: #{bottleneck_forward.5} parent=5 // pred_check
      _
    $region10: #{bottleneck_forward.5} parent=5 // pred_check_branch
      %165 = sbr.rel (%p162) target = $region12
    $region11: #{bottleneck_forward.5} parent=5 // pred_region
      %s166 = ssub.s32 %s11, 1
      // Predicated region
      $region13: #{bottleneck_forward.5} parent=11 // pred_check
        %p167 = pneg %p58
      $region14: #{bottleneck_forward.5} parent=11 // pred_check_branch
        %169 = sbr.rel (%p167) target = $region16
      $region15: #{bottleneck_forward.5} parent=11 // pred_region
        _
      $region16: #{bottleneck_forward.5} parent=11 // pred_fallthru
        _
      // Predicated region
      $region17: #{bottleneck_forward.5} parent=11 // pred_check
        %p170 = pneg %p105
      $region18: #{bottleneck_forward.5} parent=11 // pred_check_branch
        %172 = sbr.rel (%p170) target = $region20
      $region19: #{bottleneck_forward.5} parent=11 // pred_region
        _
      $region20: #{bottleneck_forward.5} parent=11 // pred_fallthru
        _
      // Predicated region
      $region21: #{bottleneck_forward.5} parent=11 // pred_check
        %p173 = pneg %p126
      $region22: #{bottleneck_forward.5} parent=11 // pred_check_branch
        %175 = sbr.rel (%p173) target = $region24
      $region23: #{bottleneck_forward.5} parent=11 // pred_region
        _
      $region24: #{bottleneck_forward.5} parent=11 // pred_fallthru
        _
    $region12: #{bottleneck_forward.5} parent=5 // pred_fallthru
      _
    %p176 = scmp.lt.s32.totalorder %s11, 2
    // Predicated region
    $region25: #{bottleneck_forward.5} parent=5 // pred_check
      %p177 = pneg %p176
    $region26: #{bottleneck_forward.5} parent=5 // pred_check_branch
      %179 = sbr.rel (%p177) target = $region28
    $region27: #{bottleneck_forward.5} parent=5 // pred_region
      // Predicated region
      $region29: #{bottleneck_forward.5} parent=27 // pred_check
        %p180 = pneg %p31
      $region30: #{bottleneck_forward.5} parent=27 // pred_check_branch
        %182 = sbr.rel (%p180) target = $region32
      $region31: #{bottleneck_forward.5} parent=27 // pred_region
        %s183 = smul.u32 32, %s11
        %p184 = scmp.lt.s32.totalorder %s183, 63
        %s185 = scalar_select %p184, %s183, 63
        %s186 = smul.addr %s185, 4
        %s187 = scalar_lea.vmem %s0, %s186
        %s188 = smul.u32 32, %s11
      $region32: #{bottleneck_forward.5} parent=27 // pred_fallthru
        _
      // Predicated region
      $region33: #{bottleneck_forward.5} parent=27 // pred_check
        %p189 = pneg %p78
      $region34: #{bottleneck_forward.5} parent=27 // pred_check_branch
        %191 = sbr.rel (%p189) target = $region36
      $region35: #{bottleneck_forward.5} parent=27 // pred_region
        %s192 = smul.u32 32, %s11
        %p193 = scmp.lt.s32.totalorder %s192, 63
        %s194 = scalar_select %p193, %s192, 63
        %s195 = smul.addr %s194, 4
        %s196 = scalar_lea.vmem %s2, %s195
        %s197 = smul.u32 32, %s11
      $region36: #{bottleneck_forward.5} parent=27 // pred_fallthru
        _
    $region28: #{bottleneck_forward.5} parent=5 // pred_fallthru
      _
    %p198 = scmp.le.s32.totalorder 1, %s11
    %p199 = scmp.lt.s32.totalorder %s11, 3
    %p200 = pnand %p198, %p199
    %p201 = pneg %p200
    // Predicated region
    $region37: #{bottleneck_forward.5} parent=5 // pred_check
      _
    $region38: #{bottleneck_forward.5} parent=5 // pred_check_branch
      %203 = sbr.rel (%p200) target = $region40
    $region39: #{bottleneck_forward.5} parent=5 // pred_region
      %s204 = ssub.s32 %s11, 1
      %s205 = smul.u32 32, %s16
      %p206 = scmp.lt.s32.totalorder %s205, 63
      %s207 = scalar_select %p206, %s205, 63
      %s208 = smul.addr %s207, 4
      %s209 = scalar_lea.vmem %s0, %s208
      %p210 = pneg %p37
      %p211 = pneg %p34
      %p212 = pneg %p58
      %p213 = pneg %p55
      %s214 = smul.u32 32, %s16
      %p215 = scmp.lt.s32.totalorder %s214, 63
      %s216 = scalar_select %p215, %s214, 63
      %s217 = smul.addr %s216, 4
      %s218 = scalar_lea.vmem %s2, %s217
      %p219 = pneg %p84
      %p220 = pneg %p81
      %p221 = pneg %p105
      %p222 = pneg %p102
      %p223 = pneg %p126
      %p224 = pneg %p123
      %p225 = pneg %p152
      %p226 = pneg %p149
      %s227 = smul.u32 32, %s16
      %p228 = scmp.lt.s32.totalorder %s227, 63
      %s229 = scalar_select %p228, %s227, 63
      %s230 = smul.addr %s229, 4
      %s231 = scalar_lea.vmem %s5, %s230
      %s232 = smul.u32 32, %s16
      %p233 = scmp.lt.s32.totalorder %s232, 63
      %s234 = scalar_select %p233, %s232, 63
      %s235 = smul.addr %s234, 4
      %s236 = scalar_lea.vmem %s0, %s235
      %s237 = smul.u32 32, %s16
      %s238 = smul.u32 32, %s16
      %p239 = scmp.lt.s32.totalorder %s238, 63
      %s240 = scalar_select %p239, %s238, 63
      %s241 = smul.addr %s240, 4
      %s242 = scalar_lea.vmem %s2, %s241
      %s243 = smul.u32 32, %s16
      %s244 = smul.u32 32, %s16
      %p245 = scmp.lt.s32.totalorder %s244, 63
      %s246 = scalar_select %p245, %s244, 63
      %s247 = smul.addr %s246, 4
      %s248 = scalar_lea.vmem %s5, %s247
      %s249 = smul.u32 32, %s16
      %v251 = vld [vmem:[%s236] sm:$0xf]
      %v252 = vld [vmem:[%s236 + $0x4] sm:$0xf]
      %v253 = vld [vmem:[%s236 + $0x8] sm:$0xf]
      %v254 = vld [vmem:[%s236 + $0xc] sm:$0xf]
      %v255 = vld [vmem:[%s236 + $0x10] sm:$0xf]
      %v256 = vld [vmem:[%s236 + $0x14] sm:$0xf]
      %v257 = vld [vmem:[%s236 + $0x18] sm:$0xf]
      %v258 = vld [vmem:[%s236 + $0x1c] sm:$0xf]
      %v259 = vld [vmem:[%s236 + $0x20] sm:$0xf]
      %v260 = vld [vmem:[%s236 + $0x24] sm:$0xf]
      %v261 = vld [vmem:[%s236 + $0x28] sm:$0xf]
      %v262 = vld [vmem:[%s236 + $0x2c] sm:$0xf]
      %v263 = vld [vmem:[%s236 + $0x30] sm:$0xf]
      %v264 = vld [vmem:[%s236 + $0x34] sm:$0xf]
      %v265 = vld [vmem:[%s236 + $0x38] sm:$0xf]
      %v266 = vld [vmem:[%s236 + $0x3c] sm:$0xf]
      %v267 = vld [vmem:[%s236 + $0x40] sm:$0xf]
      %v268 = vld [vmem:[%s236 + $0x44] sm:$0xf]
      %v269 = vld [vmem:[%s236 + $0x48] sm:$0xf]
      %v270 = vld [vmem:[%s236 + $0x4c] sm:$0xf]
      %v271 = vld [vmem:[%s236 + $0x50] sm:$0xf]
      %v272 = vld [vmem:[%s236 + $0x54] sm:$0xf]
      %v273 = vld [vmem:[%s236 + $0x58] sm:$0xf]
      %v274 = vld [vmem:[%s236 + $0x5c] sm:$0xf]
      %v275 = vld [vmem:[%s236 + $0x60] sm:$0xf]
      %v276 = vld [vmem:[%s236 + $0x64] sm:$0xf]
      %v277 = vld [vmem:[%s236 + $0x68] sm:$0xf]
      %v278 = vld [vmem:[%s236 + $0x6c] sm:$0xf]
      %v279 = vld [vmem:[%s236 + $0x70] sm:$0xf]
      %v280 = vld [vmem:[%s236 + $0x74] sm:$0xf]
      %v281 = vld [vmem:[%s236 + $0x78] sm:$0xf]
      %v282 = vld [vmem:[%s236 + $0x7c] sm:$0xf]
      %v283 = vld [vmem:[%s1] sm:$0x3]
      %v284 = vld [vmem:[%s242] sm:$0xf]
      %v285 = vld [vmem:[%s242 + $0x4] sm:$0xf]
      %v286 = vld [vmem:[%s242 + $0x8] sm:$0xf]
      %v287 = vld [vmem:[%s242 + $0xc] sm:$0xf]
      %v288 = vld [vmem:[%s242 + $0x10] sm:$0xf]
      %v289 = vld [vmem:[%s242 + $0x14] sm:$0xf]
      %v290 = vld [vmem:[%s242 + $0x18] sm:$0xf]
      %v291 = vld [vmem:[%s242 + $0x1c] sm:$0xf]
      %v292 = vld [vmem:[%s242 + $0x20] sm:$0xf]
      %v293 = vld [vmem:[%s242 + $0x24] sm:$0xf]
      %v294 = vld [vmem:[%s242 + $0x28] sm:$0xf]
      %v295 = vld [vmem:[%s242 + $0x2c] sm:$0xf]
      %v296 = vld [vmem:[%s242 + $0x30] sm:$0xf]
      %v297 = vld [vmem:[%s242 + $0x34] sm:$0xf]
      %v298 = vld [vmem:[%s242 + $0x38] sm:$0xf]
      %v299 = vld [vmem:[%s242 + $0x3c] sm:$0xf]
      %v300 = vld [vmem:[%s242 + $0x40] sm:$0xf]
      %v301 = vld [vmem:[%s242 + $0x44] sm:$0xf]
      %v302 = vld [vmem:[%s242 + $0x48] sm:$0xf]
      %v303 = vld [vmem:[%s242 + $0x4c] sm:$0xf]
      %v304 = vld [vmem:[%s242 + $0x50] sm:$0xf]
      %v305 = vld [vmem:[%s242 + $0x54] sm:$0xf]
      %v306 = vld [vmem:[%s242 + $0x58] sm:$0xf]
      %v307 = vld [vmem:[%s242 + $0x5c] sm:$0xf]
      %v308 = vld [vmem:[%s242 + $0x60] sm:$0xf]
      %v309 = vld [vmem:[%s242 + $0x64] sm:$0xf]
      %v310 = vld [vmem:[%s242 + $0x68] sm:$0xf]
      %v311 = vld [vmem:[%s242 + $0x6c] sm:$0xf]
      %v312 = vld [vmem:[%s242 + $0x70] sm:$0xf]
      %v313 = vld [vmem:[%s242 + $0x74] sm:$0xf]
      %v314 = vld [vmem:[%s242 + $0x78] sm:$0xf]
      %v315 = vld [vmem:[%s242 + $0x7c] sm:$0xf]
      %v316 = vld [vmem:[%s3] sm:$0x3]
      %v349 = vunpack.c.l.b16 %v284
      %v350 = vunpack.c.l.b16 %v285
      %v351 = vunpack.c.l.b16 %v286
      %v352 = vunpack.c.l.b16 %v287
      %v353 = vunpack.c.l.b16 %v288
      %v354 = vunpack.c.l.b16 %v289
      %v355 = vunpack.c.l.b16 %v290
      %v356 = vunpack.c.l.b16 %v291
      %v357 = vunpack.c.l.b16 %v292
      %v358 = vunpack.c.l.b16 %v293
      %v359 = vunpack.c.l.b16 %v294
      %v360 = vunpack.c.l.b16 %v295
      %v361 = vunpack.c.l.b16 %v296
      %v362 = vunpack.c.l.b16 %v297
      %v363 = vunpack.c.l.b16 %v298
      %v364 = vunpack.c.l.b16 %v299
      %v365 = vunpack.c.l.b16 %v300
      %v366 = vunpack.c.l.b16 %v301
      %v367 = vunpack.c.l.b16 %v302
      %v368 = vunpack.c.l.b16 %v303
      %v369 = vunpack.c.l.b16 %v304
      %v370 = vunpack.c.l.b16 %v305
      %v371 = vunpack.c.l.b16 %v306
      %v372 = vunpack.c.l.b16 %v307
      %v373 = vunpack.c.l.b16 %v308
      %v374 = vunpack.c.l.b16 %v309
      %v375 = vunpack.c.l.b16 %v310
      %v376 = vunpack.c.l.b16 %v311
      %v377 = vunpack.c.l.b16 %v312
      %v378 = vunpack.c.l.b16 %v313
      %v379 = vunpack.c.l.b16 %v314
      %v380 = vunpack.c.l.b16 %v315
      %v381 = vpack.c.b16 %v350, %v349
      %v382 = vpack.c.b16 %v352, %v351
      %v383 = vpack.c.b16 %v354, %v353
      %v384 = vpack.c.b16 %v356, %v355
      %v385 = vpack.c.b16 %v358, %v357
      %v386 = vpack.c.b16 %v360, %v359
      %v387 = vpack.c.b16 %v362, %v361
      %v388 = vpack.c.b16 %v364, %v363
      %v389 = vpack.c.b16 %v366, %v365
      %v390 = vpack.c.b16 %v368, %v367
      %v391 = vpack.c.b16 %v370, %v369
      %v392 = vpack.c.b16 %v372, %v371
      %v393 = vpack.c.b16 %v374, %v373
      %v394 = vpack.c.b16 %v376, %v375
      %v395 = vpack.c.b16 %v378, %v377
      %v396 = vpack.c.b16 %v380, %v379
      %vm397 = vcmask 31744
      %v399 = vsel %vm397, %v381, 0
      %v402 = vsel %vm397, %v382, 0
      %v405 = vsel %vm397, %v383, 0
      %v408 = vsel %vm397, %v384, 0
      %v411 = vsel %vm397, %v385, 0
      %v414 = vsel %vm397, %v386, 0
      %v417 = vsel %vm397, %v387, 0
      %v420 = vsel %vm397, %v388, 0
      %v423 = vsel %vm397, %v389, 0
      %v426 = vsel %vm397, %v390, 0
      %v429 = vsel %vm397, %v391, 0
      %v432 = vsel %vm397, %v392, 0
      %v435 = vsel %vm397, %v393, 0
      %v438 = vsel %vm397, %v394, 0
      %v441 = vsel %vm397, %v395, 0
      %v444 = vsel %vm397, %v396, 0
      %vm446 = vcmask 1041408
      %v448 = vsel %vm446, %v316, 0
      %450 = vmatprep.subr.bf16.mxu0 0
      %451 = vmatpush1.bf16.msra.mxu0 %v448
      %452 = vmatprep.subr.bf16.mxu0 0
      %453 = vmatpush1.bf16.msra.mxu0 0
      %454 = vmatprep.subr.bf16.mxu0 0
      %455 = vmatpush1.bf16.msra.mxu0 0
      %456 = vmatprep.subr.bf16.mxu0 0
      %457 = vmatpush1.bf16.msra.mxu0 0
      %458 = vmatprep.subr.bf16.mxu0 0
      %459 = vmatpush1.bf16.msra.mxu0 0
      %460 = vmatprep.subr.bf16.mxu0 0
      %461 = vmatpush1.bf16.msra.mxu0 0
      %462 = vmatprep.subr.bf16.mxu0 0
      %463 = vmatpush1.bf16.msra.mxu0 0
      %464 = vmatprep.subr.bf16.mxu0 0
      %465 = vmatpush1.bf16.msra.mxu0 0
      %466 = vmatprep.subr.bf16.mxu0 0
      %467 = vmatpush1.bf16.msra.mxu0 0
      %468 = vmatprep.subr.bf16.mxu0 0
      %469 = vmatpush1.bf16.msra.mxu0 0
      %470 = vmatprep.subr.bf16.mxu0 0
      %471 = vmatpush1.bf16.msra.mxu0 0
      %472 = vmatprep.subr.bf16.mxu0 0
      %473 = vmatpush1.bf16.msra.mxu0 0
      %474 = vmatprep.subr.bf16.mxu0 0
      %475 = vmatpush1.bf16.msra.mxu0 0
      %476 = vmatprep.subr.bf16.mxu0 0
      %477 = vmatpush1.bf16.msra.mxu0 0
      %478 = vmatprep.subr.bf16.mxu0 0
      %479 = vmatpush1.bf16.msra.mxu0 0
      %480 = vmatprep.subr.bf16.mxu0 0
      %481 = vmatpush1.bf16.msra.mxu0 0
      %482 = vmatprep.mubr.bf16.mxu0 0
      %483 = vmatmul.mubr.bf16.gmra.mrb[0].mxu0 %v399
      %v484 = vpop.f32.mrb[0].mxu0
      %v485 = vadd.f32 0.0, %v484
      %v486 = vpop.f32.mrb[0].mxu0
      %v487 = vpop.f32.mrb[0].mxu0
      %v488 = vadd.f32 0.0, %v487
      %v489 = vpop.f32.mrb[0].mxu0
      %490 = vmatprep.mubr.bf16.mxu0 0
      %491 = vmatmul.mubr.bf16.gmra.mrb[0].mxu0 %v402
      %v492 = vpop.f32.mrb[0].mxu0
      %v493 = vadd.f32 0.0, %v492
      %v494 = vpop.f32.mrb[0].mxu0
      %v495 = vpop.f32.mrb[0].mxu0
      %v496 = vadd.f32 0.0, %v495
      %v497 = vpop.f32.mrb[0].mxu0
      %498 = vmatprep.mubr.bf16.mxu0 0
      %499 = vmatmul.mubr.bf16.gmra.mrb[0].mxu0 %v405
      %v500 = vpop.f32.mrb[0].mxu0
      %v501 = vadd.f32 0.0, %v500
      %v502 = vpop.f32.mrb[0].mxu0
      %v503 = vpop.f32.mrb[0].mxu0
      %v504 = vadd.f32 0.0, %v503
      %v505 = vpop.f32.mrb[0].mxu0
      %506 = vmatprep.mubr.bf16.mxu0 0
      %507 = vmatmul.mubr.bf16.gmra.mrb[0].mxu0 %v408
      %v508 = vpop.f32.mrb[0].mxu0
      %v509 = vadd.f32 0.0, %v508
      %v510 = vpop.f32.mrb[0].mxu0
      %v511 = vpop.f32.mrb[0].mxu0
      %v512 = vadd.f32 0.0, %v511
      %v513 = vpop.f32.mrb[0].mxu0
      %514 = vmatprep.mubr.bf16.mxu0 0
      %515 = vmatmul.mubr.bf16.gmra.mrb[0].mxu0 %v411
      %v516 = vpop.f32.mrb[0].mxu0
      %v517 = vadd.f32 0.0, %v516
      %v518 = vpop.f32.mrb[0].mxu0
      %v519 = vpop.f32.mrb[0].mxu0
      %v520 = vadd.f32 0.0, %v519
      %v521 = vpop.f32.mrb[0].mxu0
      %522 = vmatprep.mubr.bf16.mxu0 0
      %523 = vmatmul.mubr.bf16.gmra.mrb[0].mxu0 %v414
      %v524 = vpop.f32.mrb[0].mxu0
      %v525 = vadd.f32 0.0, %v524
      %v526 = vpop.f32.mrb[0].mxu0
      %v527 = vpop.f32.mrb[0].mxu0
      %v528 = vadd.f32 0.0, %v527
      %v529 = vpop.f32.mrb[0].mxu0
      %530 = vmatprep.mubr.bf16.mxu0 0
      %531 = vmatmul.mubr.bf16.gmra.mrb[0].mxu0 %v417
      %v532 = vpop.f32.mrb[0].mxu0
      %v533 = vadd.f32 0.0, %v532
      %v534 = vpop.f32.mrb[0].mxu0
      %v535 = vpop.f32.mrb[0].mxu0
      %v536 = vadd.f32 0.0, %v535
      %v537 = vpop.f32.mrb[0].mxu0
      %538 = vmatprep.mubr.bf16.mxu0 0
      %539 = vmatmul.mubr.bf16.gmra.mrb[0].mxu0 %v420
      %v540 = vpop.f32.mrb[0].mxu0
      %v541 = vadd.f32 0.0, %v540
      %v542 = vpop.f32.mrb[0].mxu0
      %v543 = vpop.f32.mrb[0].mxu0
      %v544 = vadd.f32 0.0, %v543
      %v545 = vpop.f32.mrb[0].mxu0
      %546 = vmatprep.mubr.bf16.mxu0 0
      %547 = vmatmul.mubr.bf16.gmra.mrb[0].mxu0 %v423
      %v548 = vpop.f32.mrb[0].mxu0
      %v549 = vadd.f32 0.0, %v548
      %v550 = vpop.f32.mrb[0].mxu0
      %v551 = vpop.f32.mrb[0].mxu0
      %v552 = vadd.f32 0.0, %v551
      %v553 = vpop.f32.mrb[0].mxu0
      %554 = vmatprep.mubr.bf16.mxu0 0
      %555 = vmatmul.mubr.bf16.gmra.mrb[0].mxu0 %v426
      %v556 = vpop.f32.mrb[0].mxu0
      %v557 = vadd.f32 0.0, %v556
      %v558 = vpop.f32.mrb[0].mxu0
      %v559 = vpop.f32.mrb[0].mxu0
      %v560 = vadd.f32 0.0, %v559
      %v561 = vpop.f32.mrb[0].mxu0
      %562 = vmatprep.mubr.bf16.mxu0 0
      %563 = vmatmul.mubr.bf16.gmra.mrb[0].mxu0 %v429
      %v564 = vpop.f32.mrb[0].mxu0
      %v565 = vadd.f32 0.0, %v564
      %v566 = vpop.f32.mrb[0].mxu0
      %v567 = vpop.f32.mrb[0].mxu0
      %v568 = vadd.f32 0.0, %v567
      %v569 = vpop.f32.mrb[0].mxu0
      %570 = vmatprep.mubr.bf16.mxu0 0
      %571 = vmatmul.mubr.bf16.gmra.mrb[0].mxu0 %v432
      %v572 = vpop.f32.mrb[0].mxu0
      %v573 = vadd.f32 0.0, %v572
      %v574 = vpop.f32.mrb[0].mxu0
      %v575 = vpop.f32.mrb[0].mxu0
      %v576 = vadd.f32 0.0, %v575
      %v577 = vpop.f32.mrb[0].mxu0
      %578 = vmatprep.mubr.bf16.mxu0 0
      %579 = vmatmul.mubr.bf16.gmra.mrb[0].mxu0 %v435
      %v580 = vpop.f32.mrb[0].mxu0
      %v581 = vadd.f32 0.0, %v580
      %v582 = vpop.f32.mrb[0].mxu0
      %v583 = vpop.f32.mrb[0].mxu0
      %v584 = vadd.f32 0.0, %v583
      %v585 = vpop.f32.mrb[0].mxu0
      %586 = vmatprep.mubr.bf16.mxu0 0
      %587 = vmatmul.mubr.bf16.gmra.mrb[0].mxu0 %v438
      %v588 = vpop.f32.mrb[0].mxu0
      %v589 = vadd.f32 0.0, %v588
      %v590 = vpop.f32.mrb[0].mxu0
      %v591 = vpop.f32.mrb[0].mxu0
      %v592 = vadd.f32 0.0, %v591
      %v593 = vpop.f32.mrb[0].mxu0
      %594 = vmatprep.mubr.bf16.mxu0 0
      %595 = vmatmul.mubr.bf16.gmra.mrb[0].mxu0 %v441
      %v596 = vpop.f32.mrb[0].mxu0
      %v597 = vadd.f32 0.0, %v596
      %v598 = vpop.f32.mrb[0].mxu0
      %v599 = vpop.f32.mrb[0].mxu0
      %v600 = vadd.f32 0.0, %v599
      %v601 = vpop.f32.mrb[0].mxu0
      %602 = vmatprep.mubr.bf16.mxu0 0
      %603 = vmatmul.mubr.bf16.gmra.mrb[0].mxu0 %v444
      %v604 = vpop.f32.mrb[0].mxu0
      %v605 = vadd.f32 0.0, %v604
      %v606 = vpop.f32.mrb[0].mxu0
      %v607 = vpop.f32.mrb[0].mxu0
      %v608 = vadd.f32 0.0, %v607
      %v609 = vpop.f32.mrb[0].mxu0
      %610 = vdwg.mxu0
      %v643 = vunpack.c.l.b16 %v251
      %v644 = vunpack.c.l.b16 %v252
      %v645 = vunpack.c.l.b16 %v253
      %v646 = vunpack.c.l.b16 %v254
      %v647 = vunpack.c.l.b16 %v255
      %v648 = vunpack.c.l.b16 %v256
      %v649 = vunpack.c.l.b16 %v257
      %v650 = vunpack.c.l.b16 %v258
      %v651 = vunpack.c.l.b16 %v259
      %v652 = vunpack.c.l.b16 %v260
      %v653 = vunpack.c.l.b16 %v261
      %v654 = vunpack.c.l.b16 %v262
      %v655 = vunpack.c.l.b16 %v263
      %v656 = vunpack.c.l.b16 %v264
      %v657 = vunpack.c.l.b16 %v265
      %v658 = vunpack.c.l.b16 %v266
      %v659 = vunpack.c.l.b16 %v267
      %v660 = vunpack.c.l.b16 %v268
      %v661 = vunpack.c.l.b16 %v269
      %v662 = vunpack.c.l.b16 %v270
      %v663 = vunpack.c.l.b16 %v271
      %v664 = vunpack.c.l.b16 %v272
      %v665 = vunpack.c.l.b16 %v273
      %v666 = vunpack.c.l.b16 %v274
      %v667 = vunpack.c.l.b16 %v275
      %v668 = vunpack.c.l.b16 %v276
      %v669 = vunpack.c.l.b16 %v277
      %v670 = vunpack.c.l.b16 %v278
      %v671 = vunpack.c.l.b16 %v279
      %v672 = vunpack.c.l.b16 %v280
      %v673 = vunpack.c.l.b16 %v281
      %v674 = vunpack.c.l.b16 %v282
      %v675 = vpack.c.b16 %v644, %v643
      %v676 = vpack.c.b16 %v646, %v645
      %v677 = vpack.c.b16 %v648, %v647
      %v678 = vpack.c.b16 %v650, %v649
      %v679 = vpack.c.b16 %v652, %v651
      %v680 = vpack.c.b16 %v654, %v653
      %v681 = vpack.c.b16 %v656, %v655
      %v682 = vpack.c.b16 %v658, %v657
      %v683 = vpack.c.b16 %v660, %v659
      %v684 = vpack.c.b16 %v662, %v661
      %v685 = vpack.c.b16 %v664, %v663
      %v686 = vpack.c.b16 %v666, %v665
      %v687 = vpack.c.b16 %v668, %v667
      %v688 = vpack.c.b16 %v670, %v669
      %v689 = vpack.c.b16 %v672, %v671
      %v690 = vpack.c.b16 %v674, %v673
      %v692 = vsel %vm397, %v675, 0
      %v695 = vsel %vm397, %v676, 0
      %v698 = vsel %vm397, %v677, 0
      %v701 = vsel %vm397, %v678, 0
      %v704 = vsel %vm397, %v679, 0
      %v707 = vsel %vm397, %v680, 0
      %v710 = vsel %vm397, %v681, 0
      %v713 = vsel %vm397, %v682, 0
      %v716 = vsel %vm397, %v683, 0
      %v719 = vsel %vm397, %v684, 0
      %v722 = vsel %vm397, %v685, 0
      %v725 = vsel %vm397, %v686, 0
      %v728 = vsel %vm397, %v687, 0
      %v731 = vsel %vm397, %v688, 0
      %v734 = vsel %vm397, %v689, 0
      %v737 = vsel %vm397, %v690, 0
      %v740 = vsel %vm446, %v283, 0
      %742 = vmatprep.subr.bf16.mxu0 0
      %743 = vmatpush1.bf16.msra.mxu0 %v740
      %744 = vmatprep.subr.bf16.mxu0 0
      %745 = vmatpush1.bf16.msra.mxu0 0
      %746 = vmatprep.subr.bf16.mxu0 0
      %747 = vmatpush1.bf16.msra.mxu0 0
      %748 = vmatprep.subr.bf16.mxu0 0
      %749 = vmatpush1.bf16.msra.mxu0 0
      %750 = vmatprep.subr.bf16.mxu0 0
      %751 = vmatpush1.bf16.msra.mxu0 0
      %752 = vmatprep.subr.bf16.mxu0 0
      %753 = vmatpush1.bf16.msra.mxu0 0
      %754 = vmatprep.subr.bf16.mxu0 0
      %755 = vmatpush1.bf16.msra.mxu0 0
      %756 = vmatprep.subr.bf16.mxu0 0
      %757 = vmatpush1.bf16.msra.mxu0 0
      %758 = vmatprep.subr.bf16.mxu0 0
      %759 = vmatpush1.bf16.msra.mxu0 0
      %760 = vmatprep.subr.bf16.mxu0 0
      %761 = vmatpush1.bf16.msra.mxu0 0
      %762 = vmatprep.subr.bf16.mxu0 0
      %763 = vmatpush1.bf16.msra.mxu0 0
      %764 = vmatprep.subr.bf16.mxu0 0
      %765 = vmatpush1.bf16.msra.mxu0 0
      %766 = vmatprep.subr.bf16.mxu0 0
      %767 = vmatpush1.bf16.msra.mxu0 0
      %768 = vmatprep.subr.bf16.mxu0 0
      %769 = vmatpush1.bf16.msra.mxu0 0
      %770 = vmatprep.subr.bf16.mxu0 0
      %771 = vmatpush1.bf16.msra.mxu0 0
      %772 = vmatprep.subr.bf16.mxu0 0
      %773 = vmatpush1.bf16.msra.mxu0 0
      %774 = vmatprep.mubr.bf16.mxu0 0
      %775 = vmatmul.mubr.bf16.gmra.mrb[0].mxu0 %v692
      %v776 = vpop.f32.mrb[0].mxu0
      %v777 = vadd.f32 %v485, %v776
      %v778 = vpop.f32.mrb[0].mxu0
      %v779 = vpop.f32.mrb[0].mxu0
      %v780 = vadd.f32 %v488, %v779
      %v781 = vpop.f32.mrb[0].mxu0
      %782 = vmatprep.mubr.bf16.mxu0 0
      %783 = vmatmul.mubr.bf16.gmra.mrb[0].mxu0 %v695
      %v784 = vpop.f32.mrb[0].mxu0
      %v785 = vadd.f32 %v493, %v784
      %v786 = vpop.f32.mrb[0].mxu0
      %v787 = vpop.f32.mrb[0].mxu0
      %v788 = vadd.f32 %v496, %v787
      %v789 = vpop.f32.mrb[0].mxu0
      %790 = vmatprep.mubr.bf16.mxu0 0
      %791 = vmatmul.mubr.bf16.gmra.mrb[0].mxu0 %v698
      %v792 = vpop.f32.mrb[0].mxu0
      %v793 = vadd.f32 %v501, %v792
      %v794 = vpop.f32.mrb[0].mxu0
      %v795 = vpop.f32.mrb[0].mxu0
      %v796 = vadd.f32 %v504, %v795
      %v797 = vpop.f32.mrb[0].mxu0
      %798 = vmatprep.mubr.bf16.mxu0 0
      %799 = vmatmul.mubr.bf16.gmra.mrb[0].mxu0 %v701
      %v800 = vpop.f32.mrb[0].mxu0
      %v801 = vadd.f32 %v509, %v800
      %v802 = vpop.f32.mrb[0].mxu0
      %v803 = vpop.f32.mrb[0].mxu0
      %v804 = vadd.f32 %v512, %v803
      %v805 = vpop.f32.mrb[0].mxu0
      %806 = vmatprep.mubr.bf16.mxu0 0
      %807 = vmatmul.mubr.bf16.gmra.mrb[0].mxu0 %v704
      %v808 = vpop.f32.mrb[0].mxu0
      %v809 = vadd.f32 %v517, %v808
      %v810 = vpop.f32.mrb[0].mxu0
      %v811 = vpop.f32.mrb[0].mxu0
      %v812 = vadd.f32 %v520, %v811
      %v813 = vpop.f32.mrb[0].mxu0
      %814 = vmatprep.mubr.bf16.mxu0 0
      %815 = vmatmul.mubr.bf16.gmra.mrb[0].mxu0 %v707
      %v816 = vpop.f32.mrb[0].mxu0
      %v817 = vadd.f32 %v525, %v816
      %v818 = vpop.f32.mrb[0].mxu0
      %v819 = vpop.f32.mrb[0].mxu0
      %v820 = vadd.f32 %v528, %v819
      %v821 = vpop.f32.mrb[0].mxu0
      %822 = vmatprep.mubr.bf16.mxu0 0
      %823 = vmatmul.mubr.bf16.gmra.mrb[0].mxu0 %v710
      %v824 = vpop.f32.mrb[0].mxu0
      %v825 = vadd.f32 %v533, %v824
      %v826 = vpop.f32.mrb[0].mxu0
      %v827 = vpop.f32.mrb[0].mxu0
      %v828 = vadd.f32 %v536, %v827
      %v829 = vpop.f32.mrb[0].mxu0
      %830 = vmatprep.mubr.bf16.mxu0 0
      %831 = vmatmul.mubr.bf16.gmra.mrb[0].mxu0 %v713
      %v832 = vpop.f32.mrb[0].mxu0
      %v833 = vadd.f32 %v541, %v832
      %v834 = vpop.f32.mrb[0].mxu0
      %v835 = vpop.f32.mrb[0].mxu0
      %v836 = vadd.f32 %v544, %v835
      %v837 = vpop.f32.mrb[0].mxu0
      %838 = vmatprep.mubr.bf16.mxu0 0
      %839 = vmatmul.mubr.bf16.gmra.mrb[0].mxu0 %v716
      %v840 = vpop.f32.mrb[0].mxu0
      %v841 = vadd.f32 %v549, %v840
      %v842 = vpop.f32.mrb[0].mxu0
      %v843 = vpop.f32.mrb[0].mxu0
      %v844 = vadd.f32 %v552, %v843
      %v845 = vpop.f32.mrb[0].mxu0
      %846 = vmatprep.mubr.bf16.mxu0 0
      %847 = vmatmul.mubr.bf16.gmra.mrb[0].mxu0 %v719
      %v848 = vpop.f32.mrb[0].mxu0
      %v849 = vadd.f32 %v557, %v848
      %v850 = vpop.f32.mrb[0].mxu0
      %v851 = vpop.f32.mrb[0].mxu0
      %v852 = vadd.f32 %v560, %v851
      %v853 = vpop.f32.mrb[0].mxu0
      %854 = vmatprep.mubr.bf16.mxu0 0
      %855 = vmatmul.mubr.bf16.gmra.mrb[0].mxu0 %v722
      %v856 = vpop.f32.mrb[0].mxu0
      %v857 = vadd.f32 %v565, %v856
      %v858 = vpop.f32.mrb[0].mxu0
      %v859 = vpop.f32.mrb[0].mxu0
      %v860 = vadd.f32 %v568, %v859
      %v861 = vpop.f32.mrb[0].mxu0
      %862 = vmatprep.mubr.bf16.mxu0 0
      %863 = vmatmul.mubr.bf16.gmra.mrb[0].mxu0 %v725
      %v864 = vpop.f32.mrb[0].mxu0
      %v865 = vadd.f32 %v573, %v864
      %v866 = vpop.f32.mrb[0].mxu0
      %v867 = vpop.f32.mrb[0].mxu0
      %v868 = vadd.f32 %v576, %v867
      %v869 = vpop.f32.mrb[0].mxu0
      %870 = vmatprep.mubr.bf16.mxu0 0
      %871 = vmatmul.mubr.bf16.gmra.mrb[0].mxu0 %v728
      %v872 = vpop.f32.mrb[0].mxu0
      %v873 = vadd.f32 %v581, %v872
      %v874 = vpop.f32.mrb[0].mxu0
      %v875 = vpop.f32.mrb[0].mxu0
      %v876 = vadd.f32 %v584, %v875
      %v877 = vpop.f32.mrb[0].mxu0
      %878 = vmatprep.mubr.bf16.mxu0 0
      %879 = vmatmul.mubr.bf16.gmra.mrb[0].mxu0 %v731
      %v880 = vpop.f32.mrb[0].mxu0
      %v881 = vadd.f32 %v589, %v880
      %v882 = vpop.f32.mrb[0].mxu0
      %v883 = vpop.f32.mrb[0].mxu0
      %v884 = vadd.f32 %v592, %v883
      %v885 = vpop.f32.mrb[0].mxu0
      %886 = vmatprep.mubr.bf16.mxu0 0
      %887 = vmatmul.mubr.bf16.gmra.mrb[0].mxu0 %v734
      %v888 = vpop.f32.mrb[0].mxu0
      %v889 = vadd.f32 %v597, %v888
      %v890 = vpop.f32.mrb[0].mxu0
      %v891 = vpop.f32.mrb[0].mxu0
      %v892 = vadd.f32 %v600, %v891
      %v893 = vpop.f32.mrb[0].mxu0
      %894 = vmatprep.mubr.bf16.mxu0 0
      %895 = vmatmul.mubr.bf16.gmra.mrb[0].mxu0 %v737
      %v896 = vpop.f32.mrb[0].mxu0
      %v897 = vadd.f32 %v605, %v896
      %v898 = vpop.f32.mrb[0].mxu0
      %v899 = vpop.f32.mrb[0].mxu0
      %v900 = vadd.f32 %v608, %v899
      %v901 = vpop.f32.mrb[0].mxu0
      %902 = vdwg.mxu0
      %v903 = vld [vmem:[%s4] sm:$0x1]
      %v905 = vlaneseq
      %v906 = vshrl.u32 %v905, 7
      %v907 = vsub.s32 0, %v906
      %v908 = vrot.slane %v903, %v907
      %v910 = vadd.f32 %v777, %v908
      %v911 = vadd.f32 %v780, %v908
      %v912 = vadd.f32 %v785, %v908
      %v913 = vadd.f32 %v788, %v908
      %v914 = vadd.f32 %v793, %v908
      %v915 = vadd.f32 %v796, %v908
      %v916 = vadd.f32 %v801, %v908
      %v917 = vadd.f32 %v804, %v908
      %v918 = vadd.f32 %v809, %v908
      %v919 = vadd.f32 %v812, %v908
      %v920 = vadd.f32 %v817, %v908
      %v921 = vadd.f32 %v820, %v908
      %v922 = vadd.f32 %v825, %v908
      %v923 = vadd.f32 %v828, %v908
      %v924 = vadd.f32 %v833, %v908
      %v925 = vadd.f32 %v836, %v908
      %v926 = vadd.f32 %v841, %v908
      %v927 = vadd.f32 %v844, %v908
      %v928 = vadd.f32 %v849, %v908
      %v929 = vadd.f32 %v852, %v908
      %v930 = vadd.f32 %v857, %v908
      %v931 = vadd.f32 %v860, %v908
      %v932 = vadd.f32 %v865, %v908
      %v933 = vadd.f32 %v868, %v908
      %v934 = vadd.f32 %v873, %v908
      %v935 = vadd.f32 %v876, %v908
      %v936 = vadd.f32 %v881, %v908
      %v937 = vadd.f32 %v884, %v908
      %v938 = vadd.f32 %v889, %v908
      %v939 = vadd.f32 %v892, %v908
      %v940 = vadd.f32 %v897, %v908
      %v941 = vadd.f32 %v900, %v908
      %v942 = vmax.f32 %v910, 0.0
      %v943 = vmax.f32 %v911, 0.0
      %v944 = vmax.f32 %v912, 0.0
      %v945 = vmax.f32 %v913, 0.0
      %v946 = vmax.f32 %v914, 0.0
      %v947 = vmax.f32 %v915, 0.0
      %v948 = vmax.f32 %v916, 0.0
      %v949 = vmax.f32 %v917, 0.0
      %v950 = vmax.f32 %v918, 0.0
      %v951 = vmax.f32 %v919, 0.0
      %v952 = vmax.f32 %v920, 0.0
      %v953 = vmax.f32 %v921, 0.0
      %v954 = vmax.f32 %v922, 0.0
      %v955 = vmax.f32 %v923, 0.0
      %v956 = vmax.f32 %v924, 0.0
      %v957 = vmax.f32 %v925, 0.0
      %v958 = vmax.f32 %v926, 0.0
      %v959 = vmax.f32 %v927, 0.0
      %v960 = vmax.f32 %v928, 0.0
      %v961 = vmax.f32 %v929, 0.0
      %v962 = vmax.f32 %v930, 0.0
      %v963 = vmax.f32 %v931, 0.0
      %v964 = vmax.f32 %v932, 0.0
      %v965 = vmax.f32 %v933, 0.0
      %v966 = vmax.f32 %v934, 0.0
      %v967 = vmax.f32 %v935, 0.0
      %v968 = vmax.f32 %v936, 0.0
      %v969 = vmax.f32 %v937, 0.0
      %v970 = vmax.f32 %v938, 0.0
      %v971 = vmax.f32 %v939, 0.0
      %v972 = vmax.f32 %v940, 0.0
      %v973 = vmax.f32 %v941, 0.0
      %v974 = vpack.c.bf16 %v943, %v942
      %v975 = vpack.c.bf16 %v945, %v944
      %v976 = vpack.c.bf16 %v947, %v946
      %v977 = vpack.c.bf16 %v949, %v948
      %v978 = vpack.c.bf16 %v951, %v950
      %v979 = vpack.c.bf16 %v953, %v952
      %v980 = vpack.c.bf16 %v955, %v954
      %v981 = vpack.c.bf16 %v957, %v956
      %v982 = vpack.c.bf16 %v959, %v958
      %v983 = vpack.c.bf16 %v961, %v960
      %v984 = vpack.c.bf16 %v963, %v962
      %v985 = vpack.c.bf16 %v965, %v964
      %v986 = vpack.c.bf16 %v967, %v966
      %v987 = vpack.c.bf16 %v969, %v968
      %v988 = vpack.c.bf16 %v971, %v970
      %v989 = vpack.c.bf16 %v973, %v972
      %v1006 = vunpack.c.l.b16 %v974
      %v1007 = vunpack.c.h.b16 %v974
      %v1008 = vunpack.c.l.b16 %v975
      %v1009 = vunpack.c.h.b16 %v975
      %v1010 = vunpack.c.l.b16 %v976
      %v1011 = vunpack.c.h.b16 %v976
      %v1012 = vunpack.c.l.b16 %v977
      %v1013 = vunpack.c.h.b16 %v977
      %v1014 = vunpack.c.l.b16 %v978
      %v1015 = vunpack.c.h.b16 %v978
      %v1016 = vunpack.c.l.b16 %v979
      %v1017 = vunpack.c.h.b16 %v979
      %v1018 = vunpack.c.l.b16 %v980
      %v1019 = vunpack.c.h.b16 %v980
      %v1020 = vunpack.c.l.b16 %v981
      %v1021 = vunpack.c.h.b16 %v981
      %v1022 = vunpack.c.l.b16 %v982
      %v1023 = vunpack.c.h.b16 %v982
      %v1024 = vunpack.c.l.b16 %v983
      %v1025 = vunpack.c.h.b16 %v983
      %v1026 = vunpack.c.l.b16 %v984
      %v1027 = vunpack.c.h.b16 %v984
      %v1028 = vunpack.c.l.b16 %v985
      %v1029 = vunpack.c.h.b16 %v985
      %v1030 = vunpack.c.l.b16 %v986
      %v1031 = vunpack.c.h.b16 %v986
      %v1032 = vunpack.c.l.b16 %v987
      %v1033 = vunpack.c.h.b16 %v987
      %v1034 = vunpack.c.l.b16 %v988
      %v1035 = vunpack.c.h.b16 %v988
      %v1036 = vunpack.c.l.b16 %v989
      %v1037 = vunpack.c.h.b16 %v989
      %v1038 = vpack.c.b16 %v1006, %v1006
      %v1039 = vpack.c.b16 %v1007, %v1007
      %v1040 = vpack.c.b16 %v1008, %v1008
      %v1041 = vpack.c.b16 %v1009, %v1009
      %v1042 = vpack.c.b16 %v1010, %v1010
      %v1043 = vpack.c.b16 %v1011, %v1011
      %v1044 = vpack.c.b16 %v1012, %v1012
      %v1045 = vpack.c.b16 %v1013, %v1013
      %v1046 = vpack.c.b16 %v1014, %v1014
      %v1047 = vpack.c.b16 %v1015, %v1015
      %v1048 = vpack.c.b16 %v1016, %v1016
      %v1049 = vpack.c.b16 %v1017, %v1017
      %v1050 = vpack.c.b16 %v1018, %v1018
      %v1051 = vpack.c.b16 %v1019, %v1019
      %v1052 = vpack.c.b16 %v1020, %v1020
      %v1053 = vpack.c.b16 %v1021, %v1021
      %v1054 = vpack.c.b16 %v1022, %v1022
      %v1055 = vpack.c.b16 %v1023, %v1023
      %v1056 = vpack.c.b16 %v1024, %v1024
      %v1057 = vpack.c.b16 %v1025, %v1025
      %v1058 = vpack.c.b16 %v1026, %v1026
      %v1059 = vpack.c.b16 %v1027, %v1027
      %v1060 = vpack.c.b16 %v1028, %v1028
      %v1061 = vpack.c.b16 %v1029, %v1029
      %v1062 = vpack.c.b16 %v1030, %v1030
      %v1063 = vpack.c.b16 %v1031, %v1031
      %v1064 = vpack.c.b16 %v1032, %v1032
      %v1065 = vpack.c.b16 %v1033, %v1033
      %v1066 = vpack.c.b16 %v1034, %v1034
      %v1067 = vpack.c.b16 %v1035, %v1035
      %v1068 = vpack.c.b16 %v1036, %v1036
      %v1069 = vpack.c.b16 %v1037, %v1037
      %vm1102 = vcmask 125952
      %1103 = vst.msk [vmem:[%s248] sm:$0xf] %vm1102, %v1038
      %1104 = vst.msk [vmem:[%s248 + $0x4] sm:$0xf] %vm1102, %v1039
      %1105 = vst.msk [vmem:[%s248 + $0x8] sm:$0xf] %vm1102, %v1040
      %1106 = vst.msk [vmem:[%s248 + $0xc] sm:$0xf] %vm1102, %v1041
      %1107 = vst.msk [vmem:[%s248 + $0x10] sm:$0xf] %vm1102, %v1042
      %1108 = vst.msk [vmem:[%s248 + $0x14] sm:$0xf] %vm1102, %v1043
      %1109 = vst.msk [vmem:[%s248 + $0x18] sm:$0xf] %vm1102, %v1044
      %1110 = vst.msk [vmem:[%s248 + $0x1c] sm:$0xf] %vm1102, %v1045
      %1111 = vst.msk [vmem:[%s248 + $0x20] sm:$0xf] %vm1102, %v1046
      %1112 = vst.msk [vmem:[%s248 + $0x24] sm:$0xf] %vm1102, %v1047
      %1113 = vst.msk [vmem:[%s248 + $0x28] sm:$0xf] %vm1102, %v1048
      %1114 = vst.msk [vmem:[%s248 + $0x2c] sm:$0xf] %vm1102, %v1049
      %1115 = vst.msk [vmem:[%s248 + $0x30] sm:$0xf] %vm1102, %v1050
      %1116 = vst.msk [vmem:[%s248 + $0x34] sm:$0xf] %vm1102, %v1051
      %1117 = vst.msk [vmem:[%s248 + $0x38] sm:$0xf] %vm1102, %v1052
      %1118 = vst.msk [vmem:[%s248 + $0x3c] sm:$0xf] %vm1102, %v1053
      %1119 = vst.msk [vmem:[%s248 + $0x40] sm:$0xf] %vm1102, %v1054
      %1120 = vst.msk [vmem:[%s248 + $0x44] sm:$0xf] %vm1102, %v1055
      %1121 = vst.msk [vmem:[%s248 + $0x48] sm:$0xf] %vm1102, %v1056
      %1122 = vst.msk [vmem:[%s248 + $0x4c] sm:$0xf] %vm1102, %v1057
      %1123 = vst.msk [vmem:[%s248 + $0x50] sm:$0xf] %vm1102, %v1058
      %1124 = vst.msk [vmem:[%s248 + $0x54] sm:$0xf] %vm1102, %v1059
      %1125 = vst.msk [vmem:[%s248 + $0x58] sm:$0xf] %vm1102, %v1060
      %1126 = vst.msk [vmem:[%s248 + $0x5c] sm:$0xf] %vm1102, %v1061
      %1127 = vst.msk [vmem:[%s248 + $0x60] sm:$0xf] %vm1102, %v1062
      %1128 = vst.msk [vmem:[%s248 + $0x64] sm:$0xf] %vm1102, %v1063
      %1129 = vst.msk [vmem:[%s248 + $0x68] sm:$0xf] %vm1102, %v1064
      %1130 = vst.msk [vmem:[%s248 + $0x6c] sm:$0xf] %vm1102, %v1065
      %1131 = vst.msk [vmem:[%s248 + $0x70] sm:$0xf] %vm1102, %v1066
      %1132 = vst.msk [vmem:[%s248 + $0x74] sm:$0xf] %vm1102, %v1067
      %1133 = vst.msk [vmem:[%s248 + $0x78] sm:$0xf] %vm1102, %v1068
      %1134 = vst.msk [vmem:[%s248 + $0x7c] sm:$0xf] %vm1102, %v1069
      %s1135 = smul.u32 32, %s16
      %p1136 = scmp.lt.s32.totalorder %s1135, 63
      %s1137 = scalar_select %p1136, %s1135, 63
      %s1138 = smul.addr %s1137, 4
      %s1139 = scalar_lea.vmem %s5, %s1138
      // Predicated region
      $region41: #{bottleneck_forward.5} parent=39 // pred_check
        %p1140 = pneg %p149
      $region42: #{bottleneck_forward.5} parent=39 // pred_check_branch
        %1142 = sbr.rel (%p1140) target = $region44
      $region43: #{bottleneck_forward.5} parent=39 // pred_region
        %s1143 = smul.u32 32, %s16
      $region44: #{bottleneck_forward.5} parent=39 // pred_fallthru
        _
    $region40: #{bottleneck_forward.5} parent=5 // pred_fallthru
      _
    %p1144 = scmp.le.s32.totalorder 2, %s11
    // Predicated region
    $region45: #{bottleneck_forward.5} parent=5 // pred_check
      %p1145 = pneg %p1144
    $region46: #{bottleneck_forward.5} parent=5 // pred_check_branch
      %1147 = sbr.rel (%p1145) target = $region48
    $region47: #{bottleneck_forward.5} parent=5 // pred_region
      %s1148 = ssub.s32 %s11, 2
      // Predicated region
      $region49: #{bottleneck_forward.5} parent=47 // pred_check
        %p1149 = pneg %p155
      $region50: #{bottleneck_forward.5} parent=47 // pred_check_branch
        %1151 = sbr.rel (%p1149) target = $region52
      $region51: #{bottleneck_forward.5} parent=47 // pred_region
        %s1152 = smul.u32 32, %s17
        %p1153 = scmp.lt.s32.totalorder %s1152, 63
        %s1154 = scalar_select %p1153, %s1152, 63
        %s1155 = smul.addr %s1154, 4
        %s1156 = scalar_lea.vmem %s5, %s1155
      $region52: #{bottleneck_forward.5} parent=47 // pred_fallthru
        _
    $region48: #{bottleneck_forward.5} parent=5 // pred_fallthru
      _
  $region6: #{bottleneck_forward.5} parent=0 // loop_footer
    %s15 = sadd.s32 1, %s11
  $region7: #{bottleneck_forward.5} parent=0 // loop_footer_branch
    %10 = sbr.rel target = $region3
  $region8: #{bottleneck_forward.5} parent=0 // loop_exit
    _

// kernel: bottleneck_forward.4
$region0: #{bottleneck_forward.4}
  #allocation0 [shape = 'u32[]', space=smem, size = 0x4, offset = 0x4, fixed_abs, tag = 'smem constant byte address 0x4 - core index']
  #allocation1 [shape = 'u32[144,128]{1,0:T(1,128)}', space=vmem, size = 0x12000, scoped, tag = 'internal scratch']
  %s0 = inlined_call_operand.vmem [shape: bf16[2,456,4], index: 0, kind: input, shape index: {}]
  %s1 = inlined_call_operand.vmem [shape: bf16[9,4,4], index: 1, kind: input, shape index: {}]
  %s2 = inlined_call_operand.vmem [shape: f32[1,4], index: 2, kind: input, shape index: {}]
  %s3 = inlined_call_operand.vmem [shape: bf16[2,16,16,4], index: 3, kind: output, shape index: {}]
  %s4 = sld [smem:[#allocation0]]
  $region45: #{bottleneck_forward.4} parent=0
    _
  %s6 = ssub.s32 1, %s4
  %s7 = scalar_select 0, %s6, %s4
  loop: start=0, step=1, limit=6
  $region2: #{bottleneck_forward.4} parent=0 // loop_pre_header
    _
  $region3: #{bottleneck_forward.4} parent=0 // loop_header
    %s9 = sphi 0, %s13
    %p10 = scmp.ge.s32.totalorder %s9, 6
    %s16 = sphi 0, %s28
    %s17 = sphi 0, %s24
    %s18 = sphi 0, %s16
    %s19 = sphi 0, %s17
    %s20 = sphi 0, %s18
    %s21 = sphi 0, %s19
    %s31 = sphi 0, %s33
    %s34 = sphi 0, %s31
    %s35 = sphi 0, %s34
    %s51 = sphi 0, %s35
    %s55 = sphi 0, %s55
    %s57 = sphi 0, %s55
    %s58 = sphi 0, %s57
    %s72 = sphi 0, %s58
    %s76 = sphi 0, %s76
    %s78 = sphi 0, %s76
    %s79 = sphi 0, %s78
    %s93 = sphi 0, %s79
    %s101 = sphi 0, %s103
    %s104 = sphi 0, %s101
    %s105 = sphi 0, %s104
    %s121 = sphi 0, %s105
  $region4: #{bottleneck_forward.4} parent=0 // loop_header_branch
    %12 = sbr.rel (%p10) target = $region8
  $region5: #{bottleneck_forward.4} parent=0 // loop_body
    %s14 = ssub.s32 %s9, 1
    %s15 = ssub.s32 %s9, 2
    %s22 = sadd.s32 1, %s17
    %p23 = scmp.ge.s32.totalorder %s22, 2
    %s24 = scalar_select %p23, 0, %s22
    %s25 = sadd.s32 1, %s16
    %s26 = scalar_select %p23, %s25, %s16
    %p27 = scmp.ge.s32.totalorder %s26, 2
    %s28 = scalar_select %p27, 0, %s26
    %s29 = ssub.s32 %s16, %s28
    %p30 = scmp.eq.s32.totalorder %s29, 0
    %s32 = sadd.s32 %s31, 1
    %s33 = scalar_select %p30, %s31, %s32
    %p36 = pneg %p30
    %p37 = scmp.eq.s32.totalorder %s9, 3
    %p38 = por %p36, %p37
    %p39 = scmp.ne.s32.totalorder %s31, %s34
    %p40 = scmp.eq.s32.totalorder %s9, 0
    %p41 = por %p39, %p40
    %p42 = scmp.ne.s32.totalorder %s31, %s34
    %p43 = scmp.eq.s32.totalorder %s14, 3
    %p44 = por %p42, %p43
    %p45 = scmp.ne.s32.totalorder %s34, %s35
    %p46 = scmp.eq.s32.totalorder %s14, 0
    %p47 = por %p45, %p46
    %p48 = scmp.ne.s32.totalorder %s34, %s35
    %p49 = scmp.eq.s32.totalorder %s15, 3
    %p50 = por %p48, %p49
    %p52 = scmp.ne.s32.totalorder %s35, %s51
    %p53 = scmp.eq.s32.totalorder %s15, 0
    %p54 = por %p52, %p53
    %s56 = sadd.s32 %s55, 1
    %p59 = scmp.eq.s32.totalorder %s9, 3
    %p60 = scmp.ne.s32.totalorder %s55, %s57
    %p61 = scmp.eq.s32.totalorder %s9, 0
    %p62 = por %p60, %p61
    %p63 = scmp.ne.s32.totalorder %s55, %s57
    %p64 = scmp.eq.s32.totalorder %s14, 3
    %p65 = por %p63, %p64
    %p66 = scmp.ne.s32.totalorder %s57, %s58
    %p67 = scmp.eq.s32.totalorder %s14, 0
    %p68 = por %p66, %p67
    %p69 = scmp.ne.s32.totalorder %s57, %s58
    %p70 = scmp.eq.s32.totalorder %s15, 3
    %p71 = por %p69, %p70
    %p73 = scmp.ne.s32.totalorder %s58, %s72
    %p74 = scmp.eq.s32.totalorder %s15, 0
    %p75 = por %p73, %p74
    %s77 = sadd.s32 %s76, 1
    %p80 = scmp.eq.s32.totalorder %s9, 3
    %p81 = scmp.ne.s32.totalorder %s76, %s78
    %p82 = scmp.eq.s32.totalorder %s9, 0
    %p83 = por %p81, %p82
    %p84 = scmp.ne.s32.totalorder %s76, %s78
    %p85 = scmp.eq.s32.totalorder %s14, 3
    %p86 = por %p84, %p85
    %p87 = scmp.ne.s32.totalorder %s78, %s79
    %p88 = scmp.eq.s32.totalorder %s14, 0
    %p89 = por %p87, %p88
    %p90 = scmp.ne.s32.totalorder %s78, %s79
    %p91 = scmp.eq.s32.totalorder %s15, 3
    %p92 = por %p90, %p91
    %p94 = scmp.ne.s32.totalorder %s79, %s93
    %p95 = scmp.eq.s32.totalorder %s15, 0
    %p96 = por %p94, %p95
    %s97 = ssub.s32 %s16, %s28
    %s98 = ssub.s32 %s17, %s24
    %s99 = sor.u32 %s97, %s98
    %p100 = scmp.eq.s32.totalorder %s99, 0
    %s102 = sadd.s32 %s101, 1
    %s103 = scalar_select %p100, %s101, %s102
    %p106 = pneg %p100
    %p107 = scmp.eq.s32.totalorder %s9, 3
    %p108 = por %p106, %p107
    %p109 = scmp.ne.s32.totalorder %s101, %s104
    %p110 = scmp.eq.s32.totalorder %s9, 0
    %p111 = por %p109, %p110
    %p112 = scmp.ne.s32.totalorder %s101, %s104
    %p113 = scmp.eq.s32.totalorder %s14, 3
    %p114 = por %p112, %p113
    %p115 = scmp.ne.s32.totalorder %s104, %s105
    %p116 = scmp.eq.s32.totalorder %s14, 0
    %p117 = por %p115, %p116
    %p118 = scmp.ne.s32.totalorder %s104, %s105
    %p119 = scmp.eq.s32.totalorder %s15, 3
    %p120 = por %p118, %p119
    %p122 = scmp.ne.s32.totalorder %s105, %s121
    %p123 = scmp.eq.s32.totalorder %s15, 0
    %p124 = por %p122, %p123
    %p125 = scmp.le.s32.totalorder 1, %s9
    %p126 = scmp.lt.s32.totalorder %s9, 5
    %p127 = pnand %p125, %p126
    %p128 = pneg %p127
    // Predicated region
    $region9: #{bottleneck_forward.4} parent=5 // pred_check
      _
    $region10: #{bottleneck_forward.4} parent=5 // pred_check_branch
      %130 = sbr.rel (%p127) target = $region12
    $region11: #{bottleneck_forward.4} parent=5 // pred_region
      %s131 = ssub.s32 %s9, 1
      // Predicated region
      $region13: #{bottleneck_forward.4} parent=11 // pred_check
        %p132 = pneg %p68
      $region14: #{bottleneck_forward.4} parent=11 // pred_check_branch
        %134 = sbr.rel (%p132) target = $region16
      $region15: #{bottleneck_forward.4} parent=11 // pred_region
        _
      $region16: #{bottleneck_forward.4} parent=11 // pred_fallthru
        _
      // Predicated region
      $region17: #{bottleneck_forward.4} parent=11 // pred_check
        %p135 = pneg %p89
      $region18: #{bottleneck_forward.4} parent=11 // pred_check_branch
        %137 = sbr.rel (%p135) target = $region20
      $region19: #{bottleneck_forward.4} parent=11 // pred_region
        _
      $region20: #{bottleneck_forward.4} parent=11 // pred_fallthru
        _
    $region12: #{bottleneck_forward.4} parent=5 // pred_fallthru
      _
    %p138 = scmp.lt.s32.totalorder %s9, 4
    // Predicated region
    $region21: #{bottleneck_forward.4} parent=5 // pred_check
      %p139 = pneg %p138
    $region22: #{bottleneck_forward.4} parent=5 // pred_check_branch
      %141 = sbr.rel (%p139) target = $region24
    $region23: #{bottleneck_forward.4} parent=5 // pred_region
      // Predicated region
      $region25: #{bottleneck_forward.4} parent=23 // pred_check
        %p142 = pneg %p41
      $region26: #{bottleneck_forward.4} parent=23 // pred_check_branch
        %144 = sbr.rel (%p142) target = $region28
      $region27: #{bottleneck_forward.4} parent=23 // pred_region
        %p145 = scmp.lt.s32.totalorder %s16, 1
        %s146 = scalar_select %p145, %s16, 1
        %s147 = smul.addr %s146, 57
        %s148 = smul.addr %s147, 4
        %s149 = scalar_lea.vmem %s0, %s148
      $region28: #{bottleneck_forward.4} parent=23 // pred_fallthru
        _
    $region24: #{bottleneck_forward.4} parent=5 // pred_fallthru
      _
    %p150 = scmp.le.s32.totalorder 1, %s9
    %p151 = scmp.lt.s32.totalorder %s9, 5
    %p152 = pnand %p150, %p151
    %p153 = pneg %p152
    // Predicated region
    $region29: #{bottleneck_forward.4} parent=5 // pred_check
      _
    $region30: #{bottleneck_forward.4} parent=5 // pred_check_branch
      %155 = sbr.rel (%p152) target = $region32
    $region31: #{bottleneck_forward.4} parent=5 // pred_region
      %s156 = ssub.s32 %s9, 1
      %p157 = scmp.lt.s32.totalorder %s18, 1
      %s158 = scalar_select %p157, %s18, 1
      %s159 = smul.addr %s158, 57
      %s160 = smul.addr %s159, 4
      %s161 = scalar_lea.vmem %s0, %s160
      %p162 = pneg %p47
      %p163 = pneg %p44
      %p164 = pneg %p68
      %p165 = pneg %p65
      %p166 = pneg %p89
      %p167 = pneg %p86
      %p168 = pneg %p117
      %p169 = pneg %p114
      %s170 = smul.u32 8, %s19
      %p171 = scmp.lt.s32.totalorder %s18, 1
      %s172 = scalar_select %p171, %s18, 1
      %p173 = scmp.lt.s32.totalorder %s170, 15
      %s174 = scalar_select %p173, %s170, 15
      %s175 = smul.addr %s174, 2
      %s176 = smul.addr %s172, 32
      %s177 = sadd.s32 %s175, %s176
      %s178 = smul.addr %s177, 4
      %s179 = scalar_lea.vmem %s3, %s178
      %p180 = scmp.lt.s32.totalorder %s18, 1
      %s181 = scalar_select %p180, %s18, 1
      %s182 = smul.addr %s181, 57
      %s183 = smul.addr %s182, 4
      %s184 = scalar_lea.vmem %s0, %s183
      %s185 = smul.u32 8, %s19
      %p186 = scmp.lt.s32.totalorder %s18, 1
      %s187 = scalar_select %p186, %s18, 1
      %p188 = scmp.lt.s32.totalorder %s185, 15
      %s189 = scalar_select %p188, %s185, 15
      %s190 = smul.addr %s189, 2
      %s191 = smul.addr %s187, 32
      %s192 = sadd.s32 %s190, %s191
      %s193 = smul.addr %s192, 4
      %s194 = scalar_lea.vmem %s3, %s193
      %s195 = smul.u32 8, %s19
      %s197 = smul.u32 %s19, 192
      %s198 = sshra.s32 %s197, 3
      %s199 = sand.u32 %s197, 7
      %s200 = smul.addr %s198, 4
      %s201 = scalar_lea.vmem %s184, %s200
      %v202 = vld [vmem:[%s201] sm:$0xf]
      %v203 = vld [vmem:[%s201 + $0x4] sm:$0xf]
      %v204 = vld [vmem:[%s201 + $0x8] sm:$0xf]
      %v205 = vld [vmem:[%s201 + $0xc] sm:$0xf]
      %v206 = vld [vmem:[%s201 + $0x10] sm:$0xf]
      %v207 = vld [vmem:[%s201 + $0x14] sm:$0xf]
      %v208 = vld [vmem:[%s201 + $0x18] sm:$0xf]
      %v209 = vld [vmem:[%s201 + $0x1c] sm:$0xf]
      %v210 = vld [vmem:[%s201 + $0x20] sm:$0xf]
      %v211 = vld [vmem:[%s201 + $0x24] sm:$0xf]
      %v212 = vld [vmem:[%s201 + $0x28] sm:$0xf]
      %v213 = vld [vmem:[%s201 + $0x2c] sm:$0xf]
      %v214 = vld [vmem:[%s201 + $0x30] sm:$0xf]
      %v215 = vld [vmem:[%s201 + $0x34] sm:$0xf]
      %v216 = vld [vmem:[%s201 + $0x38] sm:$0xf]
      %v217 = vld [vmem:[%s201 + $0x3c] sm:$0xf]
      %v218 = vld [vmem:[%s201 + $0x40] sm:$0xf]
      %v219 = vld [vmem:[%s201 + $0x44] sm:$0xf]
      %v220 = vld [vmem:[%s201 + $0x48] sm:$0xf]
      %v221 = vld [vmem:[%s201 + $0x4c] sm:$0xf]
      %v222 = vld [vmem:[%s201 + $0x50] sm:$0xf]
      %v223 = vld [vmem:[%s201 + $0x54] sm:$0xf]
      %v224 = vld [vmem:[%s201 + $0x58] sm:$0xf]
      %v225 = vld [vmem:[%s201 + $0x5c] sm:$0xf]
      %v226 = vld [vmem:[%s201 + $0x60] sm:$0xf]
      %v227 = vld [vmem:[%s1] sm:$0x3]
      %s228 = scalar_lea.vmem %s1, 2
      %v229 = vld [vmem:[%s228] sm:$0x3]
      %v255 = vunpack.c.l.b16 %v202
      %v256 = vunpack.c.l.b16 %v203
      %v257 = vunpack.c.l.b16 %v204
      %v258 = vunpack.c.l.b16 %v205
      %v259 = vunpack.c.l.b16 %v206
      %v260 = vunpack.c.l.b16 %v207
      %v261 = vunpack.c.l.b16 %v208
      %v262 = vunpack.c.l.b16 %v209
      %v263 = vunpack.c.l.b16 %v210
      %v264 = vunpack.c.l.b16 %v211
      %v265 = vunpack.c.l.b16 %v212
      %v266 = vunpack.c.l.b16 %v213
      %v267 = vunpack.c.l.b16 %v214
      %v268 = vunpack.c.l.b16 %v215
      %v269 = vunpack.c.l.b16 %v216
      %v270 = vunpack.c.l.b16 %v217
      %v271 = vunpack.c.l.b16 %v218
      %v272 = vunpack.c.l.b16 %v219
      %v273 = vunpack.c.l.b16 %v220
      %v274 = vunpack.c.l.b16 %v221
      %v275 = vunpack.c.l.b16 %v222
      %v276 = vunpack.c.l.b16 %v223
      %v277 = vunpack.c.l.b16 %v224
      %v278 = vunpack.c.l.b16 %v225
      %v279 = vunpack.c.l.b16 %v226
      %v280 = vpack.c.b16 %v256, %v255
      %v281 = vpack.c.b16 %v258, %v257
      %v282 = vpack.c.b16 %v260, %v259
      %v283 = vpack.c.b16 %v262, %v261
      %v284 = vpack.c.b16 %v264, %v263
      %v285 = vpack.c.b16 %v266, %v265
      %v286 = vpack.c.b16 %v268, %v267
      %v287 = vpack.c.b16 %v270, %v269
      %v288 = vpack.c.b16 %v272, %v271
      %v289 = vpack.c.b16 %v274, %v273
      %v290 = vpack.c.b16 %v276, %v275
      %v291 = vpack.c.b16 %v278, %v277
      %v292 = vpack.c.b16 %v279, %v279
      %vm293 = vsmask.f32 7424
      %v295 = vshrl.u32 %v280, 16
      %v297 = vshll.u32 %v280, 16
      %v299 = vrot.slane %v297, 1
      %v300 = vor.u32 %v295, %v299
      %v302 = vshll.u32 %v281, 16
      %v304 = vrot.slane %v302, 1
      %v305 = vsel %vm293, %v300, %v304
      %v306 = vshrl.u32 %v281, 16
      %v308 = vor.u32 %v306, %v304
      %v310 = vshll.u32 %v282, 16
      %v312 = vrot.slane %v310, 1
      %v313 = vsel %vm293, %v308, %v312
      %v314 = vshrl.u32 %v282, 16
      %v316 = vor.u32 %v314, %v312
      %v318 = vshll.u32 %v283, 16
      %v320 = vrot.slane %v318, 1
      %v321 = vsel %vm293, %v316, %v320
      %v322 = vshrl.u32 %v283, 16
      %v324 = vor.u32 %v322, %v320
      %v326 = vshll.u32 %v284, 16
      %v328 = vrot.slane %v326, 1
      %v329 = vsel %vm293, %v324, %v328
      %v330 = vshrl.u32 %v284, 16
      %v332 = vor.u32 %v330, %v328
      %v334 = vshll.u32 %v285, 16
      %v336 = vrot.slane %v334, 1
      %v337 = vsel %vm293, %v332, %v336
      %v338 = vshrl.u32 %v285, 16
      %v340 = vor.u32 %v338, %v336
      %v342 = vshll.u32 %v286, 16
      %v344 = vrot.slane %v342, 1
      %v345 = vsel %vm293, %v340, %v344
      %v346 = vshrl.u32 %v286, 16
      %v348 = vor.u32 %v346, %v344
      %v350 = vshll.u32 %v287, 16
      %v352 = vrot.slane %v350, 1
      %v353 = vsel %vm293, %v348, %v352
      %v354 = vshrl.u32 %v287, 16
      %v356 = vor.u32 %v354, %v352
      %v358 = vshll.u32 %v288, 16
      %v360 = vrot.slane %v358, 1
      %v361 = vsel %vm293, %v356, %v360
      %v362 = vshrl.u32 %v288, 16
      %v364 = vor.u32 %v362, %v360
      %v366 = vshll.u32 %v289, 16
      %v368 = vrot.slane %v366, 1
      %v369 = vsel %vm293, %v364, %v368
      %v370 = vshrl.u32 %v289, 16
      %v372 = vor.u32 %v370, %v368
      %v374 = vshll.u32 %v290, 16
      %v376 = vrot.slane %v374, 1
      %v377 = vsel %vm293, %v372, %v376
      %v378 = vshrl.u32 %v290, 16
      %v380 = vor.u32 %v378, %v376
      %v382 = vshll.u32 %v291, 16
      %v384 = vrot.slane %v382, 1
      %v385 = vsel %vm293, %v380, %v384
      %v386 = vshrl.u32 %v291, 16
      %v388 = vor.u32 %v386, %v384
      %v390 = vshll.u32 %v292, 16
      %v392 = vrot.slane %v390, 1
      %v393 = vsel %vm293, %v388, %v392
      %vm394 = vcmask 31744
      %v396 = vsel %vm394, %v305, 0
      %v399 = vsel %vm394, %v313, 0
      %v402 = vsel %vm394, %v321, 0
      %v405 = vsel %vm394, %v329, 0
      %v408 = vsel %vm394, %v337, 0
      %v411 = vsel %vm394, %v345, 0
      %v414 = vsel %vm394, %v353, 0
      %v417 = vsel %vm394, %v361, 0
      %v420 = vsel %vm394, %v369, 0
      %v423 = vsel %vm394, %v377, 0
      %v426 = vsel %vm394, %v385, 0
      %v429 = vsel %vm394, %v393, 0
      %vm431 = vcmask 1041408
      %v433 = vsel %vm431, %v229, 0
      %435 = vmatprep.subr.bf16.mxu0 0
      %436 = vmatpush1.bf16.msra.mxu0 %v433
      %437 = vmatprep.subr.bf16.mxu0 0
      %438 = vmatpush1.bf16.msra.mxu0 0
      %439 = vmatprep.subr.bf16.mxu0 0
      %440 = vmatpush1.bf16.msra.mxu0 0
      %441 = vmatprep.subr.bf16.mxu0 0
      %442 = vmatpush1.bf16.msra.mxu0 0
      %443 = vmatprep.subr.bf16.mxu0 0
      %444 = vmatpush1.bf16.msra.mxu0 0
      %445 = vmatprep.subr.bf16.mxu0 0
      %446 = vmatpush1.bf16.msra.mxu0 0
      %447 = vmatprep.subr.bf16.mxu0 0
      %448 = vmatpush1.bf16.msra.mxu0 0
      %449 = vmatprep.subr.bf16.mxu0 0
      %450 = vmatpush1.bf16.msra.mxu0 0
      %451 = vmatprep.subr.bf16.mxu0 0
      %452 = vmatpush1.bf16.msra.mxu0 0
      %453 = vmatprep.subr.bf16.mxu0 0
      %454 = vmatpush1.bf16.msra.mxu0 0
      %455 = vmatprep.subr.bf16.mxu0 0
      %456 = vmatpush1.bf16.msra.mxu0 0
      %457 = vmatprep.subr.bf16.mxu0 0
      %458 = vmatpush1.bf16.msra.mxu0 0
      %459 = vmatprep.subr.bf16.mxu0 0
      %460 = vmatpush1.bf16.msra.mxu0 0
      %461 = vmatprep.subr.bf16.mxu0 0
      %462 = vmatpush1.bf16.msra.mxu0 0
      %463 = vmatprep.subr.bf16.mxu0 0
      %464 = vmatpush1.bf16.msra.mxu0 0
      %465 = vmatprep.subr.bf16.mxu0 0
      %466 = vmatpush1.bf16.msra.mxu0 0
      %467 = vmatprep.mubr.bf16.mxu0 0
      %468 = vmatmul.mubr.bf16.gmra.mrb[0].mxu0 %v396
      %v469 = vpop.f32.mrb[0].mxu0
      %v470 = vadd.f32 0.0, %v469
      %v471 = vpop.f32.mrb[0].mxu0
      %v472 = vpop.f32.mrb[0].mxu0
      %v473 = vadd.f32 0.0, %v472
      %v474 = vpop.f32.mrb[0].mxu0
      %475 = vmatprep.mubr.bf16.mxu0 0
      %476 = vmatmul.mubr.bf16.gmra.mrb[0].mxu0 %v399
      %v477 = vpop.f32.mrb[0].mxu0
      %v478 = vpop.f32.mrb[0].mxu0
      %v479 = vpop.f32.mrb[0].mxu0
      %v480 = vadd.f32 0.0, %v479
      %v481 = vpop.f32.mrb[0].mxu0
      %482 = vmatprep.mubr.bf16.mxu0 0
      %483 = vmatmul.mubr.bf16.gmra.mrb[0].mxu0 %v402
      %v484 = vpop.f32.mrb[0].mxu0
      %v485 = vadd.f32 0.0, %v484
      %v486 = vpop.f32.mrb[0].mxu0
      %v487 = vpop.f32.mrb[0].mxu0
      %v488 = vpop.f32.mrb[0].mxu0
      %489 = vmatprep.mubr.bf16.mxu0 0
      %490 = vmatmul.mubr.bf16.gmra.mrb[0].mxu0 %v405
      %v491 = vpop.f32.mrb[0].mxu0
      %v492 = vadd.f32 0.0, %v491
      %v493 = vpop.f32.mrb[0].mxu0
      %v494 = vpop.f32.mrb[0].mxu0
      %v495 = vadd.f32 0.0, %v494
      %v496 = vpop.f32.mrb[0].mxu0
      %497 = vmatprep.mubr.bf16.mxu0 0
      %498 = vmatmul.mubr.bf16.gmra.mrb[0].mxu0 %v408
      %v499 = vpop.f32.mrb[0].mxu0
      %v500 = vpop.f32.mrb[0].mxu0
      %v501 = vpop.f32.mrb[0].mxu0
      %v502 = vadd.f32 0.0, %v501
      %v503 = vpop.f32.mrb[0].mxu0
      %504 = vmatprep.mubr.bf16.mxu0 0
      %505 = vmatmul.mubr.bf16.gmra.mrb[0].mxu0 %v411
      %v506 = vpop.f32.mrb[0].mxu0
      %v507 = vadd.f32 0.0, %v506
      %v508 = vpop.f32.mrb[0].mxu0
      %v509 = vpop.f32.mrb[0].mxu0
      %v510 = vpop.f32.mrb[0].mxu0
      %511 = vmatprep.mubr.bf16.mxu0 0
      %512 = vmatmul.mubr.bf16.gmra.mrb[0].mxu0 %v414
      %v513 = vpop.f32.mrb[0].mxu0
      %v514 = vadd.f32 0.0, %v513
      %v515 = vpop.f32.mrb[0].mxu0
      %v516 = vpop.f32.mrb[0].mxu0
      %v517 = vadd.f32 0.0, %v516
      %v518 = vpop.f32.mrb[0].mxu0
      %519 = vmatprep.mubr.bf16.mxu0 0
      %520 = vmatmul.mubr.bf16.gmra.mrb[0].mxu0 %v417
      %v521 = vpop.f32.mrb[0].mxu0
      %v522 = vpop.f32.mrb[0].mxu0
      %v523 = vpop.f32.mrb[0].mxu0
      %v524 = vadd.f32 0.0, %v523
      %v525 = vpop.f32.mrb[0].mxu0
      %526 = vmatprep.mubr.bf16.mxu0 0
      %527 = vmatmul.mubr.bf16.gmra.mrb[0].mxu0 %v420
      %v528 = vpop.f32.mrb[0].mxu0
      %v529 = vadd.f32 0.0, %v528
      %v530 = vpop.f32.mrb[0].mxu0
      %v531 = vpop.f32.mrb[0].mxu0
      %v532 = vpop.f32.mrb[0].mxu0
      %533 = vmatprep.mubr.bf16.mxu0 0
      %534 = vmatmul.mubr.bf16.gmra.mrb[0].mxu0 %v423
      %v535 = vpop.f32.mrb[0].mxu0
      %v536 = vadd.f32 0.0, %v535
      %v537 = vpop.f32.mrb[0].mxu0
      %v538 = vpop.f32.mrb[0].mxu0
      %v539 = vadd.f32 0.0, %v538
      %v540 = vpop.f32.mrb[0].mxu0
      %541 = vmatprep.mubr.bf16.mxu0 0
      %542 = vmatmul.mubr.bf16.gmra.mrb[0].mxu0 %v426
      %v543 = vpop.f32.mrb[0].mxu0
      %v544 = vpop.f32.mrb[0].mxu0
      %v545 = vpop.f32.mrb[0].mxu0
      %v546 = vadd.f32 0.0, %v545
      %v547 = vpop.f32.mrb[0].mxu0
      %548 = vmatprep.mubr.bf16.mxu0 0
      %549 = vmatmul.mubr.bf16.gmra.mrb[0].mxu0 %v429
      %v550 = vpop.f32.mrb[0].mxu0
      %v551 = vadd.f32 0.0, %v550
      %v552 = vpop.f32.mrb[0].mxu0
      %v553 = vpop.f32.mrb[0].mxu0
      %v554 = vpop.f32.mrb[0].mxu0
      %555 = vdwg.mxu0
      %v556 = vsel %vm394, %v280, 0
      %v558 = vsel %vm394, %v281, 0
      %v560 = vsel %vm394, %v282, 0
      %v562 = vsel %vm394, %v283, 0
      %v564 = vsel %vm394, %v284, 0
      %v566 = vsel %vm394, %v285, 0
      %v568 = vsel %vm394, %v286, 0
      %v570 = vsel %vm394, %v287, 0
      %v572 = vsel %vm394, %v288, 0
      %v574 = vsel %vm394, %v289, 0
      %v576 = vsel %vm394, %v290, 0
      %v578 = vsel %vm394, %v291, 0
      %v581 = vsel %vm431, %v227, 0
      %583 = vmatprep.subr.bf16.mxu0 0
      %584 = vmatpush1.bf16.msra.mxu0 %v581
      %585 = vmatprep.subr.bf16.mxu0 0
      %586 = vmatpush1.bf16.msra.mxu0 0
      %587 = vmatprep.subr.bf16.mxu0 0
      %588 = vmatpush1.bf16.msra.mxu0 0
      %589 = vmatprep.subr.bf16.mxu0 0
      %590 = vmatpush1.bf16.msra.mxu0 0
      %591 = vmatprep.subr.bf16.mxu0 0
      %592 = vmatpush1.bf16.msra.mxu0 0
      %593 = vmatprep.subr.bf16.mxu0 0
      %594 = vmatpush1.bf16.msra.mxu0 0
      %595 = vmatprep.subr.bf16.mxu0 0
      %596 = vmatpush1.bf16.msra.mxu0 0
      %597 = vmatprep.subr.bf16.mxu0 0
      %598 = vmatpush1.bf16.msra.mxu0 0
      %599 = vmatprep.subr.bf16.mxu0 0
      %600 = vmatpush1.bf16.msra.mxu0 0
      %601 = vmatprep.subr.bf16.mxu0 0
      %602 = vmatpush1.bf16.msra.mxu0 0
      %603 = vmatprep.subr.bf16.mxu0 0
      %604 = vmatpush1.bf16.msra.mxu0 0
      %605 = vmatprep.subr.bf16.mxu0 0
      %606 = vmatpush1.bf16.msra.mxu0 0
      %607 = vmatprep.subr.bf16.mxu0 0
      %608 = vmatpush1.bf16.msra.mxu0 0
      %609 = vmatprep.subr.bf16.mxu0 0
      %610 = vmatpush1.bf16.msra.mxu0 0
      %611 = vmatprep.subr.bf16.mxu0 0
      %612 = vmatpush1.bf16.msra.mxu0 0
      %613 = vmatprep.subr.bf16.mxu0 0
      %614 = vmatpush1.bf16.msra.mxu0 0
      %615 = vmatprep.mubr.bf16.mxu0 0
      %616 = vmatmul.mubr.bf16.gmra.mrb[0].mxu0 %v556
      %v617 = vpop.f32.mrb[0].mxu0
      %v618 = vadd.f32 %v470, %v617
      %v619 = vpop.f32.mrb[0].mxu0
      %v620 = vpop.f32.mrb[0].mxu0
      %v621 = vadd.f32 %v473, %v620
      %v622 = vpop.f32.mrb[0].mxu0
      %623 = vmatprep.mubr.bf16.mxu0 0
      %624 = vmatmul.mubr.bf16.gmra.mrb[0].mxu0 %v558
      %v625 = vpop.f32.mrb[0].mxu0
      %v626 = vpop.f32.mrb[0].mxu0
      %v627 = vpop.f32.mrb[0].mxu0
      %v628 = vadd.f32 %v480, %v627
      %v629 = vpop.f32.mrb[0].mxu0
      %630 = vmatprep.mubr.bf16.mxu0 0
      %631 = vmatmul.mubr.bf16.gmra.mrb[0].mxu0 %v560
      %v632 = vpop.f32.mrb[0].mxu0
      %v633 = vadd.f32 %v485, %v632
      %v634 = vpop.f32.mrb[0].mxu0
      %v635 = vpop.f32.mrb[0].mxu0
      %v636 = vpop.f32.mrb[0].mxu0
      %637 = vmatprep.mubr.bf16.mxu0 0
      %638 = vmatmul.mubr.bf16.gmra.mrb[0].mxu0 %v562
      %v639 = vpop.f32.mrb[0].mxu0
      %v640 = vadd.f32 %v492, %v639
      %v641 = vpop.f32.mrb[0].mxu0
      %v642 = vpop.f32.mrb[0].mxu0
      %v643 = vadd.f32 %v495, %v642
      %v644 = vpop.f32.mrb[0].mxu0
      %645 = vmatprep.mubr.bf16.mxu0 0
      %646 = vmatmul.mubr.bf16.gmra.mrb[0].mxu0 %v564
      %v647 = vpop.f32.mrb[0].mxu0
      %v648 = vpop.f32.mrb[0].mxu0
      %v649 = vpop.f32.mrb[0].mxu0
      %v650 = vadd.f32 %v502, %v649
      %v651 = vpop.f32.mrb[0].mxu0
      %652 = vmatprep.mubr.bf16.mxu0 0
      %653 = vmatmul.mubr.bf16.gmra.mrb[0].mxu0 %v566
      %v654 = vpop.f32.mrb[0].mxu0
      %v655 = vadd.f32 %v507, %v654
      %v656 = vpop.f32.mrb[0].mxu0
      %v657 = vpop.f32.mrb[0].mxu0
      %v658 = vpop.f32.mrb[0].mxu0
      %659 = vmatprep.mubr.bf16.mxu0 0
      %660 = vmatmul.mubr.bf16.gmra.mrb[0].mxu0 %v568
      %v661 = vpop.f32.mrb[0].mxu0
      %v662 = vadd.f32 %v514, %v661
      %v663 = vpop.f32.mrb[0].mxu0
      %v664 = vpop.f32.mrb[0].mxu0
      %v665 = vadd.f32 %v517, %v664
      %v666 = vpop.f32.mrb[0].mxu0
      %667 = vmatprep.mubr.bf16.mxu0 0
      %668 = vmatmul.mubr.bf16.gmra.mrb[0].mxu0 %v570
      %v669 = vpop.f32.mrb[0].mxu0
      %v670 = vpop.f32.mrb[0].mxu0
      %v671 = vpop.f32.mrb[0].mxu0
      %v672 = vadd.f32 %v524, %v671
      %v673 = vpop.f32.mrb[0].mxu0
      %674 = vmatprep.mubr.bf16.mxu0 0
      %675 = vmatmul.mubr.bf16.gmra.mrb[0].mxu0 %v572
      %v676 = vpop.f32.mrb[0].mxu0
      %v677 = vadd.f32 %v529, %v676
      %v678 = vpop.f32.mrb[0].mxu0
      %v679 = vpop.f32.mrb[0].mxu0
      %v680 = vpop.f32.mrb[0].mxu0
      %681 = vmatprep.mubr.bf16.mxu0 0
      %682 = vmatmul.mubr.bf16.gmra.mrb[0].mxu0 %v574
      %v683 = vpop.f32.mrb[0].mxu0
      %v684 = vadd.f32 %v536, %v683
      %v685 = vpop.f32.mrb[0].mxu0
      %v686 = vpop.f32.mrb[0].mxu0
      %v687 = vadd.f32 %v539, %v686
      %v688 = vpop.f32.mrb[0].mxu0
      %689 = vmatprep.mubr.bf16.mxu0 0
      %690 = vmatmul.mubr.bf16.gmra.mrb[0].mxu0 %v576
      %v691 = vpop.f32.mrb[0].mxu0
      %v692 = vpop.f32.mrb[0].mxu0
      %v693 = vpop.f32.mrb[0].mxu0
      %v694 = vadd.f32 %v546, %v693
      %v695 = vpop.f32.mrb[0].mxu0
      %696 = vmatprep.mubr.bf16.mxu0 0
      %697 = vmatmul.mubr.bf16.gmra.mrb[0].mxu0 %v578
      %v698 = vpop.f32.mrb[0].mxu0
      %v699 = vadd.f32 %v551, %v698
      %v700 = vpop.f32.mrb[0].mxu0
      %v701 = vpop.f32.mrb[0].mxu0
      %v702 = vpop.f32.mrb[0].mxu0
      %703 = vdwg.mxu0
      %s704 = scalar_lea.vmem %s1, 4
      %v705 = vld [vmem:[%s704] sm:$0x3]
      %vm706 = vcmask 1046528
      %v707 = vrot.slane %v280, 1
      %v708 = vrot.slane %v281, 1
      %v709 = vsel %vm706, %v707, %v708
      %v710 = vrot.slane %v282, 1
      %v711 = vsel %vm706, %v708, %v710
      %v712 = vrot.slane %v283, 1
      %v713 = vsel %vm706, %v710, %v712
      %v714 = vrot.slane %v284, 1
      %v715 = vsel %vm706, %v712, %v714
      %v716 = vrot.slane %v285, 1
      %v717 = vsel %vm706, %v714, %v716
      %v718 = vrot.slane %v286, 1
      %v719 = vsel %vm706, %v716, %v718
      %v720 = vrot.slane %v287, 1
      %v721 = vsel %vm706, %v718, %v720
      %v722 = vrot.slane %v288, 1
      %v723 = vsel %vm706, %v720, %v722
      %v724 = vrot.slane %v289, 1
      %v725 = vsel %vm706, %v722, %v724
      %v726 = vrot.slane %v290, 1
      %v727 = vsel %vm706, %v724, %v726
      %v728 = vrot.slane %v291, 1
      %v729 = vsel %vm706, %v726, %v728
      %v730 = vrot.slane %v292, 1
      %v731 = vsel %vm706, %v728, %v730
      %v733 = vsel %vm394, %v709, 0
      %v736 = vsel %vm394, %v711, 0
      %v739 = vsel %vm394, %v713, 0
      %v742 = vsel %vm394, %v715, 0
      %v745 = vsel %vm394, %v717, 0
      %v748 = vsel %vm394, %v719, 0
      %v751 = vsel %vm394, %v721, 0
      %v754 = vsel %vm394, %v723, 0
      %v757 = vsel %vm394, %v725, 0
      %v760 = vsel %vm394, %v727, 0
      %v763 = vsel %vm394, %v729, 0
      %v766 = vsel %vm394, %v731, 0
      %v769 = vsel %vm431, %v705, 0
      %771 = vmatprep.subr.bf16.mxu0 0
      %772 = vmatpush1.bf16.msra.mxu0 %v769
      %773 = vmatprep.subr.bf16.mxu0 0
      %774 = vmatpush1.bf16.msra.mxu0 0
      %775 = vmatprep.subr.bf16.mxu0 0
      %776 = vmatpush1.bf16.msra.mxu0 0
      %777 = vmatprep.subr.bf16.mxu0 0
      %778 = vmatpush1.bf16.msra.mxu0 0
      %779 = vmatprep.subr.bf16.mxu0 0
      %780 = vmatpush1.bf16.msra.mxu0 0
      %781 = vmatprep.subr.bf16.mxu0 0
      %782 = vmatpush1.bf16.msra.mxu0 0
      %783 = vmatprep.subr.bf16.mxu0 0
      %784 = vmatpush1.bf16.msra.mxu0 0
      %785 = vmatprep.subr.bf16.mxu0 0
      %786 = vmatpush1.bf16.msra.mxu0 0
      %787 = vmatprep.subr.bf16.mxu0 0
      %788 = vmatpush1.bf16.msra.mxu0 0
      %789 = vmatprep.subr.bf16.mxu0 0
      %790 = vmatpush1.bf16.msra.mxu0 0
      %791 = vmatprep.subr.bf16.mxu0 0
      %792 = vmatpush1.bf16.msra.mxu0 0
      %793 = vmatprep.subr.bf16.mxu0 0
      %794 = vmatpush1.bf16.msra.mxu0 0
      %795 = vmatprep.subr.bf16.mxu0 0
      %796 = vmatpush1.bf16.msra.mxu0 0
      %797 = vmatprep.subr.bf16.mxu0 0
      %798 = vmatpush1.bf16.msra.mxu0 0
      %799 = vmatprep.subr.bf16.mxu0 0
      %800 = vmatpush1.bf16.msra.mxu0 0
      %801 = vmatprep.subr.bf16.mxu0 0
      %802 = vmatpush1.bf16.msra.mxu0 0
      %803 = vmatprep.mubr.bf16.mxu0 0
      %804 = vmatmul.mubr.bf16.gmra.mrb[0].mxu0 %v733
      %v805 = vpop.f32.mrb[0].mxu0
      %v806 = vadd.f32 0.0, %v805
      %v807 = vpop.f32.mrb[0].mxu0
      %v808 = vpop.f32.mrb[0].mxu0
      %v809 = vadd.f32 0.0, %v808
      %v810 = vpop.f32.mrb[0].mxu0
      %811 = vmatprep.mubr.bf16.mxu0 0
      %812 = vmatmul.mubr.bf16.gmra.mrb[0].mxu0 %v736
      %v813 = vpop.f32.mrb[0].mxu0
      %v814 = vpop.f32.mrb[0].mxu0
      %v815 = vpop.f32.mrb[0].mxu0
      %v816 = vadd.f32 0.0, %v815
      %v817 = vpop.f32.mrb[0].mxu0
      %818 = vmatprep.mubr.bf16.mxu0 0
      %819 = vmatmul.mubr.bf16.gmra.mrb[0].mxu0 %v739
      %v820 = vpop.f32.mrb[0].mxu0
      %v821 = vadd.f32 0.0, %v820
      %v822 = vpop.f32.mrb[0].mxu0
      %v823 = vpop.f32.mrb[0].mxu0
      %v824 = vpop.f32.mrb[0].mxu0
      %825 = vmatprep.mubr.bf16.mxu0 0
      %826 = vmatmul.mubr.bf16.gmra.mrb[0].mxu0 %v742
      %v827 = vpop.f32.mrb[0].mxu0
      %v828 = vadd.f32 0.0, %v827
      %v829 = vpop.f32.mrb[0].mxu0
      %v830 = vpop.f32.mrb[0].mxu0
      %v831 = vadd.f32 0.0, %v830
      %v832 = vpop.f32.mrb[0].mxu0
      %833 = vmatprep.mubr.bf16.mxu0 0
      %834 = vmatmul.mubr.bf16.gmra.mrb[0].mxu0 %v745
      %v835 = vpop.f32.mrb[0].mxu0
      %v836 = vpop.f32.mrb[0].mxu0
      %v837 = vpop.f32.mrb[0].mxu0
      %v838 = vadd.f32 0.0, %v837
      %v839 = vpop.f32.mrb[0].mxu0
      %840 = vmatprep.mubr.bf16.mxu0 0
      %841 = vmatmul.mubr.bf16.gmra.mrb[0].mxu0 %v748
      %v842 = vpop.f32.mrb[0].mxu0
      %v843 = vadd.f32 0.0, %v842
      %v844 = vpop.f32.mrb[0].mxu0
      %v845 = vpop.f32.mrb[0].mxu0
      %v846 = vpop.f32.mrb[0].mxu0
      %847 = vmatprep.mubr.bf16.mxu0 0
      %848 = vmatmul.mubr.bf16.gmra.mrb[0].mxu0 %v751
      %v849 = vpop.f32.mrb[0].mxu0
      %v850 = vadd.f32 0.0, %v849
      %v851 = vpop.f32.mrb[0].mxu0
      %v852 = vpop.f32.mrb[0].mxu0
      %v853 = vadd.f32 0.0, %v852
      %v854 = vpop.f32.mrb[0].mxu0
      %855 = vmatprep.mubr.bf16.mxu0 0
      %856 = vmatmul.mubr.bf16.gmra.mrb[0].mxu0 %v754
      %v857 = vpop.f32.mrb[0].mxu0
      %v858 = vpop.f32.mrb[0].mxu0
      %v859 = vpop.f32.mrb[0].mxu0
      %v860 = vadd.f32 0.0, %v859
      %v861 = vpop.f32.mrb[0].mxu0
      %862 = vmatprep.mubr.bf16.mxu0 0
      %863 = vmatmul.mubr.bf16.gmra.mrb[0].mxu0 %v757
      %v864 = vpop.f32.mrb[0].mxu0
      %v865 = vadd.f32 0.0, %v864
      %v866 = vpop.f32.mrb[0].mxu0
      %v867 = vpop.f32.mrb[0].mxu0
      %v868 = vpop.f32.mrb[0].mxu0
      %869 = vmatprep.mubr.bf16.mxu0 0
      %870 = vmatmul.mubr.bf16.gmra.mrb[0].mxu0 %v760
      %v871 = vpop.f32.mrb[0].mxu0
      %v872 = vadd.f32 0.0, %v871
      %v873 = vpop.f32.mrb[0].mxu0
      %v874 = vpop.f32.mrb[0].mxu0
      %v875 = vadd.f32 0.0, %v874
      %v876 = vpop.f32.mrb[0].mxu0
      %877 = vmatprep.mubr.bf16.mxu0 0
      %878 = vmatmul.mubr.bf16.gmra.mrb[0].mxu0 %v763
      %v879 = vpop.f32.mrb[0].mxu0
      %v880 = vpop.f32.mrb[0].mxu0
      %v881 = vpop.f32.mrb[0].mxu0
      %v882 = vadd.f32 0.0, %v881
      %v883 = vpop.f32.mrb[0].mxu0
      %884 = vmatprep.mubr.bf16.mxu0 0
      %885 = vmatmul.mubr.bf16.gmra.mrb[0].mxu0 %v766
      %v886 = vpop.f32.mrb[0].mxu0
      %v887 = vadd.f32 0.0, %v886
      %v888 = vpop.f32.mrb[0].mxu0
      %v889 = vpop.f32.mrb[0].mxu0
      %v890 = vpop.f32.mrb[0].mxu0
      %891 = vdwg.mxu0
      %v892 = vadd.f32 %v618, %v806
      %v893 = vadd.f32 %v621, %v809
      %v894 = vadd.f32 %v628, %v816
      %v895 = vadd.f32 %v633, %v821
      %v896 = vadd.f32 %v640, %v828
      %v897 = vadd.f32 %v643, %v831
      %v898 = vadd.f32 %v650, %v838
      %v899 = vadd.f32 %v655, %v843
      %v900 = vadd.f32 %v662, %v850
      %v901 = vadd.f32 %v665, %v853
      %v902 = vadd.f32 %v672, %v860
      %v903 = vadd.f32 %v677, %v865
      %v904 = vadd.f32 %v684, %v872
      %v905 = vadd.f32 %v687, %v875
      %v906 = vadd.f32 %v694, %v882
      %v907 = vadd.f32 %v699, %v887
      %s908 = sadd.s32 %s197, 24
      %s909 = sshra.s32 %s908, 3
      %s910 = sand.u32 %s908, 7
      %s911 = smul.addr %s909, 4
      %s912 = scalar_lea.vmem %s184, %s911
      %v913 = vld [vmem:[%s912] sm:$0xf]
      %v914 = vld [vmem:[%s912 + $0x4] sm:$0xf]
      %v915 = vld [vmem:[%s912 + $0x8] sm:$0xf]
      %v916 = vld [vmem:[%s912 + $0xc] sm:$0xf]
      %v917 = vld [vmem:[%s912 + $0x10] sm:$0xf]
      %v918 = vld [vmem:[%s912 + $0x14] sm:$0xf]
      %v919 = vld [vmem:[%s912 + $0x18] sm:$0xf]
      %v920 = vld [vmem:[%s912 + $0x1c] sm:$0xf]
      %v921 = vld [vmem:[%s912 + $0x20] sm:$0xf]
      %v922 = vld [vmem:[%s912 + $0x24] sm:$0xf]
      %v923 = vld [vmem:[%s912 + $0x28] sm:$0xf]
      %v924 = vld [vmem:[%s912 + $0x2c] sm:$0xf]
      %v925 = vld [vmem:[%s912 + $0x30] sm:$0xf]
      %v926 = vld [vmem:[%s912 + $0x34] sm:$0xf]
      %v927 = vld [vmem:[%s912 + $0x38] sm:$0xf]
      %v928 = vld [vmem:[%s912 + $0x3c] sm:$0xf]
      %v929 = vld [vmem:[%s912 + $0x40] sm:$0xf]
      %v930 = vld [vmem:[%s912 + $0x44] sm:$0xf]
      %v931 = vld [vmem:[%s912 + $0x48] sm:$0xf]
      %v932 = vld [vmem:[%s912 + $0x4c] sm:$0xf]
      %v933 = vld [vmem:[%s912 + $0x50] sm:$0xf]
      %v934 = vld [vmem:[%s912 + $0x54] sm:$0xf]
      %v935 = vld [vmem:[%s912 + $0x58] sm:$0xf]
      %v936 = vld [vmem:[%s912 + $0x5c] sm:$0xf]
      %v937 = vld [vmem:[%s912 + $0x60] sm:$0xf]
      %s938 = scalar_lea.vmem %s1, 6
      %v939 = vld [vmem:[%s938] sm:$0x3]
      %v964 = vunpack.c.l.b16 %v913
      %v965 = vunpack.c.l.b16 %v914
      %v966 = vunpack.c.l.b16 %v915
      %v967 = vunpack.c.l.b16 %v916
      %v968 = vunpack.c.l.b16 %v917
      %v969 = vunpack.c.l.b16 %v918
      %v970 = vunpack.c.l.b16 %v919
      %v971 = vunpack.c.l.b16 %v920
      %v972 = vunpack.c.l.b16 %v921
      %v973 = vunpack.c.l.b16 %v922
      %v974 = vunpack.c.l.b16 %v923
      %v975 = vunpack.c.l.b16 %v924
      %v976 = vunpack.c.l.b16 %v925
      %v977 = vunpack.c.l.b16 %v926
      %v978 = vunpack.c.l.b16 %v927
      %v979 = vunpack.c.l.b16 %v928
      %v980 = vunpack.c.l.b16 %v929
      %v981 = vunpack.c.l.b16 %v930
      %v982 = vunpack.c.l.b16 %v931
      %v983 = vunpack.c.l.b16 %v932
      %v984 = vunpack.c.l.b16 %v933
      %v985 = vunpack.c.l.b16 %v934
      %v986 = vunpack.c.l.b16 %v935
      %v987 = vunpack.c.l.b16 %v936
      %v988 = vpack.c.b16 %v965, %v964
      %v989 = vpack.c.b16 %v967, %v966
      %v990 = vpack.c.b16 %v969, %v968
      %v991 = vpack.c.b16 %v971, %v970
      %v992 = vpack.c.b16 %v973, %v972
      %v993 = vpack.c.b16 %v975, %v974
      %v994 = vpack.c.b16 %v977, %v976
      %v995 = vpack.c.b16 %v979, %v978
      %v996 = vpack.c.b16 %v981, %v980
      %v997 = vpack.c.b16 %v983, %v982
      %v998 = vpack.c.b16 %v985, %v984
      %v999 = vpack.c.b16 %v987, %v986
      %v1001 = vsel %vm394, %v988, 0
      %v1004 = vsel %vm394, %v989, 0
      %v1007 = vsel %vm394, %v990, 0
      %v1010 = vsel %vm394, %v991, 0
      %v1013 = vsel %vm394, %v992, 0
      %v1016 = vsel %vm394, %v993, 0
      %v1019 = vsel %vm394, %v994, 0
      %v1022 = vsel %vm394, %v995, 0
      %v1025 = vsel %vm394, %v996, 0
      %v1028 = vsel %vm394, %v997, 0
      %v1031 = vsel %vm394, %v998, 0
      %v1034 = vsel %vm394, %v999, 0
      %v1037 = vsel %vm431, %v939, 0
      %1039 = vmatprep.subr.bf16.mxu0 0
      %1040 = vmatpush1.bf16.msra.mxu0 %v1037
      %1041 = vmatprep.subr.bf16.mxu0 0
      %1042 = vmatpush1.bf16.msra.mxu0 0
      %1043 = vmatprep.subr.bf16.mxu0 0
      %1044 = vmatpush1.bf16.msra.mxu0 0
      %1045 = vmatprep.subr.bf16.mxu0 0
      %1046 = vmatpush1.bf16.msra.mxu0 0
      %1047 = vmatprep.subr.bf16.mxu0 0
      %1048 = vmatpush1.bf16.msra.mxu0 0
      %1049 = vmatprep.subr.bf16.mxu0 0
      %1050 = vmatpush1.bf16.msra.mxu0 0
      %1051 = vmatprep.subr.bf16.mxu0 0
      %1052 = vmatpush1.bf16.msra.mxu0 0
      %1053 = vmatprep.subr.bf16.mxu0 0
      %1054 = vmatpush1.bf16.msra.mxu0 0
      %1055 = vmatprep.subr.bf16.mxu0 0
      %1056 = vmatpush1.bf16.msra.mxu0 0
      %1057 = vmatprep.subr.bf16.mxu0 0
      %1058 = vmatpush1.bf16.msra.mxu0 0
      %1059 = vmatprep.subr.bf16.mxu0 0
      %1060 = vmatpush1.bf16.msra.mxu0 0
      %1061 = vmatprep.subr.bf16.mxu0 0
      %1062 = vmatpush1.bf16.msra.mxu0 0
      %1063 = vmatprep.subr.bf16.mxu0 0
      %1064 = vmatpush1.bf16.msra.mxu0 0
      %1065 = vmatprep.subr.bf16.mxu0 0
      %1066 = vmatpush1.bf16.msra.mxu0 0
      %1067 = vmatprep.subr.bf16.mxu0 0
      %1068 = vmatpush1.bf16.msra.mxu0 0
      %1069 = vmatprep.subr.bf16.mxu0 0
      %1070 = vmatpush1.bf16.msra.mxu0 0
      %1071 = vmatprep.mubr.bf16.mxu0 0
      %1072 = vmatmul.mubr.bf16.gmra.mrb[0].mxu0 %v1001
      %v1073 = vpop.f32.mrb[0].mxu0
      %v1074 = vadd.f32 0.0, %v1073
      %v1075 = vpop.f32.mrb[0].mxu0
      %v1076 = vpop.f32.mrb[0].mxu0
      %v1077 = vadd.f32 0.0, %v1076
      %v1078 = vpop.f32.mrb[0].mxu0
      %1079 = vmatprep.mubr.bf16.mxu0 0
      %1080 = vmatmul.mubr.bf16.gmra.mrb[0].mxu0 %v1004
      %v1081 = vpop.f32.mrb[0].mxu0
      %v1082 = vpop.f32.mrb[0].mxu0
      %v1083 = vpop.f32.mrb[0].mxu0
      %v1084 = vadd.f32 0.0, %v1083
      %v1085 = vpop.f32.mrb[0].mxu0
      %1086 = vmatprep.mubr.bf16.mxu0 0
      %1087 = vmatmul.mubr.bf16.gmra.mrb[0].mxu0 %v1007
      %v1088 = vpop.f32.mrb[0].mxu0
      %v1089 = vadd.f32 0.0, %v1088
      %v1090 = vpop.f32.mrb[0].mxu0
      %v1091 = vpop.f32.mrb[0].mxu0
      %v1092 = vpop.f32.mrb[0].mxu0
      %1093 = vmatprep.mubr.bf16.mxu0 0
      %1094 = vmatmul.mubr.bf16.gmra.mrb[0].mxu0 %v1010
      %v1095 = vpop.f32.mrb[0].mxu0
      %v1096 = vadd.f32 0.0, %v1095
      %v1097 = vpop.f32.mrb[0].mxu0
      %v1098 = vpop.f32.mrb[0].mxu0
      %v1099 = vadd.f32 0.0, %v1098
      %v1100 = vpop.f32.mrb[0].mxu0
      %1101 = vmatprep.mubr.bf16.mxu0 0
      %1102 = vmatmul.mubr.bf16.gmra.mrb[0].mxu0 %v1013
      %v1103 = vpop.f32.mrb[0].mxu0
      %v1104 = vpop.f32.mrb[0].mxu0
      %v1105 = vpop.f32.mrb[0].mxu0
      %v1106 = vadd.f32 0.0, %v1105
      %v1107 = vpop.f32.mrb[0].mxu0
      %1108 = vmatprep.mubr.bf16.mxu0 0
      %1109 = vmatmul.mubr.bf16.gmra.mrb[0].mxu0 %v1016
      %v1110 = vpop.f32.mrb[0].mxu0
      %v1111 = vadd.f32 0.0, %v1110
      %v1112 = vpop.f32.mrb[0].mxu0
      %v1113 = vpop.f32.mrb[0].mxu0
      %v1114 = vpop.f32.mrb[0].mxu0
      %1115 = vmatprep.mubr.bf16.mxu0 0
      %1116 = vmatmul.mubr.bf16.gmra.mrb[0].mxu0 %v1019
      %v1117 = vpop.f32.mrb[0].mxu0
      %v1118 = vadd.f32 0.0, %v1117
      %v1119 = vpop.f32.mrb[0].mxu0
      %v1120 = vpop.f32.mrb[0].mxu0
      %v1121 = vadd.f32 0.0, %v1120
      %v1122 = vpop.f32.mrb[0].mxu0
      %1123 = vmatprep.mubr.bf16.mxu0 0
      %1124 = vmatmul.mubr.bf16.gmra.mrb[0].mxu0 %v1022
      %v1125 = vpop.f32.mrb[0].mxu0
      %v1126 = vpop.f32.mrb[0].mxu0
      %v1127 = vpop.f32.mrb[0].mxu0
      %v1128 = vadd.f32 0.0, %v1127
      %v1129 = vpop.f32.mrb[0].mxu0
      %1130 = vmatprep.mubr.bf16.mxu0 0
      %1131 = vmatmul.mubr.bf16.gmra.mrb[0].mxu0 %v1025
      %v1132 = vpop.f32.mrb[0].mxu0
      %v1133 = vadd.f32 0.0, %v1132
      %v1134 = vpop.f32.mrb[0].mxu0
      %v1135 = vpop.f32.mrb[0].mxu0
      %v1136 = vpop.f32.mrb[0].mxu0
      %1137 = vmatprep.mubr.bf16.mxu0 0
      %1138 = vmatmul.mubr.bf16.gmra.mrb[0].mxu0 %v1028
      %v1139 = vpop.f32.mrb[0].mxu0
      %v1140 = vadd.f32 0.0, %v1139
      %v1141 = vpop.f32.mrb[0].mxu0
      %v1142 = vpop.f32.mrb[0].mxu0
      %v1143 = vadd.f32 0.0, %v1142
      %v1144 = vpop.f32.mrb[0].mxu0
      %1145 = vmatprep.mubr.bf16.mxu0 0
      %1146 = vmatmul.mubr.bf16.gmra.mrb[0].mxu0 %v1031
      %v1147 = vpop.f32.mrb[0].mxu0
      %v1148 = vpop.f32.mrb[0].mxu0
      %v1149 = vpop.f32.mrb[0].mxu0
      %v1150 = vadd.f32 0.0, %v1149
      %v1151 = vpop.f32.mrb[0].mxu0
      %1152 = vmatprep.mubr.bf16.mxu0 0
      %1153 = vmatmul.mubr.bf16.gmra.mrb[0].mxu0 %v1034
      %v1154 = vpop.f32.mrb[0].mxu0
      %v1155 = vadd.f32 0.0, %v1154
      %v1156 = vpop.f32.mrb[0].mxu0
      %v1157 = vpop.f32.mrb[0].mxu0
      %v1158 = vpop.f32.mrb[0].mxu0
      %1159 = vdwg.mxu0
      %v1160 = vadd.f32 %v892, %v1074
      %v1161 = vadd.f32 %v893, %v1077
      %v1162 = vadd.f32 %v894, %v1084
      %v1163 = vadd.f32 %v895, %v1089
      %v1164 = vadd.f32 %v896, %v1096
      %v1165 = vadd.f32 %v897, %v1099
      %v1166 = vadd.f32 %v898, %v1106
      %v1167 = vadd.f32 %v899, %v1111
      %v1168 = vadd.f32 %v900, %v1118
      %v1169 = vadd.f32 %v901, %v1121
      %v1170 = vadd.f32 %v902, %v1128
      %v1171 = vadd.f32 %v903, %v1133
      %v1172 = vadd.f32 %v904, %v1140
      %v1173 = vadd.f32 %v905, %v1143
      %v1174 = vadd.f32 %v906, %v1150
      %v1175 = vadd.f32 %v907, %v1155
      %s1176 = scalar_lea.vmem %s1, 8
      %v1177 = vld [vmem:[%s1176] sm:$0x3]
      %v1179 = vunpack.c.l.b16 %v937
      %v1180 = vpack.c.b16 %v1179, %v1179
      %v1181 = vshrl.u32 %v988, 16
      %v1183 = vshll.u32 %v988, 16
      %v1185 = vrot.slane %v1183, 1
      %v1186 = vor.u32 %v1181, %v1185
      %v1187 = vshll.u32 %v989, 16
      %v1189 = vrot.slane %v1187, 1
      %v1190 = vsel %vm293, %v1186, %v1189
      %v1191 = vshrl.u32 %v989, 16
      %v1193 = vor.u32 %v1191, %v1189
      %v1194 = vshll.u32 %v990, 16
      %v1196 = vrot.slane %v1194, 1
      %v1197 = vsel %vm293, %v1193, %v1196
      %v1198 = vshrl.u32 %v990, 16
      %v1200 = vor.u32 %v1198, %v1196
      %v1201 = vshll.u32 %v991, 16
      %v1203 = vrot.slane %v1201, 1
      %v1204 = vsel %vm293, %v1200, %v1203
      %v1205 = vshrl.u32 %v991, 16
      %v1207 = vor.u32 %v1205, %v1203
      %v1208 = vshll.u32 %v992, 16
      %v1210 = vrot.slane %v1208, 1
      %v1211 = vsel %vm293, %v1207, %v1210
      %v1212 = vshrl.u32 %v992, 16
      %v1214 = vor.u32 %v1212, %v1210
      %v1215 = vshll.u32 %v993, 16
      %v1217 = vrot.slane %v1215, 1
      %v1218 = vsel %vm293, %v1214, %v1217
      %v1219 = vshrl.u32 %v993, 16
      %v1221 = vor.u32 %v1219, %v1217
      %v1222 = vshll.u32 %v994, 16
      %v1224 = vrot.slane %v1222, 1
      %v1225 = vsel %vm293, %v1221, %v1224
      %v1226 = vshrl.u32 %v994, 16
      %v1228 = vor.u32 %v1226, %v1224
      %v1229 = vshll.u32 %v995, 16
      %v1231 = vrot.slane %v1229, 1
      %v1232 = vsel %vm293, %v1228, %v1231
      %v1233 = vshrl.u32 %v995, 16
      %v1235 = vor.u32 %v1233, %v1231
      %v1236 = vshll.u32 %v996, 16
      %v1238 = vrot.slane %v1236, 1
      %v1239 = vsel %vm293, %v1235, %v1238
      %v1240 = vshrl.u32 %v996, 16
      %v1242 = vor.u32 %v1240, %v1238
      %v1243 = vshll.u32 %v997, 16
      %v1245 = vrot.slane %v1243, 1
      %v1246 = vsel %vm293, %v1242, %v1245
      %v1247 = vshrl.u32 %v997, 16
      %v1249 = vor.u32 %v1247, %v1245
      %v1250 = vshll.u32 %v998, 16
      %v1252 = vrot.slane %v1250, 1
      %v1253 = vsel %vm293, %v1249, %v1252
      %v1254 = vshrl.u32 %v998, 16
      %v1256 = vor.u32 %v1254, %v1252
      %v1257 = vshll.u32 %v999, 16
      %v1259 = vrot.slane %v1257, 1
      %v1260 = vsel %vm293, %v1256, %v1259
      %v1261 = vshrl.u32 %v999, 16
      %v1263 = vor.u32 %v1261, %v1259
      %v1265 = vshll.u32 %v1180, 16
      %v1267 = vrot.slane %v1265, 1
      %v1268 = vsel %vm293, %v1263, %v1267
      %v1270 = vsel %vm394, %v1190, 0
      %v1273 = vsel %vm394, %v1197, 0
      %v1276 = vsel %vm394, %v1204, 0
      %v1279 = vsel %vm394, %v1211, 0
      %v1282 = vsel %vm394, %v1218, 0
      %v1285 = vsel %vm394, %v1225, 0
      %v1288 = vsel %vm394, %v1232, 0
      %v1291 = vsel %vm394, %v1239, 0
      %v1294 = vsel %vm394, %v1246, 0
      %v1297 = vsel %vm394, %v1253, 0
      %v1300 = vsel %vm394, %v1260, 0
      %v1303 = vsel %vm394, %v1268, 0
      %v1306 = vsel %vm431, %v1177, 0
      %1308 = vmatprep.subr.bf16.mxu0 0
      %1309 = vmatpush1.bf16.msra.mxu0 %v1306
      %1310 = vmatprep.subr.bf16.mxu0 0
      %1311 = vmatpush1.bf16.msra.mxu0 0
      %1312 = vmatprep.subr.bf16.mxu0 0
      %1313 = vmatpush1.bf16.msra.mxu0 0
      %1314 = vmatprep.subr.bf16.mxu0 0
      %1315 = vmatpush1.bf16.msra.mxu0 0
      %1316 = vmatprep.subr.bf16.mxu0 0
      %1317 = vmatpush1.bf16.msra.mxu0 0
      %1318 = vmatprep.subr.bf16.mxu0 0
      %1319 = vmatpush1.bf16.msra.mxu0 0
      %1320 = vmatprep.subr.bf16.mxu0 0
      %1321 = vmatpush1.bf16.msra.mxu0 0
      %1322 = vmatprep.subr.bf16.mxu0 0
      %1323 = vmatpush1.bf16.msra.mxu0 0
      %1324 = vmatprep.subr.bf16.mxu0 0
      %1325 = vmatpush1.bf16.msra.mxu0 0
      %1326 = vmatprep.subr.bf16.mxu0 0
      %1327 = vmatpush1.bf16.msra.mxu0 0
      %1328 = vmatprep.subr.bf16.mxu0 0
      %1329 = vmatpush1.bf16.msra.mxu0 0
      %1330 = vmatprep.subr.bf16.mxu0 0
      %1331 = vmatpush1.bf16.msra.mxu0 0
      %1332 = vmatprep.subr.bf16.mxu0 0
      %1333 = vmatpush1.bf16.msra.mxu0 0
      %1334 = vmatprep.subr.bf16.mxu0 0
      %1335 = vmatpush1.bf16.msra.mxu0 0
      %1336 = vmatprep.subr.bf16.mxu0 0
      %1337 = vmatpush1.bf16.msra.mxu0 0
      %1338 = vmatprep.subr.bf16.mxu0 0
      %1339 = vmatpush1.bf16.msra.mxu0 0
      %1340 = vmatprep.mubr.bf16.mxu0 0
      %1341 = vmatmul.mubr.bf16.gmra.mrb[0].mxu0 %v1270
      %v1342 = vpop.f32.mrb[0].mxu0
      %v1343 = vadd.f32 0.0, %v1342
      %v1344 = vpop.f32.mrb[0].mxu0
      %v1345 = vpop.f32.mrb[0].mxu0
      %v1346 = vadd.f32 0.0, %v1345
      %v1347 = vpop.f32.mrb[0].mxu0
      %1348 = vmatprep.mubr.bf16.mxu0 0
      %1349 = vmatmul.mubr.bf16.gmra.mrb[0].mxu0 %v1273
      %v1350 = vpop.f32.mrb[0].mxu0
      %v1351 = vpop.f32.mrb[0].mxu0
      %v1352 = vpop.f32.mrb[0].mxu0
      %v1353 = vadd.f32 0.0, %v1352
      %v1354 = vpop.f32.mrb[0].mxu0
      %1355 = vmatprep.mubr.bf16.mxu0 0
      %1356 = vmatmul.mubr.bf16.gmra.mrb[0].mxu0 %v1276
      %v1357 = vpop.f32.mrb[0].mxu0
      %v1358 = vadd.f32 0.0, %v1357
      %v1359 = vpop.f32.mrb[0].mxu0
      %v1360 = vpop.f32.mrb[0].mxu0
      %v1361 = vpop.f32.mrb[0].mxu0
      %1362 = vmatprep.mubr.bf16.mxu0 0
      %1363 = vmatmul.mubr.bf16.gmra.mrb[0].mxu0 %v1279
      %v1364 = vpop.f32.mrb[0].mxu0
      %v1365 = vadd.f32 0.0, %v1364
      %v1366 = vpop.f32.mrb[0].mxu0
      %v1367 = vpop.f32.mrb[0].mxu0
      %v1368 = vadd.f32 0.0, %v1367
      %v1369 = vpop.f32.mrb[0].mxu0
      %1370 = vmatprep.mubr.bf16.mxu0 0
      %1371 = vmatmul.mubr.bf16.gmra.mrb[0].mxu0 %v1282
      %v1372 = vpop.f32.mrb[0].mxu0
      %v1373 = vpop.f32.mrb[0].mxu0
      %v1374 = vpop.f32.mrb[0].mxu0
      %v1375 = vadd.f32 0.0, %v1374
      %v1376 = vpop.f32.mrb[0].mxu0
      %1377 = vmatprep.mubr.bf16.mxu0 0
      %1378 = vmatmul.mubr.bf16.gmra.mrb[0].mxu0 %v1285
      %v1379 = vpop.f32.mrb[0].mxu0
      %v1380 = vadd.f32 0.0, %v1379
      %v1381 = vpop.f32.mrb[0].mxu0
      %v1382 = vpop.f32.mrb[0].mxu0
      %v1383 = vpop.f32.mrb[0].mxu0
      %1384 = vmatprep.mubr.bf16.mxu0 0
      %1385 = vmatmul.mubr.bf16.gmra.mrb[0].mxu0 %v1288
      %v1386 = vpop.f32.mrb[0].mxu0
      %v1387 = vadd.f32 0.0, %v1386
      %v1388 = vpop.f32.mrb[0].mxu0
      %v1389 = vpop.f32.mrb[0].mxu0
      %v1390 = vadd.f32 0.0, %v1389
      %v1391 = vpop.f32.mrb[0].mxu0
      %1392 = vmatprep.mubr.bf16.mxu0 0
      %1393 = vmatmul.mubr.bf16.gmra.mrb[0].mxu0 %v1291
      %v1394 = vpop.f32.mrb[0].mxu0
      %v1395 = vpop.f32.mrb[0].mxu0
      %v1396 = vpop.f32.mrb[0].mxu0
      %v1397 = vadd.f32 0.0, %v1396
      %v1398 = vpop.f32.mrb[0].mxu0
      %1399 = vmatprep.mubr.bf16.mxu0 0
      %1400 = vmatmul.mubr.bf16.gmra.mrb[0].mxu0 %v1294
      %v1401 = vpop.f32.mrb[0].mxu0
      %v1402 = vadd.f32 0.0, %v1401
      %v1403 = vpop.f32.mrb[0].mxu0
      %v1404 = vpop.f32.mrb[0].mxu0
      %v1405 = vpop.f32.mrb[0].mxu0
      %1406 = vmatprep.mubr.bf16.mxu0 0
      %1407 = vmatmul.mubr.bf16.gmra.mrb[0].mxu0 %v1297
      %v1408 = vpop.f32.mrb[0].mxu0
      %v1409 = vadd.f32 0.0, %v1408
      %v1410 = vpop.f32.mrb[0].mxu0
      %v1411 = vpop.f32.mrb[0].mxu0
      %v1412 = vadd.f32 0.0, %v1411
      %v1413 = vpop.f32.mrb[0].mxu0
      %1414 = vmatprep.mubr.bf16.mxu0 0
      %1415 = vmatmul.mubr.bf16.gmra.mrb[0].mxu0 %v1300
      %v1416 = vpop.f32.mrb[0].mxu0
      %v1417 = vpop.f32.mrb[0].mxu0
      %v1418 = vpop.f32.mrb[0].mxu0
      %v1419 = vadd.f32 0.0, %v1418
      %v1420 = vpop.f32.mrb[0].mxu0
      %1421 = vmatprep.mubr.bf16.mxu0 0
      %1422 = vmatmul.mubr.bf16.gmra.mrb[0].mxu0 %v1303
      %v1423 = vpop.f32.mrb[0].mxu0
      %v1424 = vadd.f32 0.0, %v1423
      %v1425 = vpop.f32.mrb[0].mxu0
      %v1426 = vpop.f32.mrb[0].mxu0
      %v1427 = vpop.f32.mrb[0].mxu0
      %1428 = vdwg.mxu0
      %v1429 = vadd.f32 %v1160, %v1343
      %v1430 = vadd.f32 %v1161, %v1346
      %v1431 = vadd.f32 %v1162, %v1353
      %v1432 = vadd.f32 %v1163, %v1358
      %v1433 = vadd.f32 %v1164, %v1365
      %v1434 = vadd.f32 %v1165, %v1368
      %v1435 = vadd.f32 %v1166, %v1375
      %v1436 = vadd.f32 %v1167, %v1380
      %v1437 = vadd.f32 %v1168, %v1387
      %v1438 = vadd.f32 %v1169, %v1390
      %v1439 = vadd.f32 %v1170, %v1397
      %v1440 = vadd.f32 %v1171, %v1402
      %v1441 = vadd.f32 %v1172, %v1409
      %v1442 = vadd.f32 %v1173, %v1412
      %v1443 = vadd.f32 %v1174, %v1419
      %v1444 = vadd.f32 %v1175, %v1424
      %s1445 = scalar_lea.vmem %s1, 10
      %v1446 = vld [vmem:[%s1445] sm:$0x3]
      %v1447 = vrot.slane %v988, 1
      %v1448 = vrot.slane %v989, 1
      %v1449 = vsel %vm706, %v1447, %v1448
      %v1450 = vrot.slane %v990, 1
      %v1451 = vsel %vm706, %v1448, %v1450
      %v1452 = vrot.slane %v991, 1
      %v1453 = vsel %vm706, %v1450, %v1452
      %v1454 = vrot.slane %v992, 1
      %v1455 = vsel %vm706, %v1452, %v1454
      %v1456 = vrot.slane %v993, 1
      %v1457 = vsel %vm706, %v1454, %v1456
      %v1458 = vrot.slane %v994, 1
      %v1459 = vsel %vm706, %v1456, %v1458
      %v1460 = vrot.slane %v995, 1
      %v1461 = vsel %vm706, %v1458, %v1460
      %v1462 = vrot.slane %v996, 1
      %v1463 = vsel %vm706, %v1460, %v1462
      %v1464 = vrot.slane %v997, 1
      %v1465 = vsel %vm706, %v1462, %v1464
      %v1466 = vrot.slane %v998, 1
      %v1467 = vsel %vm706, %v1464, %v1466
      %v1468 = vrot.slane %v999, 1
      %v1469 = vsel %vm706, %v1466, %v1468
      %v1470 = vrot.slane %v1180, 1
      %v1471 = vsel %vm706, %v1468, %v1470
      %v1473 = vsel %vm394, %v1449, 0
      %v1476 = vsel %vm394, %v1451, 0
      %v1479 = vsel %vm394, %v1453, 0
      %v1482 = vsel %vm394, %v1455, 0
      %v1485 = vsel %vm394, %v1457, 0
      %v1488 = vsel %vm394, %v1459, 0
      %v1491 = vsel %vm394, %v1461, 0
      %v1494 = vsel %vm394, %v1463, 0
      %v1497 = vsel %vm394, %v1465, 0
      %v1500 = vsel %vm394, %v1467, 0
      %v1503 = vsel %vm394, %v1469, 0
      %v1506 = vsel %vm394, %v1471, 0
      %v1509 = vsel %vm431, %v1446, 0
      %1511 = vmatprep.subr.bf16.mxu0 0
      %1512 = vmatpush1.bf16.msra.mxu0 %v1509
      %1513 = vmatprep.subr.bf16.mxu0 0
      %1514 = vmatpush1.bf16.msra.mxu0 0
      %1515 = vmatprep.subr.bf16.mxu0 0
      %1516 = vmatpush1.bf16.msra.mxu0 0
      %1517 = vmatprep.subr.bf16.mxu0 0
      %1518 = vmatpush1.bf16.msra.mxu0 0
      %1519 = vmatprep.subr.bf16.mxu0 0
      %1520 = vmatpush1.bf16.msra.mxu0 0
      %1521 = vmatprep.subr.bf16.mxu0 0
      %1522 = vmatpush1.bf16.msra.mxu0 0
      %1523 = vmatprep.subr.bf16.mxu0 0
      %1524 = vmatpush1.bf16.msra.mxu0 0
      %1525 = vmatprep.subr.bf16.mxu0 0
      %1526 = vmatpush1.bf16.msra.mxu0 0
      %1527 = vmatprep.subr.bf16.mxu0 0
      %1528 = vmatpush1.bf16.msra.mxu0 0
      %1529 = vmatprep.subr.bf16.mxu0 0
      %1530 = vmatpush1.bf16.msra.mxu0 0
      %1531 = vmatprep.subr.bf16.mxu0 0
      %1532 = vmatpush1.bf16.msra.mxu0 0
      %1533 = vmatprep.subr.bf16.mxu0 0
      %1534 = vmatpush1.bf16.msra.mxu0 0
      %1535 = vmatprep.subr.bf16.mxu0 0
      %1536 = vmatpush1.bf16.msra.mxu0 0
      %1537 = vmatprep.subr.bf16.mxu0 0
      %1538 = vmatpush1.bf16.msra.mxu0 0
      %1539 = vmatprep.subr.bf16.mxu0 0
      %1540 = vmatpush1.bf16.msra.mxu0 0
      %1541 = vmatprep.subr.bf16.mxu0 0
      %1542 = vmatpush1.bf16.msra.mxu0 0
      %1543 = vmatprep.mubr.bf16.mxu0 0
      %1544 = vmatmul.mubr.bf16.gmra.mrb[0].mxu0 %v1473
      %v1545 = vpop.f32.mrb[0].mxu0
      %v1546 = vadd.f32 0.0, %v1545
      %v1547 = vpop.f32.mrb[0].mxu0
      %v1548 = vpop.f32.mrb[0].mxu0
      %v1549 = vadd.f32 0.0, %v1548
      %v1550 = vpop.f32.mrb[0].mxu0
      %1551 = vmatprep.mubr.bf16.mxu0 0
      %1552 = vmatmul.mubr.bf16.gmra.mrb[0].mxu0 %v1476
      %v1553 = vpop.f32.mrb[0].mxu0
      %v1554 = vpop.f32.mrb[0].mxu0
      %v1555 = vpop.f32.mrb[0].mxu0
      %v1556 = vadd.f32 0.0, %v1555
      %v1557 = vpop.f32.mrb[0].mxu0
      %1558 = vmatprep.mubr.bf16.mxu0 0
      %1559 = vmatmul.mubr.bf16.gmra.mrb[0].mxu0 %v1479
      %v1560 = vpop.f32.mrb[0].mxu0
      %v1561 = vadd.f32 0.0, %v1560
      %v1562 = vpop.f32.mrb[0].mxu0
      %v1563 = vpop.f32.mrb[0].mxu0
      %v1564 = vpop.f32.mrb[0].mxu0
      %1565 = vmatprep.mubr.bf16.mxu0 0
      %1566 = vmatmul.mubr.bf16.gmra.mrb[0].mxu0 %v1482
      %v1567 = vpop.f32.mrb[0].mxu0
      %v1568 = vadd.f32 0.0, %v1567
      %v1569 = vpop.f32.mrb[0].mxu0
      %v1570 = vpop.f32.mrb[0].mxu0
      %v1571 = vadd.f32 0.0, %v1570
      %v1572 = vpop.f32.mrb[0].mxu0
      %1573 = vmatprep.mubr.bf16.mxu0 0
      %1574 = vmatmul.mubr.bf16.gmra.mrb[0].mxu0 %v1485
      %v1575 = vpop.f32.mrb[0].mxu0
      %v1576 = vpop.f32.mrb[0].mxu0
      %v1577 = vpop.f32.mrb[0].mxu0
      %v1578 = vadd.f32 0.0, %v1577
      %v1579 = vpop.f32.mrb[0].mxu0
      %1580 = vmatprep.mubr.bf16.mxu0 0
      %1581 = vmatmul.mubr.bf16.gmra.mrb[0].mxu0 %v1488
      %v1582 = vpop.f32.mrb[0].mxu0
      %v1583 = vadd.f32 0.0, %v1582
      %v1584 = vpop.f32.mrb[0].mxu0
      %v1585 = vpop.f32.mrb[0].mxu0
      %v1586 = vpop.f32.mrb[0].mxu0
      %1587 = vmatprep.mubr.bf16.mxu0 0
      %1588 = vmatmul.mubr.bf16.gmra.mrb[0].mxu0 %v1491
      %v1589 = vpop.f32.mrb[0].mxu0
      %v1590 = vadd.f32 0.0, %v1589
      %v1591 = vpop.f32.mrb[0].mxu0
      %v1592 = vpop.f32.mrb[0].mxu0
      %v1593 = vadd.f32 0.0, %v1592
      %v1594 = vpop.f32.mrb[0].mxu0
      %1595 = vmatprep.mubr.bf16.mxu0 0
      %1596 = vmatmul.mubr.bf16.gmra.mrb[0].mxu0 %v1494
      %v1597 = vpop.f32.mrb[0].mxu0
      %v1598 = vpop.f32.mrb[0].mxu0
      %v1599 = vpop.f32.mrb[0].mxu0
      %v1600 = vadd.f32 0.0, %v1599
      %v1601 = vpop.f32.mrb[0].mxu0
      %1602 = vmatprep.mubr.bf16.mxu0 0
      %1603 = vmatmul.mubr.bf16.gmra.mrb[0].mxu0 %v1497
      %v1604 = vpop.f32.mrb[0].mxu0
      %v1605 = vadd.f32 0.0, %v1604
      %v1606 = vpop.f32.mrb[0].mxu0
      %v1607 = vpop.f32.mrb[0].mxu0
      %v1608 = vpop.f32.mrb[0].mxu0
      %1609 = vmatprep.mubr.bf16.mxu0 0
      %1610 = vmatmul.mubr.bf16.gmra.mrb[0].mxu0 %v1500
      %v1611 = vpop.f32.mrb[0].mxu0
      %v1612 = vadd.f32 0.0, %v1611
      %v1613 = vpop.f32.mrb[0].mxu0
      %v1614 = vpop.f32.mrb[0].mxu0
      %v1615 = vadd.f32 0.0, %v1614
      %v1616 = vpop.f32.mrb[0].mxu0
      %1617 = vmatprep.mubr.bf16.mxu0 0
      %1618 = vmatmul.mubr.bf16.gmra.mrb[0].mxu0 %v1503
      %v1619 = vpop.f32.mrb[0].mxu0
      %v1620 = vpop.f32.mrb[0].mxu0
      %v1621 = vpop.f32.mrb[0].mxu0
      %v1622 = vadd.f32 0.0, %v1621
      %v1623 = vpop.f32.mrb[0].mxu0
      %1624 = vmatprep.mubr.bf16.mxu0 0
      %1625 = vmatmul.mubr.bf16.gmra.mrb[0].mxu0 %v1506
      %v1626 = vpop.f32.mrb[0].mxu0
      %v1627 = vadd.f32 0.0, %v1626
      %v1628 = vpop.f32.mrb[0].mxu0
      %v1629 = vpop.f32.mrb[0].mxu0
      %v1630 = vpop.f32.mrb[0].mxu0
      %1631 = vdwg.mxu0
      %v1632 = vadd.f32 %v1429, %v1546
      %v1633 = vadd.f32 %v1430, %v1549
      %v1634 = vadd.f32 %v1431, %v1556
      %v1635 = vadd.f32 %v1432, %v1561
      %v1636 = vadd.f32 %v1433, %v1568
      %v1637 = vadd.f32 %v1434, %v1571
      %v1638 = vadd.f32 %v1435, %v1578
      %v1639 = vadd.f32 %v1436, %v1583
      %v1640 = vadd.f32 %v1437, %v1590
      %v1641 = vadd.f32 %v1438, %v1593
      %v1642 = vadd.f32 %v1439, %v1600
      %v1643 = vadd.f32 %v1440, %v1605
      %v1644 = vadd.f32 %v1441, %v1612
      %v1645 = vadd.f32 %v1442, %v1615
      %v1646 = vadd.f32 %v1443, %v1622
      %v1647 = vadd.f32 %v1444, %v1627
      %s1648 = sadd.s32 %s197, 48
      %s1649 = sshra.s32 %s1648, 3
      %s1650 = sand.u32 %s1648, 7
      %s1651 = smul.addr %s1649, 4
      %s1652 = scalar_lea.vmem %s184, %s1651
      %v1653 = vld [vmem:[%s1652] sm:$0xf]
      %v1654 = vld [vmem:[%s1652 + $0x4] sm:$0xf]
      %v1655 = vld [vmem:[%s1652 + $0x8] sm:$0xf]
      %v1656 = vld [vmem:[%s1652 + $0xc] sm:$0xf]
      %v1657 = vld [vmem:[%s1652 + $0x10] sm:$0xf]
      %v1658 = vld [vmem:[%s1652 + $0x14] sm:$0xf]
      %v1659 = vld [vmem:[%s1652 + $0x18] sm:$0xf]
      %v1660 = vld [vmem:[%s1652 + $0x1c] sm:$0xf]
      %v1661 = vld [vmem:[%s1652 + $0x20] sm:$0xf]
      %v1662 = vld [vmem:[%s1652 + $0x24] sm:$0xf]
      %v1663 = vld [vmem:[%s1652 + $0x28] sm:$0xf]
      %v1664 = vld [vmem:[%s1652 + $0x2c] sm:$0xf]
      %v1665 = vld [vmem:[%s1652 + $0x30] sm:$0xf]
      %v1666 = vld [vmem:[%s1652 + $0x34] sm:$0xf]
      %v1667 = vld [vmem:[%s1652 + $0x38] sm:$0xf]
      %v1668 = vld [vmem:[%s1652 + $0x3c] sm:$0xf]
      %v1669 = vld [vmem:[%s1652 + $0x40] sm:$0xf]
      %v1670 = vld [vmem:[%s1652 + $0x44] sm:$0xf]
      %v1671 = vld [vmem:[%s1652 + $0x48] sm:$0xf]
      %v1672 = vld [vmem:[%s1652 + $0x4c] sm:$0xf]
      %v1673 = vld [vmem:[%s1652 + $0x50] sm:$0xf]
      %v1674 = vld [vmem:[%s1652 + $0x54] sm:$0xf]
      %v1675 = vld [vmem:[%s1652 + $0x58] sm:$0xf]
      %v1676 = vld [vmem:[%s1652 + $0x5c] sm:$0xf]
      %v1677 = vld [vmem:[%s1652 + $0x60] sm:$0xf]
      %s1678 = scalar_lea.vmem %s1, 12
      %v1679 = vld [vmem:[%s1678] sm:$0x3]
      %v1704 = vunpack.c.l.b16 %v1653
      %v1705 = vunpack.c.l.b16 %v1654
      %v1706 = vunpack.c.l.b16 %v1655
      %v1707 = vunpack.c.l.b16 %v1656
      %v1708 = vunpack.c.l.b16 %v1657
      %v1709 = vunpack.c.l.b16 %v1658
      %v1710 = vunpack.c.l.b16 %v1659
      %v1711 = vunpack.c.l.b16 %v1660
      %v1712 = vunpack.c.l.b16 %v1661
      %v1713 = vunpack.c.l.b16 %v1662
      %v1714 = vunpack.c.l.b16 %v1663
      %v1715 = vunpack.c.l.b16 %v1664
      %v1716 = vunpack.c.l.b16 %v1665
      %v1717 = vunpack.c.l.b16 %v1666
      %v1718 = vunpack.c.l.b16 %v1667
      %v1719 = vunpack.c.l.b16 %v1668
      %v1720 = vunpack.c.l.b16 %v1669
      %v1721 = vunpack.c.l.b16 %v1670
      %v1722 = vunpack.c.l.b16 %v1671
      %v1723 = vunpack.c.l.b16 %v1672
      %v1724 = vunpack.c.l.b16 %v1673
      %v1725 = vunpack.c.l.b16 %v1674
      %v1726 = vunpack.c.l.b16 %v1675
      %v1727 = vunpack.c.l.b16 %v1676
      %v1728 = vpack.c.b16 %v1705, %v1704
      %v1729 = vpack.c.b16 %v1707, %v1706
      %v1730 = vpack.c.b16 %v1709, %v1708
      %v1731 = vpack.c.b16 %v1711, %v1710
      %v1732 = vpack.c.b16 %v1713, %v1712
      %v1733 = vpack.c.b16 %v1715, %v1714
      %v1734 = vpack.c.b16 %v1717, %v1716
      %v1735 = vpack.c.b16 %v1719, %v1718
      %v1736 = vpack.c.b16 %v1721, %v1720
      %v1737 = vpack.c.b16 %v1723, %v1722
      %v1738 = vpack.c.b16 %v1725, %v1724
      %v1739 = vpack.c.b16 %v1727, %v1726
      %v1741 = vsel %vm394, %v1728, 0
      %v1744 = vsel %vm394, %v1729, 0
      %v1747 = vsel %vm394, %v1730, 0
      %v1750 = vsel %vm394, %v1731, 0
      %v1753 = vsel %vm394, %v1732, 0
      %v1756 = vsel %vm394, %v1733, 0
      %v1759 = vsel %vm394, %v1734, 0
      %v1762 = vsel %vm394, %v1735, 0
      %v1765 = vsel %vm394, %v1736, 0
      %v1768 = vsel %vm394, %v1737, 0
      %v1771 = vsel %vm394, %v1738, 0
      %v1774 = vsel %vm394, %v1739, 0
      %v1777 = vsel %vm431, %v1679, 0
      %1779 = vmatprep.subr.bf16.mxu0 0
      %1780 = vmatpush1.bf16.msra.mxu0 %v1777
      %1781 = vmatprep.subr.bf16.mxu0 0
      %1782 = vmatpush1.bf16.msra.mxu0 0
      %1783 = vmatprep.subr.bf16.mxu0 0
      %1784 = vmatpush1.bf16.msra.mxu0 0
      %1785 = vmatprep.subr.bf16.mxu0 0
      %1786 = vmatpush1.bf16.msra.mxu0 0
      %1787 = vmatprep.subr.bf16.mxu0 0
      %1788 = vmatpush1.bf16.msra.mxu0 0
      %1789 = vmatprep.subr.bf16.mxu0 0
      %1790 = vmatpush1.bf16.msra.mxu0 0
      %1791 = vmatprep.subr.bf16.mxu0 0
      %1792 = vmatpush1.bf16.msra.mxu0 0
      %1793 = vmatprep.subr.bf16.mxu0 0
      %1794 = vmatpush1.bf16.msra.mxu0 0
      %1795 = vmatprep.subr.bf16.mxu0 0
      %1796 = vmatpush1.bf16.msra.mxu0 0
      %1797 = vmatprep.subr.bf16.mxu0 0
      %1798 = vmatpush1.bf16.msra.mxu0 0
      %1799 = vmatprep.subr.bf16.mxu0 0
      %1800 = vmatpush1.bf16.msra.mxu0 0
      %1801 = vmatprep.subr.bf16.mxu0 0
      %1802 = vmatpush1.bf16.msra.mxu0 0
      %1803 = vmatprep.subr.bf16.mxu0 0
      %1804 = vmatpush1.bf16.msra.mxu0 0
      %1805 = vmatprep.subr.bf16.mxu0 0
      %1806 = vmatpush1.bf16.msra.mxu0 0
      %1807 = vmatprep.subr.bf16.mxu0 0
      %1808 = vmatpush1.bf16.msra.mxu0 0
      %1809 = vmatprep.subr.bf16.mxu0 0
      %1810 = vmatpush1.bf16.msra.mxu0 0
      %1811 = vmatprep.mubr.bf16.mxu0 0
      %1812 = vmatmul.mubr.bf16.gmra.mrb[0].mxu0 %v1741
      %v1813 = vpop.f32.mrb[0].mxu0
      %v1814 = vadd.f32 0.0, %v1813
      %v1815 = vpop.f32.mrb[0].mxu0
      %v1816 = vpop.f32.mrb[0].mxu0
      %v1817 = vadd.f32 0.0, %v1816
      %v1818 = vpop.f32.mrb[0].mxu0
      %1819 = vmatprep.mubr.bf16.mxu0 0
      %1820 = vmatmul.mubr.bf16.gmra.mrb[0].mxu0 %v1744
      %v1821 = vpop.f32.mrb[0].mxu0
      %v1822 = vpop.f32.mrb[0].mxu0
      %v1823 = vpop.f32.mrb[0].mxu0
      %v1824 = vadd.f32 0.0, %v1823
      %v1825 = vpop.f32.mrb[0].mxu0
      %1826 = vmatprep.mubr.bf16.mxu0 0
      %1827 = vmatmul.mubr.bf16.gmra.mrb[0].mxu0 %v1747
      %v1828 = vpop.f32.mrb[0].mxu0
      %v1829 = vadd.f32 0.0, %v1828
      %v1830 = vpop.f32.mrb[0].mxu0
      %v1831 = vpop.f32.mrb[0].mxu0
      %v1832 = vpop.f32.mrb[0].mxu0
      %1833 = vmatprep.mubr.bf16.mxu0 0
      %1834 = vmatmul.mubr.bf16.gmra.mrb[0].mxu0 %v1750
      %v1835 = vpop.f32.mrb[0].mxu0
      %v1836 = vadd.f32 0.0, %v1835
      %v1837 = vpop.f32.mrb[0].mxu0
      %v1838 = vpop.f32.mrb[0].mxu0
      %v1839 = vadd.f32 0.0, %v1838
      %v1840 = vpop.f32.mrb[0].mxu0
      %1841 = vmatprep.mubr.bf16.mxu0 0
      %1842 = vmatmul.mubr.bf16.gmra.mrb[0].mxu0 %v1753
      %v1843 = vpop.f32.mrb[0].mxu0
      %v1844 = vpop.f32.mrb[0].mxu0
      %v1845 = vpop.f32.mrb[0].mxu0
      %v1846 = vadd.f32 0.0, %v1845
      %v1847 = vpop.f32.mrb[0].mxu0
      %1848 = vmatprep.mubr.bf16.mxu0 0
      %1849 = vmatmul.mubr.bf16.gmra.mrb[0].mxu0 %v1756
      %v1850 = vpop.f32.mrb[0].mxu0
      %v1851 = vadd.f32 0.0, %v1850
      %v1852 = vpop.f32.mrb[0].mxu0
      %v1853 = vpop.f32.mrb[0].mxu0
      %v1854 = vpop.f32.mrb[0].mxu0
      %1855 = vmatprep.mubr.bf16.mxu0 0
      %1856 = vmatmul.mubr.bf16.gmra.mrb[0].mxu0 %v1759
      %v1857 = vpop.f32.mrb[0].mxu0
      %v1858 = vadd.f32 0.0, %v1857
      %v1859 = vpop.f32.mrb[0].mxu0
      %v1860 = vpop.f32.mrb[0].mxu0
      %v1861 = vadd.f32 0.0, %v1860
      %v1862 = vpop.f32.mrb[0].mxu0
      %1863 = vmatprep.mubr.bf16.mxu0 0
      %1864 = vmatmul.mubr.bf16.gmra.mrb[0].mxu0 %v1762
      %v1865 = vpop.f32.mrb[0].mxu0
      %v1866 = vpop.f32.mrb[0].mxu0
      %v1867 = vpop.f32.mrb[0].mxu0
      %v1868 = vadd.f32 0.0, %v1867
      %v1869 = vpop.f32.mrb[0].mxu0
      %1870 = vmatprep.mubr.bf16.mxu0 0
      %1871 = vmatmul.mubr.bf16.gmra.mrb[0].mxu0 %v1765
      %v1872 = vpop.f32.mrb[0].mxu0
      %v1873 = vadd.f32 0.0, %v1872
      %v1874 = vpop.f32.mrb[0].mxu0
      %v1875 = vpop.f32.mrb[0].mxu0
      %v1876 = vpop.f32.mrb[0].mxu0
      %1877 = vmatprep.mubr.bf16.mxu0 0
      %1878 = vmatmul.mubr.bf16.gmra.mrb[0].mxu0 %v1768
      %v1879 = vpop.f32.mrb[0].mxu0
      %v1880 = vadd.f32 0.0, %v1879
      %v1881 = vpop.f32.mrb[0].mxu0
      %v1882 = vpop.f32.mrb[0].mxu0
      %v1883 = vadd.f32 0.0, %v1882
      %v1884 = vpop.f32.mrb[0].mxu0
      %1885 = vmatprep.mubr.bf16.mxu0 0
      %1886 = vmatmul.mubr.bf16.gmra.mrb[0].mxu0 %v1771
      %v1887 = vpop.f32.mrb[0].mxu0
      %v1888 = vpop.f32.mrb[0].mxu0
      %v1889 = vpop.f32.mrb[0].mxu0
      %v1890 = vadd.f32 0.0, %v1889
      %v1891 = vpop.f32.mrb[0].mxu0
      %1892 = vmatprep.mubr.bf16.mxu0 0
      %1893 = vmatmul.mubr.bf16.gmra.mrb[0].mxu0 %v1774
      %v1894 = vpop.f32.mrb[0].mxu0
      %v1895 = vadd.f32 0.0, %v1894
      %v1896 = vpop.f32.mrb[0].mxu0
      %v1897 = vpop.f32.mrb[0].mxu0
      %v1898 = vpop.f32.mrb[0].mxu0
      %1899 = vdwg.mxu0
      %v1900 = vadd.f32 %v1632, %v1814
      %v1901 = vadd.f32 %v1633, %v1817
      %v1902 = vadd.f32 %v1634, %v1824
      %v1903 = vadd.f32 %v1635, %v1829
      %v1904 = vadd.f32 %v1636, %v1836
      %v1905 = vadd.f32 %v1637, %v1839
      %v1906 = vadd.f32 %v1638, %v1846
      %v1907 = vadd.f32 %v1639, %v1851
      %v1908 = vadd.f32 %v1640, %v1858
      %v1909 = vadd.f32 %v1641, %v1861
      %v1910 = vadd.f32 %v1642, %v1868
      %v1911 = vadd.f32 %v1643, %v1873
      %v1912 = vadd.f32 %v1644, %v1880
      %v1913 = vadd.f32 %v1645, %v1883
      %v1914 = vadd.f32 %v1646, %v1890
      %v1915 = vadd.f32 %v1647, %v1895
      %s1916 = scalar_lea.vmem %s1, 14
      %v1917 = vld [vmem:[%s1916] sm:$0x3]
      %v1919 = vunpack.c.l.b16 %v1677
      %v1920 = vpack.c.b16 %v1919, %v1919
      %v1921 = vshrl.u32 %v1728, 16
      %v1923 = vshll.u32 %v1728, 16
      %v1925 = vrot.slane %v1923, 1
      %v1926 = vor.u32 %v1921, %v1925
      %v1927 = vshll.u32 %v1729, 16
      %v1929 = vrot.slane %v1927, 1
      %v1930 = vsel %vm293, %v1926, %v1929
      %v1931 = vshrl.u32 %v1729, 16
      %v1933 = vor.u32 %v1931, %v1929
      %v1934 = vshll.u32 %v1730, 16
      %v1936 = vrot.slane %v1934, 1
      %v1937 = vsel %vm293, %v1933, %v1936
      %v1938 = vshrl.u32 %v1730, 16
      %v1940 = vor.u32 %v1938, %v1936
      %v1941 = vshll.u32 %v1731, 16
      %v1943 = vrot.slane %v1941, 1
      %v1944 = vsel %vm293, %v1940, %v1943
      %v1945 = vshrl.u32 %v1731, 16
      %v1947 = vor.u32 %v1945, %v1943
      %v1948 = vshll.u32 %v1732, 16
      %v1950 = vrot.slane %v1948, 1
      %v1951 = vsel %vm293, %v1947, %v1950
      %v1952 = vshrl.u32 %v1732, 16
      %v1954 = vor.u32 %v1952, %v1950
      %v1955 = vshll.u32 %v1733, 16
      %v1957 = vrot.slane %v1955, 1
      %v1958 = vsel %vm293, %v1954, %v1957
      %v1959 = vshrl.u32 %v1733, 16
      %v1961 = vor.u32 %v1959, %v1957
      %v1962 = vshll.u32 %v1734, 16
      %v1964 = vrot.slane %v1962, 1
      %v1965 = vsel %vm293, %v1961, %v1964
      %v1966 = vshrl.u32 %v1734, 16
      %v1968 = vor.u32 %v1966, %v1964
      %v1969 = vshll.u32 %v1735, 16
      %v1971 = vrot.slane %v1969, 1
      %v1972 = vsel %vm293, %v1968, %v1971
      %v1973 = vshrl.u32 %v1735, 16
      %v1975 = vor.u32 %v1973, %v1971
      %v1976 = vshll.u32 %v1736, 16
      %v1978 = vrot.slane %v1976, 1
      %v1979 = vsel %vm293, %v1975, %v1978
      %v1980 = vshrl.u32 %v1736, 16
      %v1982 = vor.u32 %v1980, %v1978
      %v1983 = vshll.u32 %v1737, 16
      %v1985 = vrot.slane %v1983, 1
      %v1986 = vsel %vm293, %v1982, %v1985
      %v1987 = vshrl.u32 %v1737, 16
      %v1989 = vor.u32 %v1987, %v1985
      %v1990 = vshll.u32 %v1738, 16
      %v1992 = vrot.slane %v1990, 1
      %v1993 = vsel %vm293, %v1989, %v1992
      %v1994 = vshrl.u32 %v1738, 16
      %v1996 = vor.u32 %v1994, %v1992
      %v1997 = vshll.u32 %v1739, 16
      %v1999 = vrot.slane %v1997, 1
      %v2000 = vsel %vm293, %v1996, %v1999
      %v2001 = vshrl.u32 %v1739, 16
      %v2003 = vor.u32 %v2001, %v1999
      %v2005 = vshll.u32 %v1920, 16
      %v2007 = vrot.slane %v2005, 1
      %v2008 = vsel %vm293, %v2003, %v2007
      %v2010 = vsel %vm394, %v1930, 0
      %v2013 = vsel %vm394, %v1937, 0
      %v2016 = vsel %vm394, %v1944, 0
      %v2019 = vsel %vm394, %v1951, 0
      %v2022 = vsel %vm394, %v1958, 0
      %v2025 = vsel %vm394, %v1965, 0
      %v2028 = vsel %vm394, %v1972, 0
      %v2031 = vsel %vm394, %v1979, 0
      %v2034 = vsel %vm394, %v1986, 0
      %v2037 = vsel %vm394, %v1993, 0
      %v2040 = vsel %vm394, %v2000, 0
      %v2043 = vsel %vm394, %v2008, 0
      %v2046 = vsel %vm431, %v1917, 0
      %2048 = vmatprep.subr.bf16.mxu0 0
      %2049 = vmatpush1.bf16.msra.mxu0 %v2046
      %2050 = vmatprep.subr.bf16.mxu0 0
      %2051 = vmatpush1.bf16.msra.mxu0 0
      %2052 = vmatprep.subr.bf16.mxu0 0
      %2053 = vmatpush1.bf16.msra.mxu0 0
      %2054 = vmatprep.subr.bf16.mxu0 0
      %2055 = vmatpush1.bf16.msra.mxu0 0
      %2056 = vmatprep.subr.bf16.mxu0 0
      %2057 = vmatpush1.bf16.msra.mxu0 0
      %2058 = vmatprep.subr.bf16.mxu0 0
      %2059 = vmatpush1.bf16.msra.mxu0 0
      %2060 = vmatprep.subr.bf16.mxu0 0
      %2061 = vmatpush1.bf16.msra.mxu0 0
      %2062 = vmatprep.subr.bf16.mxu0 0
      %2063 = vmatpush1.bf16.msra.mxu0 0
      %2064 = vmatprep.subr.bf16.mxu0 0
      %2065 = vmatpush1.bf16.msra.mxu0 0
      %2066 = vmatprep.subr.bf16.mxu0 0
      %2067 = vmatpush1.bf16.msra.mxu0 0
      %2068 = vmatprep.subr.bf16.mxu0 0
      %2069 = vmatpush1.bf16.msra.mxu0 0
      %2070 = vmatprep.subr.bf16.mxu0 0
      %2071 = vmatpush1.bf16.msra.mxu0 0
      %2072 = vmatprep.subr.bf16.mxu0 0
      %2073 = vmatpush1.bf16.msra.mxu0 0
      %2074 = vmatprep.subr.bf16.mxu0 0
      %2075 = vmatpush1.bf16.msra.mxu0 0
      %2076 = vmatprep.subr.bf16.mxu0 0
      %2077 = vmatpush1.bf16.msra.mxu0 0
      %2078 = vmatprep.subr.bf16.mxu0 0
      %2079 = vmatpush1.bf16.msra.mxu0 0
      %2080 = vmatprep.mubr.bf16.mxu0 0
      %2081 = vmatmul.mubr.bf16.gmra.mrb[0].mxu0 %v2010
      %v2082 = vpop.f32.mrb[0].mxu0
      %v2083 = vadd.f32 0.0, %v2082
      %v2084 = vpop.f32.mrb[0].mxu0
      %v2085 = vpop.f32.mrb[0].mxu0
      %v2086 = vadd.f32 0.0, %v2085
      %v2087 = vpop.f32.mrb[0].mxu0
      %2088 = vmatprep.mubr.bf16.mxu0 0
      %2089 = vmatmul.mubr.bf16.gmra.mrb[0].mxu0 %v2013
      %v2090 = vpop.f32.mrb[0].mxu0
      %v2091 = vpop.f32.mrb[0].mxu0
      %v2092 = vpop.f32.mrb[0].mxu0
      %v2093 = vadd.f32 0.0, %v2092
      %v2094 = vpop.f32.mrb[0].mxu0
      %2095 = vmatprep.mubr.bf16.mxu0 0
      %2096 = vmatmul.mubr.bf16.gmra.mrb[0].mxu0 %v2016
      %v2097 = vpop.f32.mrb[0].mxu0
      %v2098 = vadd.f32 0.0, %v2097
      %v2099 = vpop.f32.mrb[0].mxu0
      %v2100 = vpop.f32.mrb[0].mxu0
      %v2101 = vpop.f32.mrb[0].mxu0
      %2102 = vmatprep.mubr.bf16.mxu0 0
      %2103 = vmatmul.mubr.bf16.gmra.mrb[0].mxu0 %v2019
      %v2104 = vpop.f32.mrb[0].mxu0
      %v2105 = vadd.f32 0.0, %v2104
      %v2106 = vpop.f32.mrb[0].mxu0
      %v2107 = vpop.f32.mrb[0].mxu0
      %v2108 = vadd.f32 0.0, %v2107
      %v2109 = vpop.f32.mrb[0].mxu0
      %2110 = vmatprep.mubr.bf16.mxu0 0
      %2111 = vmatmul.mubr.bf16.gmra.mrb[0].mxu0 %v2022
      %v2112 = vpop.f32.mrb[0].mxu0
      %v2113 = vpop.f32.mrb[0].mxu0
      %v2114 = vpop.f32.mrb[0].mxu0
      %v2115 = vadd.f32 0.0, %v2114
      %v2116 = vpop.f32.mrb[0].mxu0
      %2117 = vmatprep.mubr.bf16.mxu0 0
      %2118 = vmatmul.mubr.bf16.gmra.mrb[0].mxu0 %v2025
      %v2119 = vpop.f32.mrb[0].mxu0
      %v2120 = vadd.f32 0.0, %v2119
      %v2121 = vpop.f32.mrb[0].mxu0
      %v2122 = vpop.f32.mrb[0].mxu0
      %v2123 = vpop.f32.mrb[0].mxu0
      %2124 = vmatprep.mubr.bf16.mxu0 0
      %2125 = vmatmul.mubr.bf16.gmra.mrb[0].mxu0 %v2028
      %v2126 = vpop.f32.mrb[0].mxu0
      %v2127 = vadd.f32 0.0, %v2126
      %v2128 = vpop.f32.mrb[0].mxu0
      %v2129 = vpop.f32.mrb[0].mxu0
      %v2130 = vadd.f32 0.0, %v2129
      %v2131 = vpop.f32.mrb[0].mxu0
      %2132 = vmatprep.mubr.bf16.mxu0 0
      %2133 = vmatmul.mubr.bf16.gmra.mrb[0].mxu0 %v2031
      %v2134 = vpop.f32.mrb[0].mxu0
      %v2135 = vpop.f32.mrb[0].mxu0
      %v2136 = vpop.f32.mrb[0].mxu0
      %v2137 = vadd.f32 0.0, %v2136
      %v2138 = vpop.f32.mrb[0].mxu0
      %2139 = vmatprep.mubr.bf16.mxu0 0
      %2140 = vmatmul.mubr.bf16.gmra.mrb[0].mxu0 %v2034
      %v2141 = vpop.f32.mrb[0].mxu0
      %v2142 = vadd.f32 0.0, %v2141
      %v2143 = vpop.f32.mrb[0].mxu0
      %v2144 = vpop.f32.mrb[0].mxu0
      %v2145 = vpop.f32.mrb[0].mxu0
      %2146 = vmatprep.mubr.bf16.mxu0 0
      %2147 = vmatmul.mubr.bf16.gmra.mrb[0].mxu0 %v2037
      %v2148 = vpop.f32.mrb[0].mxu0
      %v2149 = vadd.f32 0.0, %v2148
      %v2150 = vpop.f32.mrb[0].mxu0
      %v2151 = vpop.f32.mrb[0].mxu0
      %v2152 = vadd.f32 0.0, %v2151
      %v2153 = vpop.f32.mrb[0].mxu0
      %2154 = vmatprep.mubr.bf16.mxu0 0
      %2155 = vmatmul.mubr.bf16.gmra.mrb[0].mxu0 %v2040
      %v2156 = vpop.f32.mrb[0].mxu0
      %v2157 = vpop.f32.mrb[0].mxu0
      %v2158 = vpop.f32.mrb[0].mxu0
      %v2159 = vadd.f32 0.0, %v2158
      %v2160 = vpop.f32.mrb[0].mxu0
      %2161 = vmatprep.mubr.bf16.mxu0 0
      %2162 = vmatmul.mubr.bf16.gmra.mrb[0].mxu0 %v2043
      %v2163 = vpop.f32.mrb[0].mxu0
      %v2164 = vadd.f32 0.0, %v2163
      %v2165 = vpop.f32.mrb[0].mxu0
      %v2166 = vpop.f32.mrb[0].mxu0
      %v2167 = vpop.f32.mrb[0].mxu0
      %2168 = vdwg.mxu0
      %v2169 = vadd.f32 %v1900, %v2083
      %v2170 = vadd.f32 %v1901, %v2086
      %v2171 = vadd.f32 %v1902, %v2093
      %v2172 = vadd.f32 %v1903, %v2098
      %v2173 = vadd.f32 %v1904, %v2105
      %v2174 = vadd.f32 %v1905, %v2108
      %v2175 = vadd.f32 %v1906, %v2115
      %v2176 = vadd.f32 %v1907, %v2120
      %v2177 = vadd.f32 %v1908, %v2127
      %v2178 = vadd.f32 %v1909, %v2130
      %v2179 = vadd.f32 %v1910, %v2137
      %v2180 = vadd.f32 %v1911, %v2142
      %v2181 = vadd.f32 %v1912, %v2149
      %v2182 = vadd.f32 %v1913, %v2152
      %v2183 = vadd.f32 %v1914, %v2159
      %v2184 = vadd.f32 %v1915, %v2164
      %s2185 = scalar_lea.vmem %s1, 16
      %v2186 = vld [vmem:[%s2185] sm:$0x3]
      %v2187 = vrot.slane %v1728, 1
      %v2188 = vrot.slane %v1729, 1
      %v2189 = vsel %vm706, %v2187, %v2188
      %v2190 = vrot.slane %v1730, 1
      %v2191 = vsel %vm706, %v2188, %v2190
      %v2192 = vrot.slane %v1731, 1
      %v2193 = vsel %vm706, %v2190, %v2192
      %v2194 = vrot.slane %v1732, 1
      %v2195 = vsel %vm706, %v2192, %v2194
      %v2196 = vrot.slane %v1733, 1
      %v2197 = vsel %vm706, %v2194, %v2196
      %v2198 = vrot.slane %v1734, 1
      %v2199 = vsel %vm706, %v2196, %v2198
      %v2200 = vrot.slane %v1735, 1
      %v2201 = vsel %vm706, %v2198, %v2200
      %v2202 = vrot.slane %v1736, 1
      %v2203 = vsel %vm706, %v2200, %v2202
      %v2204 = vrot.slane %v1737, 1
      %v2205 = vsel %vm706, %v2202, %v2204
      %v2206 = vrot.slane %v1738, 1
      %v2207 = vsel %vm706, %v2204, %v2206
      %v2208 = vrot.slane %v1739, 1
      %v2209 = vsel %vm706, %v2206, %v2208
      %v2210 = vrot.slane %v1920, 1
      %v2211 = vsel %vm706, %v2208, %v2210
      %v2213 = vsel %vm394, %v2189, 0
      %v2216 = vsel %vm394, %v2191, 0
      %v2219 = vsel %vm394, %v2193, 0
      %v2222 = vsel %vm394, %v2195, 0
      %v2225 = vsel %vm394, %v2197, 0
      %v2228 = vsel %vm394, %v2199, 0
      %v2231 = vsel %vm394, %v2201, 0
      %v2234 = vsel %vm394, %v2203, 0
      %v2237 = vsel %vm394, %v2205, 0
      %v2240 = vsel %vm394, %v2207, 0
      %v2243 = vsel %vm394, %v2209, 0
      %v2246 = vsel %vm394, %v2211, 0
      %v2249 = vsel %vm431, %v2186, 0
      %2251 = vmatprep.subr.bf16.mxu0 0
      %2252 = vmatpush1.bf16.msra.mxu0 %v2249
      %2253 = vmatprep.subr.bf16.mxu0 0
      %2254 = vmatpush1.bf16.msra.mxu0 0
      %2255 = vmatprep.subr.bf16.mxu0 0
      %2256 = vmatpush1.bf16.msra.mxu0 0
      %2257 = vmatprep.subr.bf16.mxu0 0
      %2258 = vmatpush1.bf16.msra.mxu0 0
      %2259 = vmatprep.subr.bf16.mxu0 0
      %2260 = vmatpush1.bf16.msra.mxu0 0
      %2261 = vmatprep.subr.bf16.mxu0 0
      %2262 = vmatpush1.bf16.msra.mxu0 0
      %2263 = vmatprep.subr.bf16.mxu0 0
      %2264 = vmatpush1.bf16.msra.mxu0 0
      %2265 = vmatprep.subr.bf16.mxu0 0
      %2266 = vmatpush1.bf16.msra.mxu0 0
      %2267 = vmatprep.subr.bf16.mxu0 0
      %2268 = vmatpush1.bf16.msra.mxu0 0
      %2269 = vmatprep.subr.bf16.mxu0 0
      %2270 = vmatpush1.bf16.msra.mxu0 0
      %2271 = vmatprep.subr.bf16.mxu0 0
      %2272 = vmatpush1.bf16.msra.mxu0 0
      %2273 = vmatprep.subr.bf16.mxu0 0
      %2274 = vmatpush1.bf16.msra.mxu0 0
      %2275 = vmatprep.subr.bf16.mxu0 0
      %2276 = vmatpush1.bf16.msra.mxu0 0
      %2277 = vmatprep.subr.bf16.mxu0 0
      %2278 = vmatpush1.bf16.msra.mxu0 0
      %2279 = vmatprep.subr.bf16.mxu0 0
      %2280 = vmatpush1.bf16.msra.mxu0 0
      %2281 = vmatprep.subr.bf16.mxu0 0
      %2282 = vmatpush1.bf16.msra.mxu0 0
      %2283 = vmatprep.mubr.bf16.mxu0 0
      %2284 = vmatmul.mubr.bf16.gmra.mrb[0].mxu0 %v2213
      %v2285 = vpop.f32.mrb[0].mxu0
      %v2286 = vadd.f32 0.0, %v2285
      %v2287 = vpop.f32.mrb[0].mxu0
      %v2288 = vpop.f32.mrb[0].mxu0
      %v2289 = vadd.f32 0.0, %v2288
      %v2290 = vpop.f32.mrb[0].mxu0
      %2291 = vmatprep.mubr.bf16.mxu0 0
      %2292 = vmatmul.mubr.bf16.gmra.mrb[0].mxu0 %v2216
      %v2293 = vpop.f32.mrb[0].mxu0
      %v2294 = vpop.f32.mrb[0].mxu0
      %v2295 = vpop.f32.mrb[0].mxu0
      %v2296 = vadd.f32 0.0, %v2295
      %v2297 = vpop.f32.mrb[0].mxu0
      %2298 = vmatprep.mubr.bf16.mxu0 0
      %2299 = vmatmul.mubr.bf16.gmra.mrb[0].mxu0 %v2219
      %v2300 = vpop.f32.mrb[0].mxu0
      %v2301 = vadd.f32 0.0, %v2300
      %v2302 = vpop.f32.mrb[0].mxu0
      %v2303 = vpop.f32.mrb[0].mxu0
      %v2304 = vpop.f32.mrb[0].mxu0
      %2305 = vmatprep.mubr.bf16.mxu0 0
      %2306 = vmatmul.mubr.bf16.gmra.mrb[0].mxu0 %v2222
      %v2307 = vpop.f32.mrb[0].mxu0
      %v2308 = vadd.f32 0.0, %v2307
      %v2309 = vpop.f32.mrb[0].mxu0
      %v2310 = vpop.f32.mrb[0].mxu0
      %v2311 = vadd.f32 0.0, %v2310
      %v2312 = vpop.f32.mrb[0].mxu0
      %2313 = vmatprep.mubr.bf16.mxu0 0
      %2314 = vmatmul.mubr.bf16.gmra.mrb[0].mxu0 %v2225
      %v2315 = vpop.f32.mrb[0].mxu0
      %v2316 = vpop.f32.mrb[0].mxu0
      %v2317 = vpop.f32.mrb[0].mxu0
      %v2318 = vadd.f32 0.0, %v2317
      %v2319 = vpop.f32.mrb[0].mxu0
      %2320 = vmatprep.mubr.bf16.mxu0 0
      %2321 = vmatmul.mubr.bf16.gmra.mrb[0].mxu0 %v2228
      %v2322 = vpop.f32.mrb[0].mxu0
      %v2323 = vadd.f32 0.0, %v2322
      %v2324 = vpop.f32.mrb[0].mxu0
      %v2325 = vpop.f32.mrb[0].mxu0
      %v2326 = vpop.f32.mrb[0].mxu0
      %2327 = vmatprep.mubr.bf16.mxu0 0
      %2328 = vmatmul.mubr.bf16.gmra.mrb[0].mxu0 %v2231
      %v2329 = vpop.f32.mrb[0].mxu0
      %v2330 = vadd.f32 0.0, %v2329
      %v2331 = vpop.f32.mrb[0].mxu0
      %v2332 = vpop.f32.mrb[0].mxu0
      %v2333 = vadd.f32 0.0, %v2332
      %v2334 = vpop.f32.mrb[0].mxu0
      %2335 = vmatprep.mubr.bf16.mxu0 0
      %2336 = vmatmul.mubr.bf16.gmra.mrb[0].mxu0 %v2234
      %v2337 = vpop.f32.mrb[0].mxu0
      %v2338 = vpop.f32.mrb[0].mxu0
      %v2339 = vpop.f32.mrb[0].mxu0
      %v2340 = vadd.f32 0.0, %v2339
      %v2341 = vpop.f32.mrb[0].mxu0
      %2342 = vmatprep.mubr.bf16.mxu0 0
      %2343 = vmatmul.mubr.bf16.gmra.mrb[0].mxu0 %v2237
      %v2344 = vpop.f32.mrb[0].mxu0
      %v2345 = vadd.f32 0.0, %v2344
      %v2346 = vpop.f32.mrb[0].mxu0
      %v2347 = vpop.f32.mrb[0].mxu0
      %v2348 = vpop.f32.mrb[0].mxu0
      %2349 = vmatprep.mubr.bf16.mxu0 0
      %2350 = vmatmul.mubr.bf16.gmra.mrb[0].mxu0 %v2240
      %v2351 = vpop.f32.mrb[0].mxu0
      %v2352 = vadd.f32 0.0, %v2351
      %v2353 = vpop.f32.mrb[0].mxu0
      %v2354 = vpop.f32.mrb[0].mxu0
      %v2355 = vadd.f32 0.0, %v2354
      %v2356 = vpop.f32.mrb[0].mxu0
      %2357 = vmatprep.mubr.bf16.mxu0 0
      %2358 = vmatmul.mubr.bf16.gmra.mrb[0].mxu0 %v2243
      %v2359 = vpop.f32.mrb[0].mxu0
      %v2360 = vpop.f32.mrb[0].mxu0
      %v2361 = vpop.f32.mrb[0].mxu0
      %v2362 = vadd.f32 0.0, %v2361
      %v2363 = vpop.f32.mrb[0].mxu0
      %2364 = vmatprep.mubr.bf16.mxu0 0
      %2365 = vmatmul.mubr.bf16.gmra.mrb[0].mxu0 %v2246
      %v2366 = vpop.f32.mrb[0].mxu0
      %v2367 = vadd.f32 0.0, %v2366
      %v2368 = vpop.f32.mrb[0].mxu0
      %v2369 = vpop.f32.mrb[0].mxu0
      %v2370 = vpop.f32.mrb[0].mxu0
      %2371 = vdwg.mxu0
      %v2372 = vadd.f32 %v2169, %v2286
      %v2373 = vadd.f32 %v2170, %v2289
      %v2374 = vadd.f32 %v2171, %v2296
      %v2375 = vadd.f32 %v2172, %v2301
      %v2376 = vadd.f32 %v2173, %v2308
      %v2377 = vadd.f32 %v2174, %v2311
      %v2378 = vadd.f32 %v2175, %v2318
      %v2379 = vadd.f32 %v2176, %v2323
      %v2380 = vadd.f32 %v2177, %v2330
      %v2381 = vadd.f32 %v2178, %v2333
      %v2382 = vadd.f32 %v2179, %v2340
      %v2383 = vadd.f32 %v2180, %v2345
      %v2384 = vadd.f32 %v2181, %v2352
      %v2385 = vadd.f32 %v2182, %v2355
      %v2386 = vadd.f32 %v2183, %v2362
      %v2387 = vadd.f32 %v2184, %v2367
      %v2388 = vld [vmem:[%s2] sm:$0x1]
      %v2390 = vlaneseq
      %v2391 = vshrl.u32 %v2390, 7
      %v2392 = vsub.s32 0, %v2391
      %v2393 = vrot.slane %v2388, %v2392
      %v2395 = vadd.f32 %v2372, %v2393
      %v2396 = vadd.f32 %v2373, %v2393
      %v2397 = vadd.f32 %v2374, %v2393
      %v2398 = vadd.f32 %v2375, %v2393
      %v2399 = vadd.f32 %v2376, %v2393
      %v2400 = vadd.f32 %v2377, %v2393
      %v2401 = vadd.f32 %v2378, %v2393
      %v2402 = vadd.f32 %v2379, %v2393
      %v2403 = vadd.f32 %v2380, %v2393
      %v2404 = vadd.f32 %v2381, %v2393
      %v2405 = vadd.f32 %v2382, %v2393
      %v2406 = vadd.f32 %v2383, %v2393
      %v2407 = vadd.f32 %v2384, %v2393
      %v2408 = vadd.f32 %v2385, %v2393
      %v2409 = vadd.f32 %v2386, %v2393
      %v2410 = vadd.f32 %v2387, %v2393
      %v2411 = vmax.f32 %v2395, 0.0
      %v2412 = vmax.f32 %v2396, 0.0
      %v2413 = vmax.f32 %v2397, 0.0
      %v2414 = vmax.f32 %v2398, 0.0
      %v2415 = vmax.f32 %v2399, 0.0
      %v2416 = vmax.f32 %v2400, 0.0
      %v2417 = vmax.f32 %v2401, 0.0
      %v2418 = vmax.f32 %v2402, 0.0
      %v2419 = vmax.f32 %v2403, 0.0
      %v2420 = vmax.f32 %v2404, 0.0
      %v2421 = vmax.f32 %v2405, 0.0
      %v2422 = vmax.f32 %v2406, 0.0
      %v2423 = vmax.f32 %v2407, 0.0
      %v2424 = vmax.f32 %v2408, 0.0
      %v2425 = vmax.f32 %v2409, 0.0
      %v2426 = vmax.f32 %v2410, 0.0
      %v2427 = vpack.c.bf16 %v2412, %v2411
      %v2429 = vunpack.c.l.b16 %v2427
      %v2430 = vunpack.c.h.b16 %v2427
      %v2431 = vpack.c.b16 %v2429, %v2429
      %v2432 = vpack.c.b16 %v2430, %v2430
      %vm2435 = vcmask 27648
      %2436 = vst.msk [vmem:[%s194] sm:$0xf] %vm2435, %v2431
      %2437 = vst.msk [vmem:[%s194 + $0x4] sm:$0xf] %vm2435, %v2432
      %v2438 = vpack.c.bf16 %v2414, %v2413
      %v2440 = vunpack.c.l.b16 %v2438
      %v2441 = vunpack.c.h.b16 %v2438
      %v2442 = vpack.c.b16 %v2440, %v2440
      %v2443 = vpack.c.b16 %v2441, %v2441
      %s2446 = scalar_lea.vmem %s194, 8
      %2447 = vst.msk [vmem:[%s2446] sm:$0xf] %vm2435, %v2442
      %2448 = vst.msk [vmem:[%s2446 + $0x4] sm:$0xf] %vm2435, %v2443
      %v2449 = vpack.c.bf16 %v2416, %v2415
      %v2451 = vunpack.c.l.b16 %v2449
      %v2452 = vunpack.c.h.b16 %v2449
      %v2453 = vpack.c.b16 %v2451, %v2451
      %v2454 = vpack.c.b16 %v2452, %v2452
      %s2457 = scalar_lea.vmem %s194, 16
      %2458 = vst.msk [vmem:[%s2457] sm:$0xf] %vm2435, %v2453
      %2459 = vst.msk [vmem:[%s2457 + $0x4] sm:$0xf] %vm2435, %v2454
      %v2460 = vpack.c.bf16 %v2418, %v2417
      %v2462 = vunpack.c.l.b16 %v2460
      %v2463 = vunpack.c.h.b16 %v2460
      %v2464 = vpack.c.b16 %v2462, %v2462
      %v2465 = vpack.c.b16 %v2463, %v2463
      %s2468 = scalar_lea.vmem %s194, 24
      %2469 = vst.msk [vmem:[%s2468] sm:$0xf] %vm2435, %v2464
      %2470 = vst.msk [vmem:[%s2468 + $0x4] sm:$0xf] %vm2435, %v2465
      %v2471 = vpack.c.bf16 %v2420, %v2419
      %v2473 = vunpack.c.l.b16 %v2471
      %v2474 = vunpack.c.h.b16 %v2471
      %v2475 = vpack.c.b16 %v2473, %v2473
      %v2476 = vpack.c.b16 %v2474, %v2474
      %s2479 = scalar_lea.vmem %s194, 32
      %2480 = vst.msk [vmem:[%s2479] sm:$0xf] %vm2435, %v2475
      %2481 = vst.msk [vmem:[%s2479 + $0x4] sm:$0xf] %vm2435, %v2476
      %v2482 = vpack.c.bf16 %v2422, %v2421
      %v2484 = vunpack.c.l.b16 %v2482
      %v2485 = vunpack.c.h.b16 %v2482
      %v2486 = vpack.c.b16 %v2484, %v2484
      %v2487 = vpack.c.b16 %v2485, %v2485
      %s2490 = scalar_lea.vmem %s194, 40
      %2491 = vst.msk [vmem:[%s2490] sm:$0xf] %vm2435, %v2486
      %2492 = vst.msk [vmem:[%s2490 + $0x4] sm:$0xf] %vm2435, %v2487
      %v2493 = vpack.c.bf16 %v2424, %v2423
      %v2495 = vunpack.c.l.b16 %v2493
      %v2496 = vunpack.c.h.b16 %v2493
      %v2497 = vpack.c.b16 %v2495, %v2495
      %v2498 = vpack.c.b16 %v2496, %v2496
      %s2501 = scalar_lea.vmem %s194, 48
      %2502 = vst.msk [vmem:[%s2501] sm:$0xf] %vm2435, %v2497
      %2503 = vst.msk [vmem:[%s2501 + $0x4] sm:$0xf] %vm2435, %v2498
      %v2504 = vpack.c.bf16 %v2426, %v2425
      %v2506 = vunpack.c.l.b16 %v2504
      %v2507 = vunpack.c.h.b16 %v2504
      %v2508 = vpack.c.b16 %v2506, %v2506
      %v2509 = vpack.c.b16 %v2507, %v2507
      %s2512 = scalar_lea.vmem %s194, 56
      %2513 = vst.msk [vmem:[%s2512] sm:$0xf] %vm2435, %v2508
      %2514 = vst.msk [vmem:[%s2512 + $0x4] sm:$0xf] %vm2435, %v2509
      %s2515 = smul.u32 8, %s19
      %p2516 = scmp.lt.s32.totalorder %s18, 1
      %s2517 = scalar_select %p2516, %s18, 1
      %p2518 = scmp.lt.s32.totalorder %s2515, 15
      %s2519 = scalar_select %p2518, %s2515, 15
      %s2520 = smul.addr %s2519, 2
      %s2521 = smul.addr %s2517, 32
      %s2522 = sadd.s32 %s2520, %s2521
      %s2523 = smul.addr %s2522, 4
      %s2524 = scalar_lea.vmem %s3, %s2523
      // Predicated region
      $region33: #{bottleneck_forward.4} parent=31 // pred_check
        %p2525 = pneg %p114
      $region34: #{bottleneck_forward.4} parent=31 // pred_check_branch
        %2527 = sbr.rel (%p2525) target = $region36
      $region35: #{bottleneck_forward.4} parent=31 // pred_region
        %s2528 = smul.u32 8, %s19
      $region36: #{bottleneck_forward.4} parent=31 // pred_fallthru
        _
    $region32: #{bottleneck_forward.4} parent=5 // pred_fallthru
      _
    %p2529 = scmp.le.s32.totalorder 2, %s9
    // Predicated region
    $region37: #{bottleneck_forward.4} parent=5 // pred_check
      %p2530 = pneg %p2529
    $region38: #{bottleneck_forward.4} parent=5 // pred_check_branch
      %2532 = sbr.rel (%p2530) target = $region40
    $region39: #{bottleneck_forward.4} parent=5 // pred_region
      %s2533 = ssub.s32 %s9, 2
      // Predicated region
      $region41: #{bottleneck_forward.4} parent=39 // pred_check
        %p2534 = pneg %p120
      $region42: #{bottleneck_forward.4} parent=39 // pred_check_branch
        %2536 = sbr.rel (%p2534) target = $region44
      $region43: #{bottleneck_forward.4} parent=39 // pred_region
        %s2537 = smul.u32 8, %s21
        %p2538 = scmp.lt.s32.totalorder %s20, 1
        %s2539 = scalar_select %p2538, %s20, 1
        %p2540 = scmp.lt.s32.totalorder %s2537, 15
        %s2541 = scalar_select %p2540, %s2537, 15
        %s2542 = smul.addr %s2541, 2
        %s2543 = smul.addr %s2539, 32
        %s2544 = sadd.s32 %s2542, %s2543
        %s2545 = smul.addr %s2544, 4
        %s2546 = scalar_lea.vmem %s3, %s2545
      $region44: #{bottleneck_forward.4} parent=39 // pred_fallthru
        _
    $region40: #{bottleneck_forward.4} parent=5 // pred_fallthru
      _
  $region6: #{bottleneck_forward.4} parent=0 // loop_footer
    %s13 = sadd.s32 1, %s9
  $region7: #{bottleneck_forward.4} parent=0 // loop_footer_branch
    %8 = sbr.rel target = $region3
  $region8: #{bottleneck_forward.4} parent=0 // loop_exit
    _

</llo_original>
